<compile_context>
chip_gen: v6e
topology: v6e:2x2x1
jax: 0.10.0
libtpu: 0.0.40
codegen_flags: <defaults>
</compile_context>

<pallas_src>
import functools
import math

import jax
import jax.numpy as jnp
from jax import lax
from jax.experimental import pallas as pl
from jax.experimental.pallas import tpu as pltpu


# --------------------------------------------------------------------------
# Fused forward kernel
# --------------------------------------------------------------------------
def _fused_model_kernel(
    x_ref, emb_w_ref, emb_b_ref,
    ln1w_ref, ln1b_ref,
    wqkv_ref, bqkv_ref,
    wproj_ref, bproj_ref,
    ln2w_ref, ln2b_ref,
    wfc_ref, bfc_ref,
    wfp_ref, bfp_ref,
    finw_ref, finb_ref,
    o_ref,
    *, num_layers, n_head, batch, seq_len, out_valid,
):
    B, T = batch, seq_len
    D = emb_w_ref.shape[1]
    hd = D // n_head

    # ---- shared embedding Linear applied to the concatenated sequence ------
    h = (jnp.dot(x_ref[...], emb_w_ref[...], preferred_element_type=jnp.float32)
         + emb_b_ref[...])                                        # (B*T, D)

    # ---- additive causal mask, built ONCE at (B, T, T) ----------------------
    row = lax.broadcasted_iota(jnp.int32, (B, T, T), 1)
    col = lax.broadcasted_iota(jnp.int32, (B, T, T), 2)
    # -1e30 is safe: the diagonal is never masked, so no row is all -inf.
    mask_b = jnp.where(col <= row, 0.0, -1e30).astype(jnp.float32)

    def layer_norm(v, w, b):
        # one-pass statistics: both cross-lane reductions are independent
        mu = jnp.mean(v, axis=-1, keepdims=True)
        ms = jnp.mean(v * v, axis=-1, keepdims=True)
        var = ms - mu * mu
        return (v - mu) * lax.rsqrt(var + 1e-5) * w + b

    for li in range(num_layers):            # static unroll (num_layers small)
        # ---------------- causal self-attention --------------------------
        hn = layer_norm(h, ln1w_ref[li], ln1b_ref[li])
        # fused QKV: one matmul, N = 3*D lanes. q columns were pre-scaled
        # host-side by 1/sqrt(hd), so no in-kernel score scaling is needed.
        qkv = (jnp.dot(hn, wqkv_ref[li], preferred_element_type=jnp.float32)
               + bqkv_ref[li])                                    # (B*T, 3D)

        y = None
        for hi in range(n_head):            # static loop; each head batched over B
            lo = hi * hd
            qh = qkv[:, lo:lo + hd].reshape(B, T, hd)
            kh = qkv[:, D + lo:D + lo + hd].reshape(B, T, hd)
            vh = qkv[:, 2 * D + lo:2 * D + lo + hd].reshape(B, T, hd)
            att = jnp.einsum("bqd,bkd->bqk", qh, kh,
                             preferred_element_type=jnp.float32) + mask_b
            att = att - jnp.max(att, axis=-1, keepdims=True)
            p = jnp.exp(att)
            p = p * pl.reciprocal(jnp.sum(p, axis=-1, keepdims=True), approx=True)
            head = jnp.einsum("bqk,bkd->bqd", p, vh,
                              preferred_element_type=jnp.float32)  # (B, T, hd)
            # fold the output projection per head: no lane concat / relayout
            contrib = jnp.dot(head.reshape(B * T, hd),
                              wproj_ref[li * n_head + hi],
                              preferred_element_type=jnp.float32)  # (B*T, D)
            y = contrib if y is None else y + contrib
        h = h + y + bproj_ref[li]

        # ---------------- MLP ---------------------------------------------
        hn2 = layer_norm(h, ln2w_ref[li], ln2b_ref[li])
        u = (jnp.dot(hn2, wfc_ref[li], preferred_element_type=jnp.float32)
             + bfc_ref[li])
        # TODO(synk): nn.GELU() default is erf-exact; tanh approximation used
        # for portable Mosaic lowering (~1e-3-level deviation).
        u = 0.5 * u * (1.0 + jnp.tanh(0.7978845608028654 * (u + 0.044715 * u * u * u)))
        u = (jnp.dot(u, wfp_ref[li], preferred_element_type=jnp.float32)
             + bfp_ref[li])
        h = h + u

    # ---- final Linear(T*D -> O) + softmax, lane-dense (O padded to 128) -----
    # fin_w is supplied reshaped/zero-padded to (T, D, Opad); accumulate
    # per-position partial products with a tree sum.
    # TODO(synk): a single 'btd,tdo->bo' contraction needs a multi-contracting
    # dot_general or a (B*T,D)->(B,T*D) lane-folding reshape whose Mosaic
    # lowering is risky at these layouts; per-t matmuls are kept instead.
    h3 = h.reshape(B, T, D)
    parts = [jnp.dot(h3[:, t, :], finw_ref[t], preferred_element_type=jnp.float32)
             for t in range(T)]
    while len(parts) > 1:                      # tree reduction of partials
        nxt = [parts[i] + parts[i + 1] for i in range(0, len(parts) - 1, 2)]
        if len(parts) % 2:
            nxt.append(parts[-1])
        parts = nxt
    logits = parts[0] + finb_ref[...]                             # (B, Opad)

    # masked softmax: only the first `out_valid` lanes are real logits; padded
    # lanes get probability exactly 0, so the stored row is fully lane-dense.
    lane = lax.broadcasted_iota(jnp.int32, logits.shape, 1)
    neg = jnp.where(lane < out_valid, logits, -1e30)
    mx = jnp.max(neg, axis=-1, keepdims=True)
    e = jnp.exp(neg - mx)
    # Exact divide (not approx reciprocal) so output rows sum to 1 tightly.
    o_ref[...] = e / jnp.sum(e, axis=-1, keepdims=True)


# --------------------------------------------------------------------------
# Wrapper: one fused pallas_call for the whole model
# --------------------------------------------------------------------------
def _full_spec(a):
    nd = a.ndim
    return pl.BlockSpec(a.shape, lambda i, _nd=nd: (0,) * _nd)


@functools.partial(jax.jit, static_argnames=("num_heads",))
def model_forward(params, dist1, dist2, num_heads):
    B, m_len, input_dim = dist1.shape
    n_len = dist2.shape[1]
    T = m_len + n_len
    D = params["emb_w"].shape[1]
    L = params["ln1_w"].shape[0]
    H = num_heads
    hd = D // H
    O = m_len * n_len
    Opad = max(128, ((O + 127) // 128) * 128)   # lane-dense output width

    # Shared embedding Linear: embed(concat) == concat(embed(dist1), embed(dist2)).
    x = jnp.concatenate([dist1, dist2], axis=1).reshape(B * T, input_dim)

    # ---- host-side weight packing (free under jit) --------------------------
    scale = 1.0 / math.sqrt(hd)
    wqkv = jnp.concatenate(
        [params["w_q"] * scale, params["w_k"], params["w_v"]], axis=-1)  # (L, D, 3D)
    bqkv = jnp.concatenate(
        [params["b_q"] * scale, params["b_k"], params["b_v"]], axis=-1)  # (L, 1, 3D)
    wproj = params["w_proj"].reshape(L * H, hd, D)                       # per-head slabs
    finw = jnp.pad(params["fin_w"].reshape(T, D, O),
                   ((0, 0), (0, 0), (0, Opad - O)))                      # (T, D, Opad)
    finb = jnp.pad(params["fin_b"], ((0, 0), (0, Opad - O)))             # (1, Opad)

    kern = functools.partial(_fused_model_kernel, num_layers=L, n_head=H,
                             batch=B, seq_len=T, out_valid=O)

    inputs = (
        x, params["emb_w"], params["emb_b"],
        params["ln1_w"], params["ln1_b"],
        wqkv, bqkv,
        wproj, params["b_proj"],
        params["ln2_w"], params["ln2_b"],
        params["w_fc"], params["b_fc"],
        params["w_fcp"], params["b_fcp"],
        finw, finb,
    )

    probs_pad = pl.pallas_call(
        kern,
        out_shape=jax.ShapeDtypeStruct((B, Opad), jnp.float32),
        grid=(1,),
        in_specs=[_full_spec(a) for a in inputs],
        out_specs=pl.BlockSpec((B, Opad), lambda i: (0, 0)),
        compiler_params=pltpu.CompilerParams(dimension_semantics=("arbitrary",)),
    )(*inputs)
    # TODO(synk): on v7x (2 TensorCores) split B across a leading "parallel"
    # grid axis; at B=2 on single-TC v5e/v6e that would only serialize work,
    # so the single-block launch is kept here.
    return probs_pad[:, :O].reshape(B, m_len, n_len)


# --------------------------------------------------------------------------
# Parameter init (deterministic, PyTorch-Linear-style uniform bounds)
# --------------------------------------------------------------------------
def _uniform(key, shape, fan_in):
    bound = 1.0 / math.sqrt(fan_in)
    return jax.random.uniform(key, shape, jnp.float32, -bound, bound)


def init_params(key, input_dim, model_dim, num_layers, flat_dim, out_dim):
    D = model_dim
    keys = jax.random.split(key, num_layers + 2)

    ke = jax.random.split(keys[0], 2)
    emb_w = _uniform(ke[0], (input_dim, D), input_dim)
    emb_b = _uniform(ke[1], (1, D), input_dim)

    names = ("w_q", "b_q", "w_k", "b_k", "w_v", "b_v",
             "w_proj", "b_proj", "w_fc", "b_fc", "w_fcp", "b_fcp")
    per_layer = {n: [] for n in names}
    for li in range(num_layers):
        lk = jax.random.split(keys[1 + li], 12)
        per_layer["w_q"].append(_uniform(lk[0], (D, D), D))
        per_layer["b_q"].append(_uniform(lk[1], (1, D), D))
        per_layer["w_k"].append(_uniform(lk[2], (D, D), D))
        per_layer["b_k"].append(_uniform(lk[3], (1, D), D))
        per_layer["w_v"].append(_uniform(lk[4], (D, D), D))
        per_layer["b_v"].append(_uniform(lk[5], (1, D), D))
        per_layer["w_proj"].append(_uniform(lk[6], (D, D), D))
        per_layer["b_proj"].append(_uniform(lk[7], (1, D), D))
        per_layer["w_fc"].append(_uniform(lk[8], (D, 4 * D), D))
        per_layer["b_fc"].append(_uniform(lk[9], (1, 4 * D), D))
        per_layer["w_fcp"].append(_uniform(lk[10], (4 * D, D), 4 * D))
        per_layer["b_fcp"].append(_uniform(lk[11], (1, D), 4 * D))

    kf = jax.random.split(keys[-1], 2)
    params = dict(
        emb_w=emb_w, emb_b=emb_b,
        ln1_w=jnp.ones((num_layers, 1, D), jnp.float32),
        ln1_b=jnp.zeros((num_layers, 1, D), jnp.float32),
        ln2_w=jnp.ones((num_layers, 1, D), jnp.float32),
        ln2_b=jnp.zeros((num_layers, 1, D), jnp.float32),
        # NOTE: the PyTorch reference creates this final Linear fresh inside
        # forward(); here it is deterministically initialized once.
        fin_w=_uniform(kf[0], (flat_dim, out_dim), flat_dim),
        fin_b=_uniform(kf[1], (1, out_dim), flat_dim),
    )
    for n in names:
        params[n] = jnp.stack(per_layer[n], axis=0)
    return params


# --------------------------------------------------------------------------
if __name__ == "__main__":
    key = jax.random.PRNGKey(0)
    B, m_len, n_len, input_dim = 2, 4, 4, 8
    model_dim, num_heads, num_layers = 32, 4, 2       # block_size=25 >= m+n=8
    T = m_len + n_len

    k1, k2, kp = jax.random.split(key, 3)
    dist1 = jax.random.normal(k1, (B, m_len, input_dim), jnp.float32)
    dist2 = jax.random.normal(k2, (B, n_len, input_dim), jnp.float32)

    params = init_params(kp, input_dim, model_dim, num_layers,
                         flat_dim=T * model_dim, out_dim=m_len * n_len)

    out = model_forward(params, dist1, dist2, num_heads)
    out = jax.block_until_ready(out)

    assert out.shape == (B, m_len, n_len)
    # rows of the flattened output are a probability distribution over m*n
    assert bool(jnp.allclose(jnp.sum(out.reshape(B, -1), axis=1), 1.0, atol=1e-5))
    print("KERNEL_OK")
</pallas_src>

<mosaic_0001>
module attributes {stable_mosaic.version = 11 : i64} {
  func.func @_fused_model_kernel(%arg0: i32, %arg1: memref<16x8xf32, #tpu.memory_space<vmem>>, %arg2: memref<8x32xf32, #tpu.memory_space<vmem>>, %arg3: memref<1x32xf32, #tpu.memory_space<vmem>>, %arg4: memref<2x1x32xf32, #tpu.memory_space<vmem>>, %arg5: memref<2x1x32xf32, #tpu.memory_space<vmem>>, %arg6: memref<2x32x96xf32, #tpu.memory_space<vmem>>, %arg7: memref<2x1x96xf32, #tpu.memory_space<vmem>>, %arg8: memref<8x8x32xf32, #tpu.memory_space<vmem>>, %arg9: memref<2x1x32xf32, #tpu.memory_space<vmem>>, %arg10: memref<2x1x32xf32, #tpu.memory_space<vmem>>, %arg11: memref<2x1x32xf32, #tpu.memory_space<vmem>>, %arg12: memref<2x32x128xf32, #tpu.memory_space<vmem>>, %arg13: memref<2x1x128xf32, #tpu.memory_space<vmem>>, %arg14: memref<2x128x32xf32, #tpu.memory_space<vmem>>, %arg15: memref<2x1x32xf32, #tpu.memory_space<vmem>>, %arg16: memref<8x32x128xf32, #tpu.memory_space<vmem>>, %arg17: memref<1x128xf32, #tpu.memory_space<vmem>>, %arg18: memref<2x128xf32, #tpu.memory_space<vmem>>) attributes {dimension_semantics = [#tpu.dimension_semantics<arbitrary>], iteration_bounds = array<i64: 1>, scalar_prefetch = 0 : i64, scratch_operands = 0 : i64, tpu.core_type = #tpu.core_type<tc>, window_params = [{pipeline_mode = #tpu.pipeline_mode<synchronous>, transform_indices = @transform_0, window_bounds = array<i64: 16, 8>}, {pipeline_mode = #tpu.pipeline_mode<synchronous>, transform_indices = @transform_1, window_bounds = array<i64: 8, 32>}, {pipeline_mode = #tpu.pipeline_mode<synchronous>, transform_indices = @transform_2, window_bounds = array<i64: 1, 32>}, {pipeline_mode = #tpu.pipeline_mode<synchronous>, transform_indices = @transform_3, window_bounds = array<i64: 2, 1, 32>}, {pipeline_mode = #tpu.pipeline_mode<synchronous>, transform_indices = @transform_4, window_bounds = array<i64: 2, 1, 32>}, {pipeline_mode = #tpu.pipeline_mode<synchronous>, transform_indices = @transform_5, window_bounds = array<i64: 2, 32, 96>}, {pipeline_mode = #tpu.pipeline_mode<synchronous>, transform_indices = @transform_6, window_bounds = array<i64: 2, 1, 96>}, {pipeline_mode = #tpu.pipeline_mode<synchronous>, transform_indices = @transform_7, window_bounds = array<i64: 8, 8, 32>}, {pipeline_mode = #tpu.pipeline_mode<synchronous>, transform_indices = @transform_8, window_bounds = array<i64: 2, 1, 32>}, {pipeline_mode = #tpu.pipeline_mode<synchronous>, transform_indices = @transform_9, window_bounds = array<i64: 2, 1, 32>}, {pipeline_mode = #tpu.pipeline_mode<synchronous>, transform_indices = @transform_10, window_bounds = array<i64: 2, 1, 32>}, {pipeline_mode = #tpu.pipeline_mode<synchronous>, transform_indices = @transform_11, window_bounds = array<i64: 2, 32, 128>}, {pipeline_mode = #tpu.pipeline_mode<synchronous>, transform_indices = @transform_12, window_bounds = array<i64: 2, 1, 128>}, {pipeline_mode = #tpu.pipeline_mode<synchronous>, transform_indices = @transform_13, window_bounds = array<i64: 2, 128, 32>}, {pipeline_mode = #tpu.pipeline_mode<synchronous>, transform_indices = @transform_14, window_bounds = array<i64: 2, 1, 32>}, {pipeline_mode = #tpu.pipeline_mode<synchronous>, transform_indices = @transform_15, window_bounds = array<i64: 8, 32, 128>}, {pipeline_mode = #tpu.pipeline_mode<synchronous>, transform_indices = @transform_16, window_bounds = array<i64: 1, 128>}, {pipeline_mode = #tpu.pipeline_mode<synchronous>, transform_indices = @transform_17, window_bounds = array<i64: 2, 128>}]} {
    %c0 = arith.constant 0 : index
    %c0_0 = arith.constant 0 : index
    %0 = vector.load %arg1[%c0, %c0_0] : memref<16x8xf32, #tpu.memory_space<vmem>>, vector<16x8xf32>
    %c0_1 = arith.constant 0 : index
    %c0_2 = arith.constant 0 : index
    %1 = vector.load %arg2[%c0_1, %c0_2] : memref<8x32xf32, #tpu.memory_space<vmem>>, vector<8x32xf32>
    %cst = arith.constant dense<0.000000e+00> : vector<16x32xf32>
    %2 = tpu.matmul %0, %1, %cst {dimension_numbers = #tpu.dot_dimension_numbers<[1], [0], [0], [1], [0, 0, 1, 1], [], []>} : vector<16x8xf32>, vector<8x32xf32>, vector<16x32xf32> -> vector<16x32xf32>
    %c0_3 = arith.constant 0 : index
    %c0_4 = arith.constant 0 : index
    %3 = vector.load %arg3[%c0_3, %c0_4] : memref<1x32xf32, #tpu.memory_space<vmem>>, vector<1x32xf32>
    %4 = vector.broadcast %3 : vector<1x32xf32> to vector<16x32xf32>
    %5 = arith.addf %2, %4 : vector<16x32xf32>
    %6 = tpu.iota {dimensions = array<i32: 1>} : vector<2x8x8xi32>
    %7 = tpu.iota {dimensions = array<i32: 2>} : vector<2x8x8xi32>
    %8 = arith.cmpi sle, %7, %6 : vector<2x8x8xi32>
    %cst_5 = arith.constant 0.000000e+00 : f32
    %cst_6 = arith.constant -1.000000e+30 : f32
    %9 = vector.broadcast %cst_5 : f32 to vector<2x8x8xf32>
    %10 = vector.broadcast %cst_6 : f32 to vector<2x8x8xf32>
    %11 = arith.select %8, %9, %10 : vector<2x8x8xi1>, vector<2x8x8xf32>
    %c0_7 = arith.constant 0 : index
    %c0_8 = arith.constant 0 : index
    %c0_9 = arith.constant 0 : index
    %12 = vector.load %arg4[%c0_7, %c0_8, %c0_9] : memref<2x1x32xf32, #tpu.memory_space<vmem>>, vector<1x1x32xf32>
    %13 = vector.shape_cast %12 : vector<1x1x32xf32> to vector<1x32xf32>
    %c0_10 = arith.constant 0 : index
    %c0_11 = arith.constant 0 : index
    %c0_12 = arith.constant 0 : index
    %14 = vector.load %arg5[%c0_10, %c0_11, %c0_12] : memref<2x1x32xf32, #tpu.memory_space<vmem>>, vector<1x1x32xf32>
    %15 = vector.shape_cast %14 : vector<1x1x32xf32> to vector<1x32xf32>
    %cst_13 = arith.constant dense<0.000000e+00> : vector<16xf32>
    %16 = vector.multi_reduction <add>, %5, %cst_13 [1] : vector<16x32xf32> to vector<16xf32>
    %17 = vector.shape_cast %16 : vector<16xf32> to vector<16x1xf32>
    %cst_14 = arith.constant 3.200000e+01 : f32
    %18 = vector.broadcast %cst_14 : f32 to vector<16x1xf32>
    %19 = arith.divf %17, %18 : vector<16x1xf32>
    %20 = arith.mulf %5, %5 : vector<16x32xf32>
    %cst_15 = arith.constant dense<0.000000e+00> : vector<16xf32>
    %21 = vector.multi_reduction <add>, %20, %cst_15 [1] : vector<16x32xf32> to vector<16xf32>
    %22 = vector.shape_cast %21 : vector<16xf32> to vector<16x1xf32>
    %cst_16 = arith.constant 3.200000e+01 : f32
    %23 = vector.broadcast %cst_16 : f32 to vector<16x1xf32>
    %24 = arith.divf %22, %23 : vector<16x1xf32>
    %25 = arith.mulf %19, %19 : vector<16x1xf32>
    %26 = arith.subf %24, %25 : vector<16x1xf32>
    %27 = vector.broadcast %19 : vector<16x1xf32> to vector<16x32xf32>
    %28 = arith.subf %5, %27 : vector<16x32xf32>
    %cst_17 = arith.constant 9.99999974E-6 : f32
    %29 = vector.broadcast %cst_17 : f32 to vector<16x1xf32>
    %30 = arith.addf %26, %29 : vector<16x1xf32>
    %31 = math.rsqrt %30 : vector<16x1xf32>
    %32 = vector.broadcast %31 : vector<16x1xf32> to vector<16x32xf32>
    %33 = arith.mulf %28, %32 : vector<16x32xf32>
    %34 = vector.broadcast %13 : vector<1x32xf32> to vector<16x32xf32>
    %35 = arith.mulf %33, %34 : vector<16x32xf32>
    %36 = vector.broadcast %15 : vector<1x32xf32> to vector<16x32xf32>
    %37 = arith.addf %35, %36 : vector<16x32xf32>
    %c0_18 = arith.constant 0 : index
    %c0_19 = arith.constant 0 : index
    %c0_20 = arith.constant 0 : index
    %38 = vector.load %arg6[%c0_18, %c0_19, %c0_20] : memref<2x32x96xf32, #tpu.memory_space<vmem>>, vector<1x32x96xf32>
    %39 = vector.shape_cast %38 : vector<1x32x96xf32> to vector<32x96xf32>
    %cst_21 = arith.constant dense<0.000000e+00> : vector<16x96xf32>
    %40 = tpu.matmul %37, %39, %cst_21 {dimension_numbers = #tpu.dot_dimension_numbers<[1], [0], [0], [1], [0, 0, 1, 1], [], []>} : vector<16x32xf32>, vector<32x96xf32>, vector<16x96xf32> -> vector<16x96xf32>
    %c0_22 = arith.constant 0 : index
    %c0_23 = arith.constant 0 : index
    %c0_24 = arith.constant 0 : index
    %41 = vector.load %arg7[%c0_22, %c0_23, %c0_24] : memref<2x1x96xf32, #tpu.memory_space<vmem>>, vector<1x1x96xf32>
    %42 = vector.shape_cast %41 : vector<1x1x96xf32> to vector<1x96xf32>
    %43 = vector.broadcast %42 : vector<1x96xf32> to vector<16x96xf32>
    %44 = arith.addf %40, %43 : vector<16x96xf32>
    %45 = vector.extract_strided_slice %44 {offsets = [0, 0], sizes = [16, 8], strides = [1, 1]} : vector<16x96xf32> to vector<16x8xf32>
    %46 = vector.shape_cast %45 : vector<16x8xf32> to vector<2x8x8xf32>
    %47 = vector.extract_strided_slice %44 {offsets = [0, 32], sizes = [16, 8], strides = [1, 1]} : vector<16x96xf32> to vector<16x8xf32>
    %48 = vector.shape_cast %47 : vector<16x8xf32> to vector<2x8x8xf32>
    %49 = vector.extract_strided_slice %44 {offsets = [0, 64], sizes = [16, 8], strides = [1, 1]} : vector<16x96xf32> to vector<16x8xf32>
    %50 = vector.shape_cast %49 : vector<16x8xf32> to vector<2x8x8xf32>
    "tpu.trace_start"() <{level = 10 : i32, message = "bqd,bkd->bqk"}> : () -> ()
    %cst_25 = arith.constant dense<0.000000e+00> : vector<2x8x8xf32>
    %51 = tpu.matmul %46, %48, %cst_25 {dimension_numbers = #tpu.dot_dimension_numbers<[2], [2], [1], [1], [0, 0, 0, 1, 1, 1], [0], [0]>} : vector<2x8x8xf32>, vector<2x8x8xf32>, vector<2x8x8xf32> -> vector<2x8x8xf32>
    "tpu.trace_stop"() : () -> ()
    %52 = arith.addf %51, %11 : vector<2x8x8xf32>
    %cst_26 = arith.constant dense<0xFF800000> : vector<2x8xf32>
    %53 = vector.multi_reduction <maximumf>, %52, %cst_26 [2] : vector<2x8x8xf32> to vector<2x8xf32>
    %54 = vector.shape_cast %53 : vector<2x8xf32> to vector<2x8x1xf32>
    %55 = vector.broadcast %54 : vector<2x8x1xf32> to vector<2x8x8xf32>
    %56 = arith.subf %52, %55 : vector<2x8x8xf32>
    %57 = math.exp %56 : vector<2x8x8xf32>
    %cst_27 = arith.constant dense<0.000000e+00> : vector<2x8xf32>
    %58 = vector.multi_reduction <add>, %57, %cst_27 [2] : vector<2x8x8xf32> to vector<2x8xf32>
    %59 = vector.shape_cast %58 : vector<2x8xf32> to vector<2x8x1xf32>
    %60 = tpu.reciprocal %59 {approx = true} : vector<2x8x1xf32> -> vector<2x8x1xf32>
    %61 = vector.broadcast %60 : vector<2x8x1xf32> to vector<2x8x8xf32>
    %62 = arith.mulf %57, %61 : vector<2x8x8xf32>
    "tpu.trace_start"() <{level = 10 : i32, message = "bqk,bkd->bqd"}> : () -> ()
    %cst_28 = arith.constant dense<0.000000e+00> : vector<2x8x8xf32>
    %63 = tpu.matmul %62, %50, %cst_28 {dimension_numbers = #tpu.dot_dimension_numbers<[2], [1], [1], [2], [0, 0, 0, 1, 1, 2], [0], [0]>} : vector<2x8x8xf32>, vector<2x8x8xf32>, vector<2x8x8xf32> -> vector<2x8x8xf32>
    "tpu.trace_stop"() : () -> ()
    %64 = vector.shape_cast %63 : vector<2x8x8xf32> to vector<16x8xf32>
    %c0_29 = arith.constant 0 : index
    %c0_30 = arith.constant 0 : index
    %c0_31 = arith.constant 0 : index
    %65 = vector.load %arg8[%c0_29, %c0_30, %c0_31] : memref<8x8x32xf32, #tpu.memory_space<vmem>>, vector<1x8x32xf32>
    %66 = vector.shape_cast %65 : vector<1x8x32xf32> to vector<8x32xf32>
    %cst_32 = arith.constant dense<0.000000e+00> : vector<16x32xf32>
    %67 = tpu.matmul %64, %66, %cst_32 {dimension_numbers = #tpu.dot_dimension_numbers<[1], [0], [0], [1], [0, 0, 1, 1], [], []>} : vector<16x8xf32>, vector<8x32xf32>, vector<16x32xf32> -> vector<16x32xf32>
    %68 = vector.extract_strided_slice %44 {offsets = [0, 8], sizes = [16, 8], strides = [1, 1]} : vector<16x96xf32> to vector<16x8xf32>
    %69 = vector.shape_cast %68 : vector<16x8xf32> to vector<2x8x8xf32>
    %70 = vector.extract_strided_slice %44 {offsets = [0, 40], sizes = [16, 8], strides = [1, 1]} : vector<16x96xf32> to vector<16x8xf32>
    %71 = vector.shape_cast %70 : vector<16x8xf32> to vector<2x8x8xf32>
    %72 = vector.extract_strided_slice %44 {offsets = [0, 72], sizes = [16, 8], strides = [1, 1]} : vector<16x96xf32> to vector<16x8xf32>
    %73 = vector.shape_cast %72 : vector<16x8xf32> to vector<2x8x8xf32>
    "tpu.trace_start"() <{level = 10 : i32, message = "bqd,bkd->bqk"}> : () -> ()
    %cst_33 = arith.constant dense<0.000000e+00> : vector<2x8x8xf32>
    %74 = tpu.matmul %69, %71, %cst_33 {dimension_numbers = #tpu.dot_dimension_numbers<[2], [2], [1], [1], [0, 0, 0, 1, 1, 1], [0], [0]>} : vector<2x8x8xf32>, vector<2x8x8xf32>, vector<2x8x8xf32> -> vector<2x8x8xf32>
    "tpu.trace_stop"() : () -> ()
    %75 = arith.addf %74, %11 : vector<2x8x8xf32>
    %cst_34 = arith.constant dense<0xFF800000> : vector<2x8xf32>
    %76 = vector.multi_reduction <maximumf>, %75, %cst_34 [2] : vector<2x8x8xf32> to vector<2x8xf32>
    %77 = vector.shape_cast %76 : vector<2x8xf32> to vector<2x8x1xf32>
    %78 = vector.broadcast %77 : vector<2x8x1xf32> to vector<2x8x8xf32>
    %79 = arith.subf %75, %78 : vector<2x8x8xf32>
    %80 = math.exp %79 : vector<2x8x8xf32>
    %cst_35 = arith.constant dense<0.000000e+00> : vector<2x8xf32>
    %81 = vector.multi_reduction <add>, %80, %cst_35 [2] : vector<2x8x8xf32> to vector<2x8xf32>
    %82 = vector.shape_cast %81 : vector<2x8xf32> to vector<2x8x1xf32>
    %83 = tpu.reciprocal %82 {approx = true} : vector<2x8x1xf32> -> vector<2x8x1xf32>
    %84 = vector.broadcast %83 : vector<2x8x1xf32> to vector<2x8x8xf32>
    %85 = arith.mulf %80, %84 : vector<2x8x8xf32>
    "tpu.trace_start"() <{level = 10 : i32, message = "bqk,bkd->bqd"}> : () -> ()
    %cst_36 = arith.constant dense<0.000000e+00> : vector<2x8x8xf32>
    %86 = tpu.matmul %85, %73, %cst_36 {dimension_numbers = #tpu.dot_dimension_numbers<[2], [1], [1], [2], [0, 0, 0, 1, 1, 2], [0], [0]>} : vector<2x8x8xf32>, vector<2x8x8xf32>, vector<2x8x8xf32> -> vector<2x8x8xf32>
    "tpu.trace_stop"() : () -> ()
    %87 = vector.shape_cast %86 : vector<2x8x8xf32> to vector<16x8xf32>
    %c1 = arith.constant 1 : index
    %c0_37 = arith.constant 0 : index
    %c0_38 = arith.constant 0 : index
    %88 = vector.load %arg8[%c1, %c0_37, %c0_38] : memref<8x8x32xf32, #tpu.memory_space<vmem>>, vector<1x8x32xf32>
    %89 = vector.shape_cast %88 : vector<1x8x32xf32> to vector<8x32xf32>
    %cst_39 = arith.constant dense<0.000000e+00> : vector<16x32xf32>
    %90 = tpu.matmul %87, %89, %cst_39 {dimension_numbers = #tpu.dot_dimension_numbers<[1], [0], [0], [1], [0, 0, 1, 1], [], []>} : vector<16x8xf32>, vector<8x32xf32>, vector<16x32xf32> -> vector<16x32xf32>
    %91 = arith.addf %67, %90 : vector<16x32xf32>
    %92 = vector.extract_strided_slice %44 {offsets = [0, 16], sizes = [16, 8], strides = [1, 1]} : vector<16x96xf32> to vector<16x8xf32>
    %93 = vector.shape_cast %92 : vector<16x8xf32> to vector<2x8x8xf32>
    %94 = vector.extract_strided_slice %44 {offsets = [0, 48], sizes = [16, 8], strides = [1, 1]} : vector<16x96xf32> to vector<16x8xf32>
    %95 = vector.shape_cast %94 : vector<16x8xf32> to vector<2x8x8xf32>
    %96 = vector.extract_strided_slice %44 {offsets = [0, 80], sizes = [16, 8], strides = [1, 1]} : vector<16x96xf32> to vector<16x8xf32>
    %97 = vector.shape_cast %96 : vector<16x8xf32> to vector<2x8x8xf32>
    "tpu.trace_start"() <{level = 10 : i32, message = "bqd,bkd->bqk"}> : () -> ()
    %cst_40 = arith.constant dense<0.000000e+00> : vector<2x8x8xf32>
    %98 = tpu.matmul %93, %95, %cst_40 {dimension_numbers = #tpu.dot_dimension_numbers<[2], [2], [1], [1], [0, 0, 0, 1, 1, 1], [0], [0]>} : vector<2x8x8xf32>, vector<2x8x8xf32>, vector<2x8x8xf32> -> vector<2x8x8xf32>
    "tpu.trace_stop"() : () -> ()
    %99 = arith.addf %98, %11 : vector<2x8x8xf32>
    %cst_41 = arith.constant dense<0xFF800000> : vector<2x8xf32>
    %100 = vector.multi_reduction <maximumf>, %99, %cst_41 [2] : vector<2x8x8xf32> to vector<2x8xf32>
    %101 = vector.shape_cast %100 : vector<2x8xf32> to vector<2x8x1xf32>
    %102 = vector.broadcast %101 : vector<2x8x1xf32> to vector<2x8x8xf32>
    %103 = arith.subf %99, %102 : vector<2x8x8xf32>
    %104 = math.exp %103 : vector<2x8x8xf32>
    %cst_42 = arith.constant dense<0.000000e+00> : vector<2x8xf32>
    %105 = vector.multi_reduction <add>, %104, %cst_42 [2] : vector<2x8x8xf32> to vector<2x8xf32>
    %106 = vector.shape_cast %105 : vector<2x8xf32> to vector<2x8x1xf32>
    %107 = tpu.reciprocal %106 {approx = true} : vector<2x8x1xf32> -> vector<2x8x1xf32>
    %108 = vector.broadcast %107 : vector<2x8x1xf32> to vector<2x8x8xf32>
    %109 = arith.mulf %104, %108 : vector<2x8x8xf32>
    "tpu.trace_start"() <{level = 10 : i32, message = "bqk,bkd->bqd"}> : () -> ()
    %cst_43 = arith.constant dense<0.000000e+00> : vector<2x8x8xf32>
    %110 = tpu.matmul %109, %97, %cst_43 {dimension_numbers = #tpu.dot_dimension_numbers<[2], [1], [1], [2], [0, 0, 0, 1, 1, 2], [0], [0]>} : vector<2x8x8xf32>, vector<2x8x8xf32>, vector<2x8x8xf32> -> vector<2x8x8xf32>
    "tpu.trace_stop"() : () -> ()
    %111 = vector.shape_cast %110 : vector<2x8x8xf32> to vector<16x8xf32>
    %c2 = arith.constant 2 : index
    %c0_44 = arith.constant 0 : index
    %c0_45 = arith.constant 0 : index
    %112 = vector.load %arg8[%c2, %c0_44, %c0_45] : memref<8x8x32xf32, #tpu.memory_space<vmem>>, vector<1x8x32xf32>
    %113 = vector.shape_cast %112 : vector<1x8x32xf32> to vector<8x32xf32>
    %cst_46 = arith.constant dense<0.000000e+00> : vector<16x32xf32>
    %114 = tpu.matmul %111, %113, %cst_46 {dimension_numbers = #tpu.dot_dimension_numbers<[1], [0], [0], [1], [0, 0, 1, 1], [], []>} : vector<16x8xf32>, vector<8x32xf32>, vector<16x32xf32> -> vector<16x32xf32>
    %115 = arith.addf %91, %114 : vector<16x32xf32>
    %116 = vector.extract_strided_slice %44 {offsets = [0, 24], sizes = [16, 8], strides = [1, 1]} : vector<16x96xf32> to vector<16x8xf32>
    %117 = vector.shape_cast %116 : vector<16x8xf32> to vector<2x8x8xf32>
    %118 = vector.extract_strided_slice %44 {offsets = [0, 56], sizes = [16, 8], strides = [1, 1]} : vector<16x96xf32> to vector<16x8xf32>
    %119 = vector.shape_cast %118 : vector<16x8xf32> to vector<2x8x8xf32>
    %120 = vector.extract_strided_slice %44 {offsets = [0, 88], sizes = [16, 8], strides = [1, 1]} : vector<16x96xf32> to vector<16x8xf32>
    %121 = vector.shape_cast %120 : vector<16x8xf32> to vector<2x8x8xf32>
    "tpu.trace_start"() <{level = 10 : i32, message = "bqd,bkd->bqk"}> : () -> ()
    %cst_47 = arith.constant dense<0.000000e+00> : vector<2x8x8xf32>
    %122 = tpu.matmul %117, %119, %cst_47 {dimension_numbers = #tpu.dot_dimension_numbers<[2], [2], [1], [1], [0, 0, 0, 1, 1, 1], [0], [0]>} : vector<2x8x8xf32>, vector<2x8x8xf32>, vector<2x8x8xf32> -> vector<2x8x8xf32>
    "tpu.trace_stop"() : () -> ()
    %123 = arith.addf %122, %11 : vector<2x8x8xf32>
    %cst_48 = arith.constant dense<0xFF800000> : vector<2x8xf32>
    %124 = vector.multi_reduction <maximumf>, %123, %cst_48 [2] : vector<2x8x8xf32> to vector<2x8xf32>
    %125 = vector.shape_cast %124 : vector<2x8xf32> to vector<2x8x1xf32>
    %126 = vector.broadcast %125 : vector<2x8x1xf32> to vector<2x8x8xf32>
    %127 = arith.subf %123, %126 : vector<2x8x8xf32>
    %128 = math.exp %127 : vector<2x8x8xf32>
    %cst_49 = arith.constant dense<0.000000e+00> : vector<2x8xf32>
    %129 = vector.multi_reduction <add>, %128, %cst_49 [2] : vector<2x8x8xf32> to vector<2x8xf32>
    %130 = vector.shape_cast %129 : vector<2x8xf32> to vector<2x8x1xf32>
    %131 = tpu.reciprocal %130 {approx = true} : vector<2x8x1xf32> -> vector<2x8x1xf32>
    %132 = vector.broadcast %131 : vector<2x8x1xf32> to vector<2x8x8xf32>
    %133 = arith.mulf %128, %132 : vector<2x8x8xf32>
    "tpu.trace_start"() <{level = 10 : i32, message = "bqk,bkd->bqd"}> : () -> ()
    %cst_50 = arith.constant dense<0.000000e+00> : vector<2x8x8xf32>
    %134 = tpu.matmul %133, %121, %cst_50 {dimension_numbers = #tpu.dot_dimension_numbers<[2], [1], [1], [2], [0, 0, 0, 1, 1, 2], [0], [0]>} : vector<2x8x8xf32>, vector<2x8x8xf32>, vector<2x8x8xf32> -> vector<2x8x8xf32>
    "tpu.trace_stop"() : () -> ()
    %135 = vector.shape_cast %134 : vector<2x8x8xf32> to vector<16x8xf32>
    %c3 = arith.constant 3 : index
    %c0_51 = arith.constant 0 : index
    %c0_52 = arith.constant 0 : index
    %136 = vector.load %arg8[%c3, %c0_51, %c0_52] : memref<8x8x32xf32, #tpu.memory_space<vmem>>, vector<1x8x32xf32>
    %137 = vector.shape_cast %136 : vector<1x8x32xf32> to vector<8x32xf32>
    %cst_53 = arith.constant dense<0.000000e+00> : vector<16x32xf32>
    %138 = tpu.matmul %135, %137, %cst_53 {dimension_numbers = #tpu.dot_dimension_numbers<[1], [0], [0], [1], [0, 0, 1, 1], [], []>} : vector<16x8xf32>, vector<8x32xf32>, vector<16x32xf32> -> vector<16x32xf32>
    %139 = arith.addf %115, %138 : vector<16x32xf32>
    %140 = arith.addf %5, %139 : vector<16x32xf32>
    %c0_54 = arith.constant 0 : index
    %c0_55 = arith.constant 0 : index
    %c0_56 = arith.constant 0 : index
    %141 = vector.load %arg9[%c0_54, %c0_55, %c0_56] : memref<2x1x32xf32, #tpu.memory_space<vmem>>, vector<1x1x32xf32>
    %142 = vector.shape_cast %141 : vector<1x1x32xf32> to vector<1x32xf32>
    %143 = vector.broadcast %142 : vector<1x32xf32> to vector<16x32xf32>
    %144 = arith.addf %140, %143 : vector<16x32xf32>
    %c0_57 = arith.constant 0 : index
    %c0_58 = arith.constant 0 : index
    %c0_59 = arith.constant 0 : index
    %145 = vector.load %arg10[%c0_57, %c0_58, %c0_59] : memref<2x1x32xf32, #tpu.memory_space<vmem>>, vector<1x1x32xf32>
    %146 = vector.shape_cast %145 : vector<1x1x32xf32> to vector<1x32xf32>
    %c0_60 = arith.constant 0 : index
    %c0_61 = arith.constant 0 : index
    %c0_62 = arith.constant 0 : index
    %147 = vector.load %arg11[%c0_60, %c0_61, %c0_62] : memref<2x1x32xf32, #tpu.memory_space<vmem>>, vector<1x1x32xf32>
    %148 = vector.shape_cast %147 : vector<1x1x32xf32> to vector<1x32xf32>
    %cst_63 = arith.constant dense<0.000000e+00> : vector<16xf32>
    %149 = vector.multi_reduction <add>, %144, %cst_63 [1] : vector<16x32xf32> to vector<16xf32>
    %150 = vector.shape_cast %149 : vector<16xf32> to vector<16x1xf32>
    %cst_64 = arith.constant 3.200000e+01 : f32
    %151 = vector.broadcast %cst_64 : f32 to vector<16x1xf32>
    %152 = arith.divf %150, %151 : vector<16x1xf32>
    %153 = arith.mulf %144, %144 : vector<16x32xf32>
    %cst_65 = arith.constant dense<0.000000e+00> : vector<16xf32>
    %154 = vector.multi_reduction <add>, %153, %cst_65 [1] : vector<16x32xf32> to vector<16xf32>
    %155 = vector.shape_cast %154 : vector<16xf32> to vector<16x1xf32>
    %cst_66 = arith.constant 3.200000e+01 : f32
    %156 = vector.broadcast %cst_66 : f32 to vector<16x1xf32>
    %157 = arith.divf %155, %156 : vector<16x1xf32>
    %158 = arith.mulf %152, %152 : vector<16x1xf32>
    %159 = arith.subf %157, %158 : vector<16x1xf32>
    %160 = vector.broadcast %152 : vector<16x1xf32> to vector<16x32xf32>
    %161 = arith.subf %144, %160 : vector<16x32xf32>
    %cst_67 = arith.constant 9.99999974E-6 : f32
    %162 = vector.broadcast %cst_67 : f32 to vector<16x1xf32>
    %163 = arith.addf %159, %162 : vector<16x1xf32>
    %164 = math.rsqrt %163 : vector<16x1xf32>
    %165 = vector.broadcast %164 : vector<16x1xf32> to vector<16x32xf32>
    %166 = arith.mulf %161, %165 : vector<16x32xf32>
    %167 = vector.broadcast %146 : vector<1x32xf32> to vector<16x32xf32>
    %168 = arith.mulf %166, %167 : vector<16x32xf32>
    %169 = vector.broadcast %148 : vector<1x32xf32> to vector<16x32xf32>
    %170 = arith.addf %168, %169 : vector<16x32xf32>
    %c0_68 = arith.constant 0 : index
    %c0_69 = arith.constant 0 : index
    %c0_70 = arith.constant 0 : index
    %171 = vector.load %arg12[%c0_68, %c0_69, %c0_70] : memref<2x32x128xf32, #tpu.memory_space<vmem>>, vector<1x32x128xf32>
    %172 = vector.shape_cast %171 : vector<1x32x128xf32> to vector<32x128xf32>
    %cst_71 = arith.constant dense<0.000000e+00> : vector<16x128xf32>
    %173 = tpu.matmul %170, %172, %cst_71 {dimension_numbers = #tpu.dot_dimension_numbers<[1], [0], [0], [1], [0, 0, 1, 1], [], []>} : vector<16x32xf32>, vector<32x128xf32>, vector<16x128xf32> -> vector<16x128xf32>
    %c0_72 = arith.constant 0 : index
    %c0_73 = arith.constant 0 : index
    %c0_74 = arith.constant 0 : index
    %174 = vector.load %arg13[%c0_72, %c0_73, %c0_74] : memref<2x1x128xf32, #tpu.memory_space<vmem>>, vector<1x1x128xf32>
    %175 = vector.shape_cast %174 : vector<1x1x128xf32> to vector<1x128xf32>
    %176 = vector.broadcast %175 : vector<1x128xf32> to vector<16x128xf32>
    %177 = arith.addf %173, %176 : vector<16x128xf32>
    %cst_75 = arith.constant 5.000000e-01 : f32
    %178 = vector.broadcast %cst_75 : f32 to vector<16x128xf32>
    %179 = arith.mulf %178, %177 : vector<16x128xf32>
    %cst_76 = arith.constant 4.471500e-02 : f32
    %180 = vector.broadcast %cst_76 : f32 to vector<16x128xf32>
    %181 = arith.mulf %180, %177 : vector<16x128xf32>
    %182 = arith.mulf %181, %177 : vector<16x128xf32>
    %183 = arith.mulf %182, %177 : vector<16x128xf32>
    %184 = arith.addf %177, %183 : vector<16x128xf32>
    %cst_77 = arith.constant 0.797884583 : f32
    %185 = vector.broadcast %cst_77 : f32 to vector<16x128xf32>
    %186 = arith.mulf %185, %184 : vector<16x128xf32>
    %187 = math.tanh %186 : vector<16x128xf32>
    %cst_78 = arith.constant 1.000000e+00 : f32
    %188 = vector.broadcast %cst_78 : f32 to vector<16x128xf32>
    %189 = arith.addf %188, %187 : vector<16x128xf32>
    %190 = arith.mulf %179, %189 : vector<16x128xf32>
    %c0_79 = arith.constant 0 : index
    %c0_80 = arith.constant 0 : index
    %c0_81 = arith.constant 0 : index
    %191 = vector.load %arg14[%c0_79, %c0_80, %c0_81] : memref<2x128x32xf32, #tpu.memory_space<vmem>>, vector<1x128x32xf32>
    %192 = vector.shape_cast %191 : vector<1x128x32xf32> to vector<128x32xf32>
    %cst_82 = arith.constant dense<0.000000e+00> : vector<16x32xf32>
    %193 = tpu.matmul %190, %192, %cst_82 {dimension_numbers = #tpu.dot_dimension_numbers<[1], [0], [0], [1], [0, 0, 1, 1], [], []>} : vector<16x128xf32>, vector<128x32xf32>, vector<16x32xf32> -> vector<16x32xf32>
    %c0_83 = arith.constant 0 : index
    %c0_84 = arith.constant 0 : index
    %c0_85 = arith.constant 0 : index
    %194 = vector.load %arg15[%c0_83, %c0_84, %c0_85] : memref<2x1x32xf32, #tpu.memory_space<vmem>>, vector<1x1x32xf32>
    %195 = vector.shape_cast %194 : vector<1x1x32xf32> to vector<1x32xf32>
    %196 = vector.broadcast %195 : vector<1x32xf32> to vector<16x32xf32>
    %197 = arith.addf %193, %196 : vector<16x32xf32>
    %198 = arith.addf %144, %197 : vector<16x32xf32>
    %c1_86 = arith.constant 1 : index
    %c0_87 = arith.constant 0 : index
    %c0_88 = arith.constant 0 : index
    %199 = vector.load %arg4[%c1_86, %c0_87, %c0_88] : memref<2x1x32xf32, #tpu.memory_space<vmem>>, vector<1x1x32xf32>
    %200 = vector.shape_cast %199 : vector<1x1x32xf32> to vector<1x32xf32>
    %c1_89 = arith.constant 1 : index
    %c0_90 = arith.constant 0 : index
    %c0_91 = arith.constant 0 : index
    %201 = vector.load %arg5[%c1_89, %c0_90, %c0_91] : memref<2x1x32xf32, #tpu.memory_space<vmem>>, vector<1x1x32xf32>
    %202 = vector.shape_cast %201 : vector<1x1x32xf32> to vector<1x32xf32>
    %cst_92 = arith.constant dense<0.000000e+00> : vector<16xf32>
    %203 = vector.multi_reduction <add>, %198, %cst_92 [1] : vector<16x32xf32> to vector<16xf32>
    %204 = vector.shape_cast %203 : vector<16xf32> to vector<16x1xf32>
    %cst_93 = arith.constant 3.200000e+01 : f32
    %205 = vector.broadcast %cst_93 : f32 to vector<16x1xf32>
    %206 = arith.divf %204, %205 : vector<16x1xf32>
    %207 = arith.mulf %198, %198 : vector<16x32xf32>
    %cst_94 = arith.constant dense<0.000000e+00> : vector<16xf32>
    %208 = vector.multi_reduction <add>, %207, %cst_94 [1] : vector<16x32xf32> to vector<16xf32>
    %209 = vector.shape_cast %208 : vector<16xf32> to vector<16x1xf32>
    %cst_95 = arith.constant 3.200000e+01 : f32
    %210 = vector.broadcast %cst_95 : f32 to vector<16x1xf32>
    %211 = arith.divf %209, %210 : vector<16x1xf32>
    %212 = arith.mulf %206, %206 : vector<16x1xf32>
    %213 = arith.subf %211, %212 : vector<16x1xf32>
    %214 = vector.broadcast %206 : vector<16x1xf32> to vector<16x32xf32>
    %215 = arith.subf %198, %214 : vector<16x32xf32>
    %cst_96 = arith.constant 9.99999974E-6 : f32
    %216 = vector.broadcast %cst_96 : f32 to vector<16x1xf32>
    %217 = arith.addf %213, %216 : vector<16x1xf32>
    %218 = math.rsqrt %217 : vector<16x1xf32>
    %219 = vector.broadcast %218 : vector<16x1xf32> to vector<16x32xf32>
    %220 = arith.mulf %215, %219 : vector<16x32xf32>
    %221 = vector.broadcast %200 : vector<1x32xf32> to vector<16x32xf32>
    %222 = arith.mulf %220, %221 : vector<16x32xf32>
    %223 = vector.broadcast %202 : vector<1x32xf32> to vector<16x32xf32>
    %224 = arith.addf %222, %223 : vector<16x32xf32>
    %c1_97 = arith.constant 1 : index
    %c0_98 = arith.constant 0 : index
    %c0_99 = arith.constant 0 : index
    %225 = vector.load %arg6[%c1_97, %c0_98, %c0_99] : memref<2x32x96xf32, #tpu.memory_space<vmem>>, vector<1x32x96xf32>
    %226 = vector.shape_cast %225 : vector<1x32x96xf32> to vector<32x96xf32>
    %cst_100 = arith.constant dense<0.000000e+00> : vector<16x96xf32>
    %227 = tpu.matmul %224, %226, %cst_100 {dimension_numbers = #tpu.dot_dimension_numbers<[1], [0], [0], [1], [0, 0, 1, 1], [], []>} : vector<16x32xf32>, vector<32x96xf32>, vector<16x96xf32> -> vector<16x96xf32>
    %c1_101 = arith.constant 1 : index
    %c0_102 = arith.constant 0 : index
    %c0_103 = arith.constant 0 : index
    %228 = vector.load %arg7[%c1_101, %c0_102, %c0_103] : memref<2x1x96xf32, #tpu.memory_space<vmem>>, vector<1x1x96xf32>
    %229 = vector.shape_cast %228 : vector<1x1x96xf32> to vector<1x96xf32>
    %230 = vector.broadcast %229 : vector<1x96xf32> to vector<16x96xf32>
    %231 = arith.addf %227, %230 : vector<16x96xf32>
    %232 = vector.extract_strided_slice %231 {offsets = [0, 0], sizes = [16, 8], strides = [1, 1]} : vector<16x96xf32> to vector<16x8xf32>
    %233 = vector.shape_cast %232 : vector<16x8xf32> to vector<2x8x8xf32>
    %234 = vector.extract_strided_slice %231 {offsets = [0, 32], sizes = [16, 8], strides = [1, 1]} : vector<16x96xf32> to vector<16x8xf32>
    %235 = vector.shape_cast %234 : vector<16x8xf32> to vector<2x8x8xf32>
    %236 = vector.extract_strided_slice %231 {offsets = [0, 64], sizes = [16, 8], strides = [1, 1]} : vector<16x96xf32> to vector<16x8xf32>
    %237 = vector.shape_cast %236 : vector<16x8xf32> to vector<2x8x8xf32>
    "tpu.trace_start"() <{level = 10 : i32, message = "bqd,bkd->bqk"}> : () -> ()
    %cst_104 = arith.constant dense<0.000000e+00> : vector<2x8x8xf32>
    %238 = tpu.matmul %233, %235, %cst_104 {dimension_numbers = #tpu.dot_dimension_numbers<[2], [2], [1], [1], [0, 0, 0, 1, 1, 1], [0], [0]>} : vector<2x8x8xf32>, vector<2x8x8xf32>, vector<2x8x8xf32> -> vector<2x8x8xf32>
    "tpu.trace_stop"() : () -> ()
    %239 = arith.addf %238, %11 : vector<2x8x8xf32>
    %cst_105 = arith.constant dense<0xFF800000> : vector<2x8xf32>
    %240 = vector.multi_reduction <maximumf>, %239, %cst_105 [2] : vector<2x8x8xf32> to vector<2x8xf32>
    %241 = vector.shape_cast %240 : vector<2x8xf32> to vector<2x8x1xf32>
    %242 = vector.broadcast %241 : vector<2x8x1xf32> to vector<2x8x8xf32>
    %243 = arith.subf %239, %242 : vector<2x8x8xf32>
    %244 = math.exp %243 : vector<2x8x8xf32>
    %cst_106 = arith.constant dense<0.000000e+00> : vector<2x8xf32>
    %245 = vector.multi_reduction <add>, %244, %cst_106 [2] : vector<2x8x8xf32> to vector<2x8xf32>
    %246 = vector.shape_cast %245 : vector<2x8xf32> to vector<2x8x1xf32>
    %247 = tpu.reciprocal %246 {approx = true} : vector<2x8x1xf32> -> vector<2x8x1xf32>
    %248 = vector.broadcast %247 : vector<2x8x1xf32> to vector<2x8x8xf32>
    %249 = arith.mulf %244, %248 : vector<2x8x8xf32>
    "tpu.trace_start"() <{level = 10 : i32, message = "bqk,bkd->bqd"}> : () -> ()
    %cst_107 = arith.constant dense<0.000000e+00> : vector<2x8x8xf32>
    %250 = tpu.matmul %249, %237, %cst_107 {dimension_numbers = #tpu.dot_dimension_numbers<[2], [1], [1], [2], [0, 0, 0, 1, 1, 2], [0], [0]>} : vector<2x8x8xf32>, vector<2x8x8xf32>, vector<2x8x8xf32> -> vector<2x8x8xf32>
    "tpu.trace_stop"() : () -> ()
    %251 = vector.shape_cast %250 : vector<2x8x8xf32> to vector<16x8xf32>
    %c4 = arith.constant 4 : index
    %c0_108 = arith.constant 0 : index
    %c0_109 = arith.constant 0 : index
    %252 = vector.load %arg8[%c4, %c0_108, %c0_109] : memref<8x8x32xf32, #tpu.memory_space<vmem>>, vector<1x8x32xf32>
    %253 = vector.shape_cast %252 : vector<1x8x32xf32> to vector<8x32xf32>
    %cst_110 = arith.constant dense<0.000000e+00> : vector<16x32xf32>
    %254 = tpu.matmul %251, %253, %cst_110 {dimension_numbers = #tpu.dot_dimension_numbers<[1], [0], [0], [1], [0, 0, 1, 1], [], []>} : vector<16x8xf32>, vector<8x32xf32>, vector<16x32xf32> -> vector<16x32xf32>
    %255 = vector.extract_strided_slice %231 {offsets = [0, 8], sizes = [16, 8], strides = [1, 1]} : vector<16x96xf32> to vector<16x8xf32>
    %256 = vector.shape_cast %255 : vector<16x8xf32> to vector<2x8x8xf32>
    %257 = vector.extract_strided_slice %231 {offsets = [0, 40], sizes = [16, 8], strides = [1, 1]} : vector<16x96xf32> to vector<16x8xf32>
    %258 = vector.shape_cast %257 : vector<16x8xf32> to vector<2x8x8xf32>
    %259 = vector.extract_strided_slice %231 {offsets = [0, 72], sizes = [16, 8], strides = [1, 1]} : vector<16x96xf32> to vector<16x8xf32>
    %260 = vector.shape_cast %259 : vector<16x8xf32> to vector<2x8x8xf32>
    "tpu.trace_start"() <{level = 10 : i32, message = "bqd,bkd->bqk"}> : () -> ()
    %cst_111 = arith.constant dense<0.000000e+00> : vector<2x8x8xf32>
    %261 = tpu.matmul %256, %258, %cst_111 {dimension_numbers = #tpu.dot_dimension_numbers<[2], [2], [1], [1], [0, 0, 0, 1, 1, 1], [0], [0]>} : vector<2x8x8xf32>, vector<2x8x8xf32>, vector<2x8x8xf32> -> vector<2x8x8xf32>
    "tpu.trace_stop"() : () -> ()
    %262 = arith.addf %261, %11 : vector<2x8x8xf32>
    %cst_112 = arith.constant dense<0xFF800000> : vector<2x8xf32>
    %263 = vector.multi_reduction <maximumf>, %262, %cst_112 [2] : vector<2x8x8xf32> to vector<2x8xf32>
    %264 = vector.shape_cast %263 : vector<2x8xf32> to vector<2x8x1xf32>
    %265 = vector.broadcast %264 : vector<2x8x1xf32> to vector<2x8x8xf32>
    %266 = arith.subf %262, %265 : vector<2x8x8xf32>
    %267 = math.exp %266 : vector<2x8x8xf32>
    %cst_113 = arith.constant dense<0.000000e+00> : vector<2x8xf32>
    %268 = vector.multi_reduction <add>, %267, %cst_113 [2] : vector<2x8x8xf32> to vector<2x8xf32>
    %269 = vector.shape_cast %268 : vector<2x8xf32> to vector<2x8x1xf32>
    %270 = tpu.reciprocal %269 {approx = true} : vector<2x8x1xf32> -> vector<2x8x1xf32>
    %271 = vector.broadcast %270 : vector<2x8x1xf32> to vector<2x8x8xf32>
    %272 = arith.mulf %267, %271 : vector<2x8x8xf32>
    "tpu.trace_start"() <{level = 10 : i32, message = "bqk,bkd->bqd"}> : () -> ()
    %cst_114 = arith.constant dense<0.000000e+00> : vector<2x8x8xf32>
    %273 = tpu.matmul %272, %260, %cst_114 {dimension_numbers = #tpu.dot_dimension_numbers<[2], [1], [1], [2], [0, 0, 0, 1, 1, 2], [0], [0]>} : vector<2x8x8xf32>, vector<2x8x8xf32>, vector<2x8x8xf32> -> vector<2x8x8xf32>
    "tpu.trace_stop"() : () -> ()
    %274 = vector.shape_cast %273 : vector<2x8x8xf32> to vector<16x8xf32>
    %c5 = arith.constant 5 : index
    %c0_115 = arith.constant 0 : index
    %c0_116 = arith.constant 0 : index
    %275 = vector.load %arg8[%c5, %c0_115, %c0_116] : memref<8x8x32xf32, #tpu.memory_space<vmem>>, vector<1x8x32xf32>
    %276 = vector.shape_cast %275 : vector<1x8x32xf32> to vector<8x32xf32>
    %cst_117 = arith.constant dense<0.000000e+00> : vector<16x32xf32>
    %277 = tpu.matmul %274, %276, %cst_117 {dimension_numbers = #tpu.dot_dimension_numbers<[1], [0], [0], [1], [0, 0, 1, 1], [], []>} : vector<16x8xf32>, vector<8x32xf32>, vector<16x32xf32> -> vector<16x32xf32>
    %278 = arith.addf %254, %277 : vector<16x32xf32>
    %279 = vector.extract_strided_slice %231 {offsets = [0, 16], sizes = [16, 8], strides = [1, 1]} : vector<16x96xf32> to vector<16x8xf32>
    %280 = vector.shape_cast %279 : vector<16x8xf32> to vector<2x8x8xf32>
    %281 = vector.extract_strided_slice %231 {offsets = [0, 48], sizes = [16, 8], strides = [1, 1]} : vector<16x96xf32> to vector<16x8xf32>
    %282 = vector.shape_cast %281 : vector<16x8xf32> to vector<2x8x8xf32>
    %283 = vector.extract_strided_slice %231 {offsets = [0, 80], sizes = [16, 8], strides = [1, 1]} : vector<16x96xf32> to vector<16x8xf32>
    %284 = vector.shape_cast %283 : vector<16x8xf32> to vector<2x8x8xf32>
    "tpu.trace_start"() <{level = 10 : i32, message = "bqd,bkd->bqk"}> : () -> ()
    %cst_118 = arith.constant dense<0.000000e+00> : vector<2x8x8xf32>
    %285 = tpu.matmul %280, %282, %cst_118 {dimension_numbers = #tpu.dot_dimension_numbers<[2], [2], [1], [1], [0, 0, 0, 1, 1, 1], [0], [0]>} : vector<2x8x8xf32>, vector<2x8x8xf32>, vector<2x8x8xf32> -> vector<2x8x8xf32>
    "tpu.trace_stop"() : () -> ()
    %286 = arith.addf %285, %11 : vector<2x8x8xf32>
    %cst_119 = arith.constant dense<0xFF800000> : vector<2x8xf32>
    %287 = vector.multi_reduction <maximumf>, %286, %cst_119 [2] : vector<2x8x8xf32> to vector<2x8xf32>
    %288 = vector.shape_cast %287 : vector<2x8xf32> to vector<2x8x1xf32>
    %289 = vector.broadcast %288 : vector<2x8x1xf32> to vector<2x8x8xf32>
    %290 = arith.subf %286, %289 : vector<2x8x8xf32>
    %291 = math.exp %290 : vector<2x8x8xf32>
    %cst_120 = arith.constant dense<0.000000e+00> : vector<2x8xf32>
    %292 = vector.multi_reduction <add>, %291, %cst_120 [2] : vector<2x8x8xf32> to vector<2x8xf32>
    %293 = vector.shape_cast %292 : vector<2x8xf32> to vector<2x8x1xf32>
    %294 = tpu.reciprocal %293 {approx = true} : vector<2x8x1xf32> -> vector<2x8x1xf32>
    %295 = vector.broadcast %294 : vector<2x8x1xf32> to vector<2x8x8xf32>
    %296 = arith.mulf %291, %295 : vector<2x8x8xf32>
    "tpu.trace_start"() <{level = 10 : i32, message = "bqk,bkd->bqd"}> : () -> ()
    %cst_121 = arith.constant dense<0.000000e+00> : vector<2x8x8xf32>
    %297 = tpu.matmul %296, %284, %cst_121 {dimension_numbers = #tpu.dot_dimension_numbers<[2], [1], [1], [2], [0, 0, 0, 1, 1, 2], [0], [0]>} : vector<2x8x8xf32>, vector<2x8x8xf32>, vector<2x8x8xf32> -> vector<2x8x8xf32>
    "tpu.trace_stop"() : () -> ()
    %298 = vector.shape_cast %297 : vector<2x8x8xf32> to vector<16x8xf32>
    %c6 = arith.constant 6 : index
    %c0_122 = arith.constant 0 : index
    %c0_123 = arith.constant 0 : index
    %299 = vector.load %arg8[%c6, %c0_122, %c0_123] : memref<8x8x32xf32, #tpu.memory_space<vmem>>, vector<1x8x32xf32>
    %300 = vector.shape_cast %299 : vector<1x8x32xf32> to vector<8x32xf32>
    %cst_124 = arith.constant dense<0.000000e+00> : vector<16x32xf32>
    %301 = tpu.matmul %298, %300, %cst_124 {dimension_numbers = #tpu.dot_dimension_numbers<[1], [0], [0], [1], [0, 0, 1, 1], [], []>} : vector<16x8xf32>, vector<8x32xf32>, vector<16x32xf32> -> vector<16x32xf32>
    %302 = arith.addf %278, %301 : vector<16x32xf32>
    %303 = vector.extract_strided_slice %231 {offsets = [0, 24], sizes = [16, 8], strides = [1, 1]} : vector<16x96xf32> to vector<16x8xf32>
    %304 = vector.shape_cast %303 : vector<16x8xf32> to vector<2x8x8xf32>
    %305 = vector.extract_strided_slice %231 {offsets = [0, 56], sizes = [16, 8], strides = [1, 1]} : vector<16x96xf32> to vector<16x8xf32>
    %306 = vector.shape_cast %305 : vector<16x8xf32> to vector<2x8x8xf32>
    %307 = vector.extract_strided_slice %231 {offsets = [0, 88], sizes = [16, 8], strides = [1, 1]} : vector<16x96xf32> to vector<16x8xf32>
    %308 = vector.shape_cast %307 : vector<16x8xf32> to vector<2x8x8xf32>
    "tpu.trace_start"() <{level = 10 : i32, message = "bqd,bkd->bqk"}> : () -> ()
    %cst_125 = arith.constant dense<0.000000e+00> : vector<2x8x8xf32>
    %309 = tpu.matmul %304, %306, %cst_125 {dimension_numbers = #tpu.dot_dimension_numbers<[2], [2], [1], [1], [0, 0, 0, 1, 1, 1], [0], [0]>} : vector<2x8x8xf32>, vector<2x8x8xf32>, vector<2x8x8xf32> -> vector<2x8x8xf32>
    "tpu.trace_stop"() : () -> ()
    %310 = arith.addf %309, %11 : vector<2x8x8xf32>
    %cst_126 = arith.constant dense<0xFF800000> : vector<2x8xf32>
    %311 = vector.multi_reduction <maximumf>, %310, %cst_126 [2] : vector<2x8x8xf32> to vector<2x8xf32>
    %312 = vector.shape_cast %311 : vector<2x8xf32> to vector<2x8x1xf32>
    %313 = vector.broadcast %312 : vector<2x8x1xf32> to vector<2x8x8xf32>
    %314 = arith.subf %310, %313 : vector<2x8x8xf32>
    %315 = math.exp %314 : vector<2x8x8xf32>
    %cst_127 = arith.constant dense<0.000000e+00> : vector<2x8xf32>
    %316 = vector.multi_reduction <add>, %315, %cst_127 [2] : vector<2x8x8xf32> to vector<2x8xf32>
    %317 = vector.shape_cast %316 : vector<2x8xf32> to vector<2x8x1xf32>
    %318 = tpu.reciprocal %317 {approx = true} : vector<2x8x1xf32> -> vector<2x8x1xf32>
    %319 = vector.broadcast %318 : vector<2x8x1xf32> to vector<2x8x8xf32>
    %320 = arith.mulf %315, %319 : vector<2x8x8xf32>
    "tpu.trace_start"() <{level = 10 : i32, message = "bqk,bkd->bqd"}> : () -> ()
    %cst_128 = arith.constant dense<0.000000e+00> : vector<2x8x8xf32>
    %321 = tpu.matmul %320, %308, %cst_128 {dimension_numbers = #tpu.dot_dimension_numbers<[2], [1], [1], [2], [0, 0, 0, 1, 1, 2], [0], [0]>} : vector<2x8x8xf32>, vector<2x8x8xf32>, vector<2x8x8xf32> -> vector<2x8x8xf32>
    "tpu.trace_stop"() : () -> ()
    %322 = vector.shape_cast %321 : vector<2x8x8xf32> to vector<16x8xf32>
    %c7 = arith.constant 7 : index
    %c0_129 = arith.constant 0 : index
    %c0_130 = arith.constant 0 : index
    %323 = vector.load %arg8[%c7, %c0_129, %c0_130] : memref<8x8x32xf32, #tpu.memory_space<vmem>>, vector<1x8x32xf32>
    %324 = vector.shape_cast %323 : vector<1x8x32xf32> to vector<8x32xf32>
    %cst_131 = arith.constant dense<0.000000e+00> : vector<16x32xf32>
    %325 = tpu.matmul %322, %324, %cst_131 {dimension_numbers = #tpu.dot_dimension_numbers<[1], [0], [0], [1], [0, 0, 1, 1], [], []>} : vector<16x8xf32>, vector<8x32xf32>, vector<16x32xf32> -> vector<16x32xf32>
    %326 = arith.addf %302, %325 : vector<16x32xf32>
    %327 = arith.addf %198, %326 : vector<16x32xf32>
    %c1_132 = arith.constant 1 : index
    %c0_133 = arith.constant 0 : index
    %c0_134 = arith.constant 0 : index
    %328 = vector.load %arg9[%c1_132, %c0_133, %c0_134] : memref<2x1x32xf32, #tpu.memory_space<vmem>>, vector<1x1x32xf32>
    %329 = vector.shape_cast %328 : vector<1x1x32xf32> to vector<1x32xf32>
    %330 = vector.broadcast %329 : vector<1x32xf32> to vector<16x32xf32>
    %331 = arith.addf %327, %330 : vector<16x32xf32>
    %c1_135 = arith.constant 1 : index
    %c0_136 = arith.constant 0 : index
    %c0_137 = arith.constant 0 : index
    %332 = vector.load %arg10[%c1_135, %c0_136, %c0_137] : memref<2x1x32xf32, #tpu.memory_space<vmem>>, vector<1x1x32xf32>
    %333 = vector.shape_cast %332 : vector<1x1x32xf32> to vector<1x32xf32>
    %c1_138 = arith.constant 1 : index
    %c0_139 = arith.constant 0 : index
    %c0_140 = arith.constant 0 : index
    %334 = vector.load %arg11[%c1_138, %c0_139, %c0_140] : memref<2x1x32xf32, #tpu.memory_space<vmem>>, vector<1x1x32xf32>
    %335 = vector.shape_cast %334 : vector<1x1x32xf32> to vector<1x32xf32>
    %cst_141 = arith.constant dense<0.000000e+00> : vector<16xf32>
    %336 = vector.multi_reduction <add>, %331, %cst_141 [1] : vector<16x32xf32> to vector<16xf32>
    %337 = vector.shape_cast %336 : vector<16xf32> to vector<16x1xf32>
    %cst_142 = arith.constant 3.200000e+01 : f32
    %338 = vector.broadcast %cst_142 : f32 to vector<16x1xf32>
    %339 = arith.divf %337, %338 : vector<16x1xf32>
    %340 = arith.mulf %331, %331 : vector<16x32xf32>
    %cst_143 = arith.constant dense<0.000000e+00> : vector<16xf32>
    %341 = vector.multi_reduction <add>, %340, %cst_143 [1] : vector<16x32xf32> to vector<16xf32>
    %342 = vector.shape_cast %341 : vector<16xf32> to vector<16x1xf32>
    %cst_144 = arith.constant 3.200000e+01 : f32
    %343 = vector.broadcast %cst_144 : f32 to vector<16x1xf32>
    %344 = arith.divf %342, %343 : vector<16x1xf32>
    %345 = arith.mulf %339, %339 : vector<16x1xf32>
    %346 = arith.subf %344, %345 : vector<16x1xf32>
    %347 = vector.broadcast %339 : vector<16x1xf32> to vector<16x32xf32>
    %348 = arith.subf %331, %347 : vector<16x32xf32>
    %cst_145 = arith.constant 9.99999974E-6 : f32
    %349 = vector.broadcast %cst_145 : f32 to vector<16x1xf32>
    %350 = arith.addf %346, %349 : vector<16x1xf32>
    %351 = math.rsqrt %350 : vector<16x1xf32>
    %352 = vector.broadcast %351 : vector<16x1xf32> to vector<16x32xf32>
    %353 = arith.mulf %348, %352 : vector<16x32xf32>
    %354 = vector.broadcast %333 : vector<1x32xf32> to vector<16x32xf32>
    %355 = arith.mulf %353, %354 : vector<16x32xf32>
    %356 = vector.broadcast %335 : vector<1x32xf32> to vector<16x32xf32>
    %357 = arith.addf %355, %356 : vector<16x32xf32>
    %c1_146 = arith.constant 1 : index
    %c0_147 = arith.constant 0 : index
    %c0_148 = arith.constant 0 : index
    %358 = vector.load %arg12[%c1_146, %c0_147, %c0_148] : memref<2x32x128xf32, #tpu.memory_space<vmem>>, vector<1x32x128xf32>
    %359 = vector.shape_cast %358 : vector<1x32x128xf32> to vector<32x128xf32>
    %cst_149 = arith.constant dense<0.000000e+00> : vector<16x128xf32>
    %360 = tpu.matmul %357, %359, %cst_149 {dimension_numbers = #tpu.dot_dimension_numbers<[1], [0], [0], [1], [0, 0, 1, 1], [], []>} : vector<16x32xf32>, vector<32x128xf32>, vector<16x128xf32> -> vector<16x128xf32>
    %c1_150 = arith.constant 1 : index
    %c0_151 = arith.constant 0 : index
    %c0_152 = arith.constant 0 : index
    %361 = vector.load %arg13[%c1_150, %c0_151, %c0_152] : memref<2x1x128xf32, #tpu.memory_space<vmem>>, vector<1x1x128xf32>
    %362 = vector.shape_cast %361 : vector<1x1x128xf32> to vector<1x128xf32>
    %363 = vector.broadcast %362 : vector<1x128xf32> to vector<16x128xf32>
    %364 = arith.addf %360, %363 : vector<16x128xf32>
    %cst_153 = arith.constant 5.000000e-01 : f32
    %365 = vector.broadcast %cst_153 : f32 to vector<16x128xf32>
    %366 = arith.mulf %365, %364 : vector<16x128xf32>
    %cst_154 = arith.constant 4.471500e-02 : f32
    %367 = vector.broadcast %cst_154 : f32 to vector<16x128xf32>
    %368 = arith.mulf %367, %364 : vector<16x128xf32>
    %369 = arith.mulf %368, %364 : vector<16x128xf32>
    %370 = arith.mulf %369, %364 : vector<16x128xf32>
    %371 = arith.addf %364, %370 : vector<16x128xf32>
    %cst_155 = arith.constant 0.797884583 : f32
    %372 = vector.broadcast %cst_155 : f32 to vector<16x128xf32>
    %373 = arith.mulf %372, %371 : vector<16x128xf32>
    %374 = math.tanh %373 : vector<16x128xf32>
    %cst_156 = arith.constant 1.000000e+00 : f32
    %375 = vector.broadcast %cst_156 : f32 to vector<16x128xf32>
    %376 = arith.addf %375, %374 : vector<16x128xf32>
    %377 = arith.mulf %366, %376 : vector<16x128xf32>
    %c1_157 = arith.constant 1 : index
    %c0_158 = arith.constant 0 : index
    %c0_159 = arith.constant 0 : index
    %378 = vector.load %arg14[%c1_157, %c0_158, %c0_159] : memref<2x128x32xf32, #tpu.memory_space<vmem>>, vector<1x128x32xf32>
    %379 = vector.shape_cast %378 : vector<1x128x32xf32> to vector<128x32xf32>
    %cst_160 = arith.constant dense<0.000000e+00> : vector<16x32xf32>
    %380 = tpu.matmul %377, %379, %cst_160 {dimension_numbers = #tpu.dot_dimension_numbers<[1], [0], [0], [1], [0, 0, 1, 1], [], []>} : vector<16x128xf32>, vector<128x32xf32>, vector<16x32xf32> -> vector<16x32xf32>
    %c1_161 = arith.constant 1 : index
    %c0_162 = arith.constant 0 : index
    %c0_163 = arith.constant 0 : index
    %381 = vector.load %arg15[%c1_161, %c0_162, %c0_163] : memref<2x1x32xf32, #tpu.memory_space<vmem>>, vector<1x1x32xf32>
    %382 = vector.shape_cast %381 : vector<1x1x32xf32> to vector<1x32xf32>
    %383 = vector.broadcast %382 : vector<1x32xf32> to vector<16x32xf32>
    %384 = arith.addf %380, %383 : vector<16x32xf32>
    %385 = arith.addf %331, %384 : vector<16x32xf32>
    %386 = vector.shape_cast %385 : vector<16x32xf32> to vector<2x8x32xf32>
    %387 = vector.extract_strided_slice %386 {offsets = [0, 0, 0], sizes = [2, 1, 32], strides = [1, 1, 1]} : vector<2x8x32xf32> to vector<2x1x32xf32>
    %388 = vector.shape_cast %387 : vector<2x1x32xf32> to vector<2x32xf32>
    %c0_164 = arith.constant 0 : index
    %c0_165 = arith.constant 0 : index
    %c0_166 = arith.constant 0 : index
    %389 = vector.load %arg16[%c0_164, %c0_165, %c0_166] : memref<8x32x128xf32, #tpu.memory_space<vmem>>, vector<1x32x128xf32>
    %390 = vector.shape_cast %389 : vector<1x32x128xf32> to vector<32x128xf32>
    %cst_167 = arith.constant dense<0.000000e+00> : vector<2x128xf32>
    %391 = tpu.matmul %388, %390, %cst_167 {dimension_numbers = #tpu.dot_dimension_numbers<[1], [0], [0], [1], [0, 0, 1, 1], [], []>} : vector<2x32xf32>, vector<32x128xf32>, vector<2x128xf32> -> vector<2x128xf32>
    %392 = vector.extract_strided_slice %386 {offsets = [0, 1, 0], sizes = [2, 1, 32], strides = [1, 1, 1]} : vector<2x8x32xf32> to vector<2x1x32xf32>
    %393 = vector.shape_cast %392 : vector<2x1x32xf32> to vector<2x32xf32>
    %c1_168 = arith.constant 1 : index
    %c0_169 = arith.constant 0 : index
    %c0_170 = arith.constant 0 : index
    %394 = vector.load %arg16[%c1_168, %c0_169, %c0_170] : memref<8x32x128xf32, #tpu.memory_space<vmem>>, vector<1x32x128xf32>
    %395 = vector.shape_cast %394 : vector<1x32x128xf32> to vector<32x128xf32>
    %cst_171 = arith.constant dense<0.000000e+00> : vector<2x128xf32>
    %396 = tpu.matmul %393, %395, %cst_171 {dimension_numbers = #tpu.dot_dimension_numbers<[1], [0], [0], [1], [0, 0, 1, 1], [], []>} : vector<2x32xf32>, vector<32x128xf32>, vector<2x128xf32> -> vector<2x128xf32>
    %397 = vector.extract_strided_slice %386 {offsets = [0, 2, 0], sizes = [2, 1, 32], strides = [1, 1, 1]} : vector<2x8x32xf32> to vector<2x1x32xf32>
    %398 = vector.shape_cast %397 : vector<2x1x32xf32> to vector<2x32xf32>
    %c2_172 = arith.constant 2 : index
    %c0_173 = arith.constant 0 : index
    %c0_174 = arith.constant 0 : index
    %399 = vector.load %arg16[%c2_172, %c0_173, %c0_174] : memref<8x32x128xf32, #tpu.memory_space<vmem>>, vector<1x32x128xf32>
    %400 = vector.shape_cast %399 : vector<1x32x128xf32> to vector<32x128xf32>
    %cst_175 = arith.constant dense<0.000000e+00> : vector<2x128xf32>
    %401 = tpu.matmul %398, %400, %cst_175 {dimension_numbers = #tpu.dot_dimension_numbers<[1], [0], [0], [1], [0, 0, 1, 1], [], []>} : vector<2x32xf32>, vector<32x128xf32>, vector<2x128xf32> -> vector<2x128xf32>
    %402 = vector.extract_strided_slice %386 {offsets = [0, 3, 0], sizes = [2, 1, 32], strides = [1, 1, 1]} : vector<2x8x32xf32> to vector<2x1x32xf32>
    %403 = vector.shape_cast %402 : vector<2x1x32xf32> to vector<2x32xf32>
    %c3_176 = arith.constant 3 : index
    %c0_177 = arith.constant 0 : index
    %c0_178 = arith.constant 0 : index
    %404 = vector.load %arg16[%c3_176, %c0_177, %c0_178] : memref<8x32x128xf32, #tpu.memory_space<vmem>>, vector<1x32x128xf32>
    %405 = vector.shape_cast %404 : vector<1x32x128xf32> to vector<32x128xf32>
    %cst_179 = arith.constant dense<0.000000e+00> : vector<2x128xf32>
    %406 = tpu.matmul %403, %405, %cst_179 {dimension_numbers = #tpu.dot_dimension_numbers<[1], [0], [0], [1], [0, 0, 1, 1], [], []>} : vector<2x32xf32>, vector<32x128xf32>, vector<2x128xf32> -> vector<2x128xf32>
    %407 = vector.extract_strided_slice %386 {offsets = [0, 4, 0], sizes = [2, 1, 32], strides = [1, 1, 1]} : vector<2x8x32xf32> to vector<2x1x32xf32>
    %408 = vector.shape_cast %407 : vector<2x1x32xf32> to vector<2x32xf32>
    %c4_180 = arith.constant 4 : index
    %c0_181 = arith.constant 0 : index
    %c0_182 = arith.constant 0 : index
    %409 = vector.load %arg16[%c4_180, %c0_181, %c0_182] : memref<8x32x128xf32, #tpu.memory_space<vmem>>, vector<1x32x128xf32>
    %410 = vector.shape_cast %409 : vector<1x32x128xf32> to vector<32x128xf32>
    %cst_183 = arith.constant dense<0.000000e+00> : vector<2x128xf32>
    %411 = tpu.matmul %408, %410, %cst_183 {dimension_numbers = #tpu.dot_dimension_numbers<[1], [0], [0], [1], [0, 0, 1, 1], [], []>} : vector<2x32xf32>, vector<32x128xf32>, vector<2x128xf32> -> vector<2x128xf32>
    %412 = vector.extract_strided_slice %386 {offsets = [0, 5, 0], sizes = [2, 1, 32], strides = [1, 1, 1]} : vector<2x8x32xf32> to vector<2x1x32xf32>
    %413 = vector.shape_cast %412 : vector<2x1x32xf32> to vector<2x32xf32>
    %c5_184 = arith.constant 5 : index
    %c0_185 = arith.constant 0 : index
    %c0_186 = arith.constant 0 : index
    %414 = vector.load %arg16[%c5_184, %c0_185, %c0_186] : memref<8x32x128xf32, #tpu.memory_space<vmem>>, vector<1x32x128xf32>
    %415 = vector.shape_cast %414 : vector<1x32x128xf32> to vector<32x128xf32>
    %cst_187 = arith.constant dense<0.000000e+00> : vector<2x128xf32>
    %416 = tpu.matmul %413, %415, %cst_187 {dimension_numbers = #tpu.dot_dimension_numbers<[1], [0], [0], [1], [0, 0, 1, 1], [], []>} : vector<2x32xf32>, vector<32x128xf32>, vector<2x128xf32> -> vector<2x128xf32>
    %417 = vector.extract_strided_slice %386 {offsets = [0, 6, 0], sizes = [2, 1, 32], strides = [1, 1, 1]} : vector<2x8x32xf32> to vector<2x1x32xf32>
    %418 = vector.shape_cast %417 : vector<2x1x32xf32> to vector<2x32xf32>
    %c6_188 = arith.constant 6 : index
    %c0_189 = arith.constant 0 : index
    %c0_190 = arith.constant 0 : index
    %419 = vector.load %arg16[%c6_188, %c0_189, %c0_190] : memref<8x32x128xf32, #tpu.memory_space<vmem>>, vector<1x32x128xf32>
    %420 = vector.shape_cast %419 : vector<1x32x128xf32> to vector<32x128xf32>
    %cst_191 = arith.constant dense<0.000000e+00> : vector<2x128xf32>
    %421 = tpu.matmul %418, %420, %cst_191 {dimension_numbers = #tpu.dot_dimension_numbers<[1], [0], [0], [1], [0, 0, 1, 1], [], []>} : vector<2x32xf32>, vector<32x128xf32>, vector<2x128xf32> -> vector<2x128xf32>
    %422 = vector.extract_strided_slice %386 {offsets = [0, 7, 0], sizes = [2, 1, 32], strides = [1, 1, 1]} : vector<2x8x32xf32> to vector<2x1x32xf32>
    %423 = vector.shape_cast %422 : vector<2x1x32xf32> to vector<2x32xf32>
    %c7_192 = arith.constant 7 : index
    %c0_193 = arith.constant 0 : index
    %c0_194 = arith.constant 0 : index
    %424 = vector.load %arg16[%c7_192, %c0_193, %c0_194] : memref<8x32x128xf32, #tpu.memory_space<vmem>>, vector<1x32x128xf32>
    %425 = vector.shape_cast %424 : vector<1x32x128xf32> to vector<32x128xf32>
    %cst_195 = arith.constant dense<0.000000e+00> : vector<2x128xf32>
    %426 = tpu.matmul %423, %425, %cst_195 {dimension_numbers = #tpu.dot_dimension_numbers<[1], [0], [0], [1], [0, 0, 1, 1], [], []>} : vector<2x32xf32>, vector<32x128xf32>, vector<2x128xf32> -> vector<2x128xf32>
    %427 = arith.addf %391, %396 : vector<2x128xf32>
    %428 = arith.addf %401, %406 : vector<2x128xf32>
    %429 = arith.addf %411, %416 : vector<2x128xf32>
    %430 = arith.addf %421, %426 : vector<2x128xf32>
    %431 = arith.addf %427, %428 : vector<2x128xf32>
    %432 = arith.addf %429, %430 : vector<2x128xf32>
    %433 = arith.addf %431, %432 : vector<2x128xf32>
    %c0_196 = arith.constant 0 : index
    %c0_197 = arith.constant 0 : index
    %434 = vector.load %arg17[%c0_196, %c0_197] : memref<1x128xf32, #tpu.memory_space<vmem>>, vector<1x128xf32>
    %435 = vector.broadcast %434 : vector<1x128xf32> to vector<2x128xf32>
    %436 = arith.addf %433, %435 : vector<2x128xf32>
    %437 = tpu.iota {dimensions = array<i32: 1>} : vector<2x128xi32>
    %c16_i32 = arith.constant 16 : i32
    %438 = vector.broadcast %c16_i32 : i32 to vector<2x128xi32>
    %439 = arith.cmpi slt, %437, %438 : vector<2x128xi32>
    %cst_198 = arith.constant -1.000000e+30 : f32
    %440 = vector.broadcast %cst_198 : f32 to vector<2x128xf32>
    %441 = arith.select %439, %436, %440 : vector<2x128xi1>, vector<2x128xf32>
    %cst_199 = arith.constant dense<0xFF800000> : vector<2xf32>
    %442 = vector.multi_reduction <maximumf>, %441, %cst_199 [1] : vector<2x128xf32> to vector<2xf32>
    %443 = vector.shape_cast %442 : vector<2xf32> to vector<2x1xf32>
    %444 = vector.broadcast %443 : vector<2x1xf32> to vector<2x128xf32>
    %445 = arith.subf %441, %444 : vector<2x128xf32>
    %446 = math.exp %445 : vector<2x128xf32>
    %cst_200 = arith.constant dense<0.000000e+00> : vector<2xf32>
    %447 = vector.multi_reduction <add>, %446, %cst_200 [1] : vector<2x128xf32> to vector<2xf32>
    %448 = vector.shape_cast %447 : vector<2xf32> to vector<2x1xf32>
    %449 = vector.broadcast %448 : vector<2x1xf32> to vector<2x128xf32>
    %450 = arith.divf %446, %449 : vector<2x128xf32>
    %c0_201 = arith.constant 0 : index
    %c0_202 = arith.constant 0 : index
    %451 = vector.load %arg18[%c0_201, %c0_202] : memref<2x128xf32, #tpu.memory_space<vmem>>, vector<2x128xf32>
    tpu.vector_store %arg18[%c0_201, %c0_202], %450 {strides = array<i32>} : memref<2x128xf32, #tpu.memory_space<vmem>>, vector<2x128xf32>,
    return
  }
  func.func @transform_0(%arg0: i32) -> (i32, i32) {
    %c0_i32 = arith.constant 0 : i32
    %c0_i32_0 = arith.constant 0 : i32
    %c0_i32_1 = arith.constant 0 : i32
    return %c0_i32, %c0_i32_0 : i32, i32
  }
  func.func @transform_1(%arg0: i32) -> (i32, i32) {
    %c0_i32 = arith.constant 0 : i32
    %c0_i32_0 = arith.constant 0 : i32
    %c0_i32_1 = arith.constant 0 : i32
    return %c0_i32, %c0_i32_0 : i32, i32
  }
  func.func @transform_2(%arg0: i32) -> (i32, i32) {
    %c0_i32 = arith.constant 0 : i32
    %c0_i32_0 = arith.constant 0 : i32
    %c0_i32_1 = arith.constant 0 : i32
    return %c0_i32, %c0_i32_0 : i32, i32
  }
  func.func @transform_3(%arg0: i32) -> (i32, i32, i32) {
    %c0_i32 = arith.constant 0 : i32
    %c0_i32_0 = arith.constant 0 : i32
    %c0_i32_1 = arith.constant 0 : i32
    %c0_i32_2 = arith.constant 0 : i32
    return %c0_i32, %c0_i32_0, %c0_i32_1 : i32, i32, i32
  }
  func.func @transform_4(%arg0: i32) -> (i32, i32, i32) {
    %c0_i32 = arith.constant 0 : i32
    %c0_i32_0 = arith.constant 0 : i32
    %c0_i32_1 = arith.constant 0 : i32
    %c0_i32_2 = arith.constant 0 : i32
    return %c0_i32, %c0_i32_0, %c0_i32_1 : i32, i32, i32
  }
  func.func @transform_5(%arg0: i32) -> (i32, i32, i32) {
    %c0_i32 = arith.constant 0 : i32
    %c0_i32_0 = arith.constant 0 : i32
    %c0_i32_1 = arith.constant 0 : i32
    %c0_i32_2 = arith.constant 0 : i32
    return %c0_i32, %c0_i32_0, %c0_i32_1 : i32, i32, i32
  }
  func.func @transform_6(%arg0: i32) -> (i32, i32, i32) {
    %c0_i32 = arith.constant 0 : i32
    %c0_i32_0 = arith.constant 0 : i32
    %c0_i32_1 = arith.constant 0 : i32
    %c0_i32_2 = arith.constant 0 : i32
    return %c0_i32, %c0_i32_0, %c0_i32_1 : i32, i32, i32
  }
  func.func @transform_7(%arg0: i32) -> (i32, i32, i32) {
    %c0_i32 = arith.constant 0 : i32
    %c0_i32_0 = arith.constant 0 : i32
    %c0_i32_1 = arith.constant 0 : i32
    %c0_i32_2 = arith.constant 0 : i32
    return %c0_i32, %c0_i32_0, %c0_i32_1 : i32, i32, i32
  }
  func.func @transform_8(%arg0: i32) -> (i32, i32, i32) {
    %c0_i32 = arith.constant 0 : i32
    %c0_i32_0 = arith.constant 0 : i32
    %c0_i32_1 = arith.constant 0 : i32
    %c0_i32_2 = arith.constant 0 : i32
    return %c0_i32, %c0_i32_0, %c0_i32_1 : i32, i32, i32
  }
  func.func @transform_9(%arg0: i32) -> (i32, i32, i32) {
    %c0_i32 = arith.constant 0 : i32
    %c0_i32_0 = arith.constant 0 : i32
    %c0_i32_1 = arith.constant 0 : i32
    %c0_i32_2 = arith.constant 0 : i32
    return %c0_i32, %c0_i32_0, %c0_i32_1 : i32, i32, i32
  }
  func.func @transform_10(%arg0: i32) -> (i32, i32, i32) {
    %c0_i32 = arith.constant 0 : i32
    %c0_i32_0 = arith.constant 0 : i32
    %c0_i32_1 = arith.constant 0 : i32
    %c0_i32_2 = arith.constant 0 : i32
    return %c0_i32, %c0_i32_0, %c0_i32_1 : i32, i32, i32
  }
  func.func @transform_11(%arg0: i32) -> (i32, i32, i32) {
    %c0_i32 = arith.constant 0 : i32
    %c0_i32_0 = arith.constant 0 : i32
    %c0_i32_1 = arith.constant 0 : i32
    %c0_i32_2 = arith.constant 0 : i32
    return %c0_i32, %c0_i32_0, %c0_i32_1 : i32, i32, i32
  }
  func.func @transform_12(%arg0: i32) -> (i32, i32, i32) {
    %c0_i32 = arith.constant 0 : i32
    %c0_i32_0 = arith.constant 0 : i32
    %c0_i32_1 = arith.constant 0 : i32
    %c0_i32_2 = arith.constant 0 : i32
    return %c0_i32, %c0_i32_0, %c0_i32_1 : i32, i32, i32
  }
  func.func @transform_13(%arg0: i32) -> (i32, i32, i32) {
    %c0_i32 = arith.constant 0 : i32
    %c0_i32_0 = arith.constant 0 : i32
    %c0_i32_1 = arith.constant 0 : i32
    %c0_i32_2 = arith.constant 0 : i32
    return %c0_i32, %c0_i32_0, %c0_i32_1 : i32, i32, i32
  }
  func.func @transform_14(%arg0: i32) -> (i32, i32, i32) {
    %c0_i32 = arith.constant 0 : i32
    %c0_i32_0 = arith.constant 0 : i32
    %c0_i32_1 = arith.constant 0 : i32
    %c0_i32_2 = arith.constant 0 : i32
    return %c0_i32, %c0_i32_0, %c0_i32_1 : i32, i32, i32
  }
  func.func @transform_15(%arg0: i32) -> (i32, i32, i32) {
    %c0_i32 = arith.constant 0 : i32
    %c0_i32_0 = arith.constant 0 : i32
    %c0_i32_1 = arith.constant 0 : i32
    %c0_i32_2 = arith.constant 0 : i32
    return %c0_i32, %c0_i32_0, %c0_i32_1 : i32, i32, i32
  }
  func.func @transform_16(%arg0: i32) -> (i32, i32) {
    %c0_i32 = arith.constant 0 : i32
    %c0_i32_0 = arith.constant 0 : i32
    %c0_i32_1 = arith.constant 0 : i32
    return %c0_i32, %c0_i32_0 : i32, i32
  }
  func.func @transform_17(%arg0: i32) -> (i32, i32) {
    %c0_i32 = arith.constant 0 : i32
    %c0_i32_0 = arith.constant 0 : i32
    %c0_i32_1 = arith.constant 0 : i32
    return %c0_i32, %c0_i32_0 : i32, i32
  }
}

</mosaic_0001>

<llo_original>
// kernel: model_forward.1
$region0: #{model_forward.1}
  #allocation0 [shape = 'u32[]', space=smem, size = 0x4, offset = 0x4, fixed_abs, tag = 'smem constant byte address 0x4 - core index']
  #allocation1 [shape = 'u32[144,128]{1,0:T(1,128)}', space=vmem, size = 0x12000, scoped, tag = 'internal scratch']
  %s0 = inlined_call_operand.vmem [shape: f32[16,8], index: 0, kind: input, shape index: {}]
  %s1 = inlined_call_operand.vmem [shape: f32[8,32], index: 1, kind: input, shape index: {}]
  %s2 = inlined_call_operand.vmem [shape: f32[1,32], index: 2, kind: input, shape index: {}]
  %s3 = inlined_call_operand.vmem [shape: f32[2,1,32], index: 3, kind: input, shape index: {}]
  %s4 = inlined_call_operand.vmem [shape: f32[2,1,32], index: 4, kind: input, shape index: {}]
  %s5 = inlined_call_operand.vmem [shape: f32[2,32,96], index: 5, kind: input, shape index: {}]
  %s6 = inlined_call_operand.vmem [shape: f32[2,1,96], index: 6, kind: input, shape index: {}]
  %s7 = inlined_call_operand.vmem [shape: f32[8,8,32], index: 7, kind: input, shape index: {}]
  %s8 = inlined_call_operand.vmem [shape: f32[2,1,32], index: 8, kind: input, shape index: {}]
  %s9 = inlined_call_operand.vmem [shape: f32[2,1,32], index: 9, kind: input, shape index: {}]
  %s10 = inlined_call_operand.vmem [shape: f32[2,1,32], index: 10, kind: input, shape index: {}]
  %s11 = inlined_call_operand.vmem [shape: f32[2,32,128], index: 11, kind: input, shape index: {}]
  %s12 = inlined_call_operand.vmem [shape: f32[2,1,128], index: 12, kind: input, shape index: {}]
  %s13 = inlined_call_operand.vmem [shape: f32[2,128,32], index: 13, kind: input, shape index: {}]
  %s14 = inlined_call_operand.vmem [shape: f32[2,1,32], index: 14, kind: input, shape index: {}]
  %s15 = inlined_call_operand.vmem [shape: f32[8,32,128], index: 15, kind: input, shape index: {}]
  %s16 = inlined_call_operand.vmem [shape: f32[1,128], index: 16, kind: input, shape index: {}]
  %s17 = inlined_call_operand.vmem [shape: f32[2,128], index: 17, kind: output, shape index: {}]
  %s18 = sld [smem:[#allocation0]]
  $region78: #{model_forward.1} parent=0
    _
  %s20 = ssub.s32 1, %s18
  %s21 = scalar_select 0, %s20, %s18
  // Predicated region
  $region2: #{model_forward.1} parent=0 // pred_check
    _
  $region3: #{model_forward.1} parent=0 // pred_check_branch
    %23 = sbr.rel (0) target = $region5
  $region4: #{model_forward.1} parent=0 // pred_region
    _
  $region5: #{model_forward.1} parent=0 // pred_fallthru
    _
  // Predicated region
  $region6: #{model_forward.1} parent=0 // pred_check
    _
  $region7: #{model_forward.1} parent=0 // pred_check_branch
    %25 = sbr.rel (0) target = $region9
  $region8: #{model_forward.1} parent=0 // pred_region
    _
  $region9: #{model_forward.1} parent=0 // pred_fallthru
    _
  // Predicated region
  $region10: #{model_forward.1} parent=0 // pred_check
    _
  $region11: #{model_forward.1} parent=0 // pred_check_branch
    %27 = sbr.rel (0) target = $region13
  $region12: #{model_forward.1} parent=0 // pred_region
    _
  $region13: #{model_forward.1} parent=0 // pred_fallthru
    _
  // Predicated region
  $region14: #{model_forward.1} parent=0 // pred_check
    _
  $region15: #{model_forward.1} parent=0 // pred_check_branch
    %29 = sbr.rel (0) target = $region17
  $region16: #{model_forward.1} parent=0 // pred_region
    _
  $region17: #{model_forward.1} parent=0 // pred_fallthru
    _
  // Predicated region
  $region18: #{model_forward.1} parent=0 // pred_check
    _
  $region19: #{model_forward.1} parent=0 // pred_check_branch
    %31 = sbr.rel (0) target = $region21
  $region20: #{model_forward.1} parent=0 // pred_region
    _
  $region21: #{model_forward.1} parent=0 // pred_fallthru
    _
  // Predicated region
  $region22: #{model_forward.1} parent=0 // pred_check
    _
  $region23: #{model_forward.1} parent=0 // pred_check_branch
    %33 = sbr.rel (0) target = $region25
  $region24: #{model_forward.1} parent=0 // pred_region
    _
  $region25: #{model_forward.1} parent=0 // pred_fallthru
    _
  // Predicated region
  $region26: #{model_forward.1} parent=0 // pred_check
    _
  $region27: #{model_forward.1} parent=0 // pred_check_branch
    %35 = sbr.rel (0) target = $region29
  $region28: #{model_forward.1} parent=0 // pred_region
    _
  $region29: #{model_forward.1} parent=0 // pred_fallthru
    _
  // Predicated region
  $region30: #{model_forward.1} parent=0 // pred_check
    _
  $region31: #{model_forward.1} parent=0 // pred_check_branch
    %37 = sbr.rel (0) target = $region33
  $region32: #{model_forward.1} parent=0 // pred_region
    _
  $region33: #{model_forward.1} parent=0 // pred_fallthru
    _
  // Predicated region
  $region34: #{model_forward.1} parent=0 // pred_check
    _
  $region35: #{model_forward.1} parent=0 // pred_check_branch
    %39 = sbr.rel (0) target = $region37
  $region36: #{model_forward.1} parent=0 // pred_region
    _
  $region37: #{model_forward.1} parent=0 // pred_fallthru
    _
  // Predicated region
  $region38: #{model_forward.1} parent=0 // pred_check
    _
  $region39: #{model_forward.1} parent=0 // pred_check_branch
    %41 = sbr.rel (0) target = $region41
  $region40: #{model_forward.1} parent=0 // pred_region
    _
  $region41: #{model_forward.1} parent=0 // pred_fallthru
    _
  // Predicated region
  $region42: #{model_forward.1} parent=0 // pred_check
    _
  $region43: #{model_forward.1} parent=0 // pred_check_branch
    %43 = sbr.rel (0) target = $region45
  $region44: #{model_forward.1} parent=0 // pred_region
    _
  $region45: #{model_forward.1} parent=0 // pred_fallthru
    _
  // Predicated region
  $region46: #{model_forward.1} parent=0 // pred_check
    _
  $region47: #{model_forward.1} parent=0 // pred_check_branch
    %45 = sbr.rel (0) target = $region49
  $region48: #{model_forward.1} parent=0 // pred_region
    _
  $region49: #{model_forward.1} parent=0 // pred_fallthru
    _
  // Predicated region
  $region50: #{model_forward.1} parent=0 // pred_check
    _
  $region51: #{model_forward.1} parent=0 // pred_check_branch
    %47 = sbr.rel (0) target = $region53
  $region52: #{model_forward.1} parent=0 // pred_region
    _
  $region53: #{model_forward.1} parent=0 // pred_fallthru
    _
  // Predicated region
  $region54: #{model_forward.1} parent=0 // pred_check
    _
  $region55: #{model_forward.1} parent=0 // pred_check_branch
    %49 = sbr.rel (0) target = $region57
  $region56: #{model_forward.1} parent=0 // pred_region
    _
  $region57: #{model_forward.1} parent=0 // pred_fallthru
    _
  // Predicated region
  $region58: #{model_forward.1} parent=0 // pred_check
    _
  $region59: #{model_forward.1} parent=0 // pred_check_branch
    %51 = sbr.rel (0) target = $region61
  $region60: #{model_forward.1} parent=0 // pred_region
    _
  $region61: #{model_forward.1} parent=0 // pred_fallthru
    _
  // Predicated region
  $region62: #{model_forward.1} parent=0 // pred_check
    _
  $region63: #{model_forward.1} parent=0 // pred_check_branch
    %53 = sbr.rel (0) target = $region65
  $region64: #{model_forward.1} parent=0 // pred_region
    _
  $region65: #{model_forward.1} parent=0 // pred_fallthru
    _
  // Predicated region
  $region66: #{model_forward.1} parent=0 // pred_check
    _
  $region67: #{model_forward.1} parent=0 // pred_check_branch
    %55 = sbr.rel (0) target = $region69
  $region68: #{model_forward.1} parent=0 // pred_region
    _
  $region69: #{model_forward.1} parent=0 // pred_fallthru
    _
  %v56 = vld [vmem:[%s0] sm:$0xff]
  %v57 = vld [vmem:[%s0 + $0x8] sm:$0xff]
  %v58 = vld [vmem:[%s1] sm:$0xff]
  %v59 = vld [vmem:[%s2] sm:$0x1]
  %v61 = vlaneseq
  %v62 = vshrl.u32 %v61, 7
  %v63 = vsub.s32 0, %v62
  %v64 = vrot.slane %v59, %v63
  %vm66 = vcmask 64512
  %v68 = vsel %vm66, %v56, 0
  %v71 = vsel %vm66, %v57, 0
  %73 = vmatprep.subr.mxu0 0.0
  %74 = vmatpush1.msra.mxu0 0.0
  %75 = vmatprep.subr.mxu0 0.0
  %76 = vmatpush1.msra.mxu0 0.0
  %77 = vmatprep.subr.mxu0 0.0
  %78 = vmatpush1.msra.mxu0 0.0
  %79 = vmatprep.subr.mxu0 0.0
  %80 = vmatpush1.msra.mxu0 0.0
  %81 = vmatprep.subr.mxu0 0.0
  %82 = vmatpush1.msra.mxu0 0.0
  %83 = vmatprep.subr.mxu0 0.0
  %84 = vmatpush1.msra.mxu0 0.0
  %85 = vmatprep.subr.mxu0 0.0
  %86 = vmatpush1.msra.mxu0 0.0
  %87 = vmatprep.subr.mxu0 0.0
  %88 = vmatpush1.msra.mxu0 0.0
  %89 = vmatprep.subr.mxu0 0.0
  %90 = vmatpush1.msra.mxu0 0.0
  %91 = vmatprep.subr.mxu0 0.0
  %92 = vmatpush1.msra.mxu0 0.0
  %93 = vmatprep.subr.mxu0 0.0
  %94 = vmatpush1.msra.mxu0 0.0
  %95 = vmatprep.subr.mxu0 0.0
  %96 = vmatpush1.msra.mxu0 0.0
  %97 = vmatprep.subr.mxu0 0.0
  %98 = vmatpush1.msra.mxu0 0.0
  %99 = vmatprep.subr.mxu0 0.0
  %100 = vmatpush1.msra.mxu0 0.0
  %101 = vmatprep.subr.mxu0 0.0
  %102 = vmatpush1.msra.mxu0 0.0
  %103 = vmatprep.subr.mxu0 0.0
  %104 = vmatpush1.msra.mxu0 %v58
  %105 = vmatprep.subr.mxu0 0.0
  %106 = vmatpush2.msra.mxu0 0.0
  %107 = vmatprep.subr.mxu0 0.0
  %108 = vmatpush2.msra.mxu0 0.0
  %109 = vmatprep.subr.mxu0 0.0
  %110 = vmatpush2.msra.mxu0 0.0
  %111 = vmatprep.subr.mxu0 0.0
  %112 = vmatpush2.msra.mxu0 0.0
  %113 = vmatprep.subr.mxu0 0.0
  %114 = vmatpush2.msra.mxu0 0.0
  %115 = vmatprep.subr.mxu0 0.0
  %116 = vmatpush2.msra.mxu0 0.0
  %117 = vmatprep.subr.mxu0 0.0
  %118 = vmatpush2.msra.mxu0 0.0
  %119 = vmatprep.subr.mxu0 0.0
  %120 = vmatpush2.msra.mxu0 0.0
  %121 = vmatprep.subr.mxu0 0.0
  %122 = vmatpush2.msra.mxu0 0.0
  %123 = vmatprep.subr.mxu0 0.0
  %124 = vmatpush2.msra.mxu0 0.0
  %125 = vmatprep.subr.mxu0 0.0
  %126 = vmatpush2.msra.mxu0 0.0
  %127 = vmatprep.subr.mxu0 0.0
  %128 = vmatpush2.msra.mxu0 0.0
  %129 = vmatprep.subr.mxu0 0.0
  %130 = vmatpush2.msra.mxu0 0.0
  %131 = vmatprep.subr.mxu0 0.0
  %132 = vmatpush2.msra.mxu0 0.0
  %133 = vmatprep.subr.mxu0 0.0
  %134 = vmatpush2.msra.mxu0 0.0
  %135 = vmatprep.subr.mxu0 0.0
  %136 = vmatpush2.msra.mxu0 0.0
  %137 = vmatprep.mubr.f32.mxu0 0.0
  %138 = vmatmul.mubr.f32.gmra.mxu0 %v68
  %v139 = vpop.f32.mrf.mxu0
  %v140 = vadd.f32 %v64, %v139
  %v141 = vpop.f32.mrf.mxu0
  %142 = vmatprep.mubr.f32.mxu0 0.0
  %143 = vmatmul.mubr.f32.gmra.mxu0 %v71
  %v144 = vpop.f32.mrf.mxu0
  %v145 = vadd.f32 %v64, %v144
  %v146 = vpop.f32.mrf.mxu0
  %147 = vdwg.mxu0
  %v148 = vlaneseq
  %v149 = vshrl.u32 %v148, 7
  %v150 = vlaneseq
  %v151 = vand.u32 %v150, 127
  %vm152 = vcmp.le.s32.totalorder %v151, %v149
  %v153 = vsel %vm152, 0.0, -1e+30
  %v154 = vld [vmem:[%s3] sm:$0x1]
  %v155 = vld [vmem:[%s4] sm:$0x1]
  %vm156 = vcmask 261120
  %v157 = vsel %vm156, %v140, 0.0
  %158 = vadd.xlane.f32.xlu0 %v157
  %v159 = vpop.xlane.xlu0 %158
  %v160 = vsel %vm156, %v145, 0.0
  %161 = vadd.xlane.f32.xlu0 %v160
  %v162 = vpop.xlane.xlu0 %161
  %v163 = vrcp.pop 32.0
  %v164 = vmul.f32 %v159, %v163
  %v165 = vmul.f32 %v162, %v163
  %v166 = vmul.f32 %v140, %v140
  %v167 = vmul.f32 %v145, %v145
  %v168 = vsel %vm156, %v166, 0.0
  %169 = vadd.xlane.f32.xlu0 %v168
  %v170 = vpop.xlane.xlu0 %169
  %v171 = vsel %vm156, %v167, 0.0
  %172 = vadd.xlane.f32.xlu0 %v171
  %v173 = vpop.xlane.xlu0 %172
  %v174 = vmul.f32 %v170, %v163
  %v175 = vmul.f32 %v173, %v163
  %v176 = vmul.f32 %v164, %v164
  %v177 = vmul.f32 %v165, %v165
  %v178 = vsub.f32 %v174, %v176
  %v179 = vsub.f32 %v175, %v177
  %v180 = vsub.f32 %v140, %v164
  %v181 = vsub.f32 %v145, %v165
  %v182 = vadd.f32 %v178, 1e-05
  %v183 = vadd.f32 %v179, 1e-05
  %v184 = vrsqrt.pop %v182
  %v185 = vrsqrt.pop %v183
  %v186 = vmul.f32 %v180, %v184
  %v187 = vmul.f32 %v181, %v185
  %v189 = vlaneseq
  %v190 = vshrl.u32 %v189, 7
  %v191 = vsub.s32 0, %v190
  %v192 = vrot.slane %v154, %v191
  %v194 = vmul.f32 %v186, %v192
  %v195 = vmul.f32 %v187, %v192
  %v197 = vlaneseq
  %v198 = vshrl.u32 %v197, 7
  %v199 = vsub.s32 0, %v198
  %v200 = vrot.slane %v155, %v199
  %v202 = vadd.f32 %v194, %v200
  %v203 = vadd.f32 %v195, %v200
  %v204 = vld [vmem:[%s5] sm:$0xff]
  %v205 = vld [vmem:[%s5 + $0x8] sm:$0xff]
  %v206 = vld [vmem:[%s5 + $0x10] sm:$0xff]
  %v207 = vld [vmem:[%s5 + $0x18] sm:$0xff]
  %v208 = vld [vmem:[%s6] sm:$0x1]
  %v210 = vlaneseq
  %v211 = vshrl.u32 %v210, 7
  %v212 = vsub.s32 0, %v211
  %v213 = vrot.slane %v208, %v212
  %v216 = vsel %vm156, %v202, 0
  %v219 = vsel %vm156, %v203, 0
  %221 = vmatprep.subr.mxu0 0.0
  %222 = vmatpush1.msra.mxu0 0.0
  %223 = vmatprep.subr.mxu0 0.0
  %224 = vmatpush1.msra.mxu0 0.0
  %225 = vmatprep.subr.mxu0 0.0
  %226 = vmatpush1.msra.mxu0 0.0
  %227 = vmatprep.subr.mxu0 0.0
  %228 = vmatpush1.msra.mxu0 0.0
  %229 = vmatprep.subr.mxu0 0.0
  %230 = vmatpush1.msra.mxu0 0.0
  %231 = vmatprep.subr.mxu0 0.0
  %232 = vmatpush1.msra.mxu0 0.0
  %233 = vmatprep.subr.mxu0 0.0
  %234 = vmatpush1.msra.mxu0 0.0
  %235 = vmatprep.subr.mxu0 0.0
  %236 = vmatpush1.msra.mxu0 0.0
  %237 = vmatprep.subr.mxu0 0.0
  %238 = vmatpush1.msra.mxu0 0.0
  %239 = vmatprep.subr.mxu0 0.0
  %240 = vmatpush1.msra.mxu0 0.0
  %241 = vmatprep.subr.mxu0 0.0
  %242 = vmatpush1.msra.mxu0 0.0
  %243 = vmatprep.subr.mxu0 0.0
  %244 = vmatpush1.msra.mxu0 0.0
  %245 = vmatprep.subr.mxu0 0.0
  %246 = vmatpush1.msra.mxu0 %v207
  %247 = vmatprep.subr.mxu0 0.0
  %248 = vmatpush1.msra.mxu0 %v206
  %249 = vmatprep.subr.mxu0 0.0
  %250 = vmatpush1.msra.mxu0 %v205
  %251 = vmatprep.subr.mxu0 0.0
  %252 = vmatpush1.msra.mxu0 %v204
  %253 = vmatprep.subr.mxu0 0.0
  %254 = vmatpush2.msra.mxu0 0.0
  %255 = vmatprep.subr.mxu0 0.0
  %256 = vmatpush2.msra.mxu0 0.0
  %257 = vmatprep.subr.mxu0 0.0
  %258 = vmatpush2.msra.mxu0 0.0
  %259 = vmatprep.subr.mxu0 0.0
  %260 = vmatpush2.msra.mxu0 0.0
  %261 = vmatprep.subr.mxu0 0.0
  %262 = vmatpush2.msra.mxu0 0.0
  %263 = vmatprep.subr.mxu0 0.0
  %264 = vmatpush2.msra.mxu0 0.0
  %265 = vmatprep.subr.mxu0 0.0
  %266 = vmatpush2.msra.mxu0 0.0
  %267 = vmatprep.subr.mxu0 0.0
  %268 = vmatpush2.msra.mxu0 0.0
  %269 = vmatprep.subr.mxu0 0.0
  %270 = vmatpush2.msra.mxu0 0.0
  %271 = vmatprep.subr.mxu0 0.0
  %272 = vmatpush2.msra.mxu0 0.0
  %273 = vmatprep.subr.mxu0 0.0
  %274 = vmatpush2.msra.mxu0 0.0
  %275 = vmatprep.subr.mxu0 0.0
  %276 = vmatpush2.msra.mxu0 0.0
  %277 = vmatprep.subr.mxu0 0.0
  %278 = vmatpush2.msra.mxu0 0.0
  %279 = vmatprep.subr.mxu0 0.0
  %280 = vmatpush2.msra.mxu0 0.0
  %281 = vmatprep.subr.mxu0 0.0
  %282 = vmatpush2.msra.mxu0 0.0
  %283 = vmatprep.subr.mxu0 0.0
  %284 = vmatpush2.msra.mxu0 0.0
  %285 = vmatprep.mubr.f32.mxu0 0.0
  %286 = vmatmul.mubr.f32.gmra.mxu0 %v216
  %v287 = vpop.f32.mrf.mxu0
  %v288 = vadd.f32 %v213, %v287
  %v289 = vpop.f32.mrf.mxu0
  %290 = vmatprep.mubr.f32.mxu0 0.0
  %291 = vmatmul.mubr.f32.gmra.mxu0 %v219
  %v292 = vpop.f32.mrf.mxu0
  %v293 = vadd.f32 %v213, %v292
  %v294 = vpop.f32.mrf.mxu0
  %295 = vdwg.mxu0
  %297 = vrot.lane.b32.xlu0 %v288, 96
  %v298 = vpop.permute.xlu0 %297
  %v299 = vsel %vm66, %v288, 0
  %v301 = vsel %vm66, %v298, 0
  %303 = vmatprep.subr.mxu0 0.0
  %304 = vmatpush1.xpose.msra.mxu0 0.0
  %305 = vmatprep.subr.mxu0 0.0
  %306 = vmatpush1.xpose.msra.mxu0 0.0
  %307 = vmatprep.subr.mxu0 0.0
  %308 = vmatpush1.xpose.msra.mxu0 0.0
  %309 = vmatprep.subr.mxu0 0.0
  %310 = vmatpush1.xpose.msra.mxu0 0.0
  %311 = vmatprep.subr.mxu0 0.0
  %312 = vmatpush1.xpose.msra.mxu0 0.0
  %313 = vmatprep.subr.mxu0 0.0
  %314 = vmatpush1.xpose.msra.mxu0 0.0
  %315 = vmatprep.subr.mxu0 0.0
  %316 = vmatpush1.xpose.msra.mxu0 0.0
  %317 = vmatprep.subr.mxu0 0.0
  %318 = vmatpush1.xpose.msra.mxu0 0.0
  %319 = vmatprep.subr.mxu0 0.0
  %320 = vmatpush1.xpose.msra.mxu0 0.0
  %321 = vmatprep.subr.mxu0 0.0
  %322 = vmatpush1.xpose.msra.mxu0 0.0
  %323 = vmatprep.subr.mxu0 0.0
  %324 = vmatpush1.xpose.msra.mxu0 0.0
  %325 = vmatprep.subr.mxu0 0.0
  %326 = vmatpush1.xpose.msra.mxu0 0.0
  %327 = vmatprep.subr.mxu0 0.0
  %328 = vmatpush1.xpose.msra.mxu0 0.0
  %329 = vmatprep.subr.mxu0 0.0
  %330 = vmatpush1.xpose.msra.mxu0 0.0
  %331 = vmatprep.subr.mxu0 0.0
  %332 = vmatpush1.xpose.msra.mxu0 0.0
  %333 = vmatprep.subr.mxu0 0.0
  %334 = vmatpush1.xpose.msra.mxu0 %v301
  %335 = vmatprep.subr.mxu0 0.0
  %336 = vmatpush2.xpose.msra.mxu0 0.0
  %337 = vmatprep.subr.mxu0 0.0
  %338 = vmatpush2.xpose.msra.mxu0 0.0
  %339 = vmatprep.subr.mxu0 0.0
  %340 = vmatpush2.xpose.msra.mxu0 0.0
  %341 = vmatprep.subr.mxu0 0.0
  %342 = vmatpush2.xpose.msra.mxu0 0.0
  %343 = vmatprep.subr.mxu0 0.0
  %344 = vmatpush2.xpose.msra.mxu0 0.0
  %345 = vmatprep.subr.mxu0 0.0
  %346 = vmatpush2.xpose.msra.mxu0 0.0
  %347 = vmatprep.subr.mxu0 0.0
  %348 = vmatpush2.xpose.msra.mxu0 0.0
  %349 = vmatprep.subr.mxu0 0.0
  %350 = vmatpush2.xpose.msra.mxu0 0.0
  %351 = vmatprep.subr.mxu0 0.0
  %352 = vmatpush2.xpose.msra.mxu0 0.0
  %353 = vmatprep.subr.mxu0 0.0
  %354 = vmatpush2.xpose.msra.mxu0 0.0
  %355 = vmatprep.subr.mxu0 0.0
  %356 = vmatpush2.xpose.msra.mxu0 0.0
  %357 = vmatprep.subr.mxu0 0.0
  %358 = vmatpush2.xpose.msra.mxu0 0.0
  %359 = vmatprep.subr.mxu0 0.0
  %360 = vmatpush2.xpose.msra.mxu0 0.0
  %361 = vmatprep.subr.mxu0 0.0
  %362 = vmatpush2.xpose.msra.mxu0 0.0
  %363 = vmatprep.subr.mxu0 0.0
  %364 = vmatpush2.xpose.msra.mxu0 0.0
  %365 = vmatprep.subr.mxu0 0.0
  %366 = vmatpush2.xpose.msra.mxu0 0.0
  %367 = vmatprep.mubr.f32.mxu0 0.0
  %368 = vmatmul.mubr.f32.gmra.mxu0 %v299
  %v369 = vpop.f32.mrf.mxu0
  %v370 = vadd.f32 %v153, %v369
  %v371 = vpop.f32.mrf.mxu0
  %372 = vdwg.mxu0
  %374 = vrot.lane.b32.xlu0 %v293, 96
  %v375 = vpop.permute.xlu0 %374
  %v376 = vsel %vm66, %v293, 0
  %v378 = vsel %vm66, %v375, 0
  %380 = vmatprep.subr.mxu0 0.0
  %381 = vmatpush1.xpose.msra.mxu0 0.0
  %382 = vmatprep.subr.mxu0 0.0
  %383 = vmatpush1.xpose.msra.mxu0 0.0
  %384 = vmatprep.subr.mxu0 0.0
  %385 = vmatpush1.xpose.msra.mxu0 0.0
  %386 = vmatprep.subr.mxu0 0.0
  %387 = vmatpush1.xpose.msra.mxu0 0.0
  %388 = vmatprep.subr.mxu0 0.0
  %389 = vmatpush1.xpose.msra.mxu0 0.0
  %390 = vmatprep.subr.mxu0 0.0
  %391 = vmatpush1.xpose.msra.mxu0 0.0
  %392 = vmatprep.subr.mxu0 0.0
  %393 = vmatpush1.xpose.msra.mxu0 0.0
  %394 = vmatprep.subr.mxu0 0.0
  %395 = vmatpush1.xpose.msra.mxu0 0.0
  %396 = vmatprep.subr.mxu0 0.0
  %397 = vmatpush1.xpose.msra.mxu0 0.0
  %398 = vmatprep.subr.mxu0 0.0
  %399 = vmatpush1.xpose.msra.mxu0 0.0
  %400 = vmatprep.subr.mxu0 0.0
  %401 = vmatpush1.xpose.msra.mxu0 0.0
  %402 = vmatprep.subr.mxu0 0.0
  %403 = vmatpush1.xpose.msra.mxu0 0.0
  %404 = vmatprep.subr.mxu0 0.0
  %405 = vmatpush1.xpose.msra.mxu0 0.0
  %406 = vmatprep.subr.mxu0 0.0
  %407 = vmatpush1.xpose.msra.mxu0 0.0
  %408 = vmatprep.subr.mxu0 0.0
  %409 = vmatpush1.xpose.msra.mxu0 0.0
  %410 = vmatprep.subr.mxu0 0.0
  %411 = vmatpush1.xpose.msra.mxu0 %v378
  %412 = vmatprep.subr.mxu0 0.0
  %413 = vmatpush2.xpose.msra.mxu0 0.0
  %414 = vmatprep.subr.mxu0 0.0
  %415 = vmatpush2.xpose.msra.mxu0 0.0
  %416 = vmatprep.subr.mxu0 0.0
  %417 = vmatpush2.xpose.msra.mxu0 0.0
  %418 = vmatprep.subr.mxu0 0.0
  %419 = vmatpush2.xpose.msra.mxu0 0.0
  %420 = vmatprep.subr.mxu0 0.0
  %421 = vmatpush2.xpose.msra.mxu0 0.0
  %422 = vmatprep.subr.mxu0 0.0
  %423 = vmatpush2.xpose.msra.mxu0 0.0
  %424 = vmatprep.subr.mxu0 0.0
  %425 = vmatpush2.xpose.msra.mxu0 0.0
  %426 = vmatprep.subr.mxu0 0.0
  %427 = vmatpush2.xpose.msra.mxu0 0.0
  %428 = vmatprep.subr.mxu0 0.0
  %429 = vmatpush2.xpose.msra.mxu0 0.0
  %430 = vmatprep.subr.mxu0 0.0
  %431 = vmatpush2.xpose.msra.mxu0 0.0
  %432 = vmatprep.subr.mxu0 0.0
  %433 = vmatpush2.xpose.msra.mxu0 0.0
  %434 = vmatprep.subr.mxu0 0.0
  %435 = vmatpush2.xpose.msra.mxu0 0.0
  %436 = vmatprep.subr.mxu0 0.0
  %437 = vmatpush2.xpose.msra.mxu0 0.0
  %438 = vmatprep.subr.mxu0 0.0
  %439 = vmatpush2.xpose.msra.mxu0 0.0
  %440 = vmatprep.subr.mxu0 0.0
  %441 = vmatpush2.xpose.msra.mxu0 0.0
  %442 = vmatprep.subr.mxu0 0.0
  %443 = vmatpush2.xpose.msra.mxu0 0.0
  %444 = vmatprep.mubr.f32.mxu0 0.0
  %445 = vmatmul.mubr.f32.gmra.mxu0 %v376
  %v446 = vpop.f32.mrf.mxu0
  %v447 = vadd.f32 %v153, %v446
  %v448 = vpop.f32.mrf.mxu0
  %449 = vdwg.mxu0
  %v450 = vsel %vm66, %v370, -inf
  %451 = vmax.xlane.f32.xlu0 %v450
  %v452 = vpop.xlane.xlu0 %451
  %v453 = vsel %vm66, %v447, -inf
  %454 = vmax.xlane.f32.xlu0 %v453
  %v455 = vpop.xlane.xlu0 %454
  %v456 = vsub.f32 %v370, %v452
  %v457 = vsub.f32 %v447, %v455
  %v458 = vmul.f32 %v456, 1.442695
  %v459 = vpow.pop %v458
  %v460 = vmul.f32 %v457, 1.442695
  %v461 = vpow.pop %v460
  %v462 = vsel %vm66, %v459, 0.0
  %463 = vadd.xlane.f32.xlu0 %v462
  %v464 = vpop.xlane.xlu0 %463
  %v465 = vsel %vm66, %v461, 0.0
  %466 = vadd.xlane.f32.xlu0 %v465
  %v467 = vpop.xlane.xlu0 %466
  %v468 = vrcp.pop %v464
  %v469 = vrcp.pop %v467
  %v470 = vmul.f32 %v459, %v468
  %v471 = vmul.f32 %v461, %v469
  %472 = vrot.lane.b32.xlu0 %v288, 64
  %v473 = vpop.permute.xlu0 %472
  %v476 = vsel %vm66, %v470, 0
  %478 = vmatprep.subr.mxu0 0.0
  %479 = vmatpush1.msra.mxu0 0.0
  %480 = vmatprep.subr.mxu0 0.0
  %481 = vmatpush1.msra.mxu0 0.0
  %482 = vmatprep.subr.mxu0 0.0
  %483 = vmatpush1.msra.mxu0 0.0
  %484 = vmatprep.subr.mxu0 0.0
  %485 = vmatpush1.msra.mxu0 0.0
  %486 = vmatprep.subr.mxu0 0.0
  %487 = vmatpush1.msra.mxu0 0.0
  %488 = vmatprep.subr.mxu0 0.0
  %489 = vmatpush1.msra.mxu0 0.0
  %490 = vmatprep.subr.mxu0 0.0
  %491 = vmatpush1.msra.mxu0 0.0
  %492 = vmatprep.subr.mxu0 0.0
  %493 = vmatpush1.msra.mxu0 0.0
  %494 = vmatprep.subr.mxu0 0.0
  %495 = vmatpush1.msra.mxu0 0.0
  %496 = vmatprep.subr.mxu0 0.0
  %497 = vmatpush1.msra.mxu0 0.0
  %498 = vmatprep.subr.mxu0 0.0
  %499 = vmatpush1.msra.mxu0 0.0
  %500 = vmatprep.subr.mxu0 0.0
  %501 = vmatpush1.msra.mxu0 0.0
  %502 = vmatprep.subr.mxu0 0.0
  %503 = vmatpush1.msra.mxu0 0.0
  %504 = vmatprep.subr.mxu0 0.0
  %505 = vmatpush1.msra.mxu0 0.0
  %506 = vmatprep.subr.mxu0 0.0
  %507 = vmatpush1.msra.mxu0 0.0
  %508 = vmatprep.subr.mxu0 0.0
  %509 = vmatpush1.msra.mxu0 %v473
  %510 = vmatprep.subr.mxu0 0.0
  %511 = vmatpush2.msra.mxu0 0.0
  %512 = vmatprep.subr.mxu0 0.0
  %513 = vmatpush2.msra.mxu0 0.0
  %514 = vmatprep.subr.mxu0 0.0
  %515 = vmatpush2.msra.mxu0 0.0
  %516 = vmatprep.subr.mxu0 0.0
  %517 = vmatpush2.msra.mxu0 0.0
  %518 = vmatprep.subr.mxu0 0.0
  %519 = vmatpush2.msra.mxu0 0.0
  %520 = vmatprep.subr.mxu0 0.0
  %521 = vmatpush2.msra.mxu0 0.0
  %522 = vmatprep.subr.mxu0 0.0
  %523 = vmatpush2.msra.mxu0 0.0
  %524 = vmatprep.subr.mxu0 0.0
  %525 = vmatpush2.msra.mxu0 0.0
  %526 = vmatprep.subr.mxu0 0.0
  %527 = vmatpush2.msra.mxu0 0.0
  %528 = vmatprep.subr.mxu0 0.0
  %529 = vmatpush2.msra.mxu0 0.0
  %530 = vmatprep.subr.mxu0 0.0
  %531 = vmatpush2.msra.mxu0 0.0
  %532 = vmatprep.subr.mxu0 0.0
  %533 = vmatpush2.msra.mxu0 0.0
  %534 = vmatprep.subr.mxu0 0.0
  %535 = vmatpush2.msra.mxu0 0.0
  %536 = vmatprep.subr.mxu0 0.0
  %537 = vmatpush2.msra.mxu0 0.0
  %538 = vmatprep.subr.mxu0 0.0
  %539 = vmatpush2.msra.mxu0 0.0
  %540 = vmatprep.subr.mxu0 0.0
  %541 = vmatpush2.msra.mxu0 0.0
  %542 = vmatprep.mubr.f32.mxu0 0.0
  %543 = vmatmul.mubr.f32.gmra.mxu0 %v476
  %v544 = vpop.f32.mrf.mxu0
  %v545 = vadd.f32 0.0, %v544
  %v546 = vpop.f32.mrf.mxu0
  %547 = vdwg.mxu0
  %548 = vrot.lane.b32.xlu0 %v293, 64
  %v549 = vpop.permute.xlu0 %548
  %v552 = vsel %vm66, %v471, 0
  %554 = vmatprep.subr.mxu0 0.0
  %555 = vmatpush1.msra.mxu0 0.0
  %556 = vmatprep.subr.mxu0 0.0
  %557 = vmatpush1.msra.mxu0 0.0
  %558 = vmatprep.subr.mxu0 0.0
  %559 = vmatpush1.msra.mxu0 0.0
  %560 = vmatprep.subr.mxu0 0.0
  %561 = vmatpush1.msra.mxu0 0.0
  %562 = vmatprep.subr.mxu0 0.0
  %563 = vmatpush1.msra.mxu0 0.0
  %564 = vmatprep.subr.mxu0 0.0
  %565 = vmatpush1.msra.mxu0 0.0
  %566 = vmatprep.subr.mxu0 0.0
  %567 = vmatpush1.msra.mxu0 0.0
  %568 = vmatprep.subr.mxu0 0.0
  %569 = vmatpush1.msra.mxu0 0.0
  %570 = vmatprep.subr.mxu0 0.0
  %571 = vmatpush1.msra.mxu0 0.0
  %572 = vmatprep.subr.mxu0 0.0
  %573 = vmatpush1.msra.mxu0 0.0
  %574 = vmatprep.subr.mxu0 0.0
  %575 = vmatpush1.msra.mxu0 0.0
  %576 = vmatprep.subr.mxu0 0.0
  %577 = vmatpush1.msra.mxu0 0.0
  %578 = vmatprep.subr.mxu0 0.0
  %579 = vmatpush1.msra.mxu0 0.0
  %580 = vmatprep.subr.mxu0 0.0
  %581 = vmatpush1.msra.mxu0 0.0
  %582 = vmatprep.subr.mxu0 0.0
  %583 = vmatpush1.msra.mxu0 0.0
  %584 = vmatprep.subr.mxu0 0.0
  %585 = vmatpush1.msra.mxu0 %v549
  %586 = vmatprep.subr.mxu0 0.0
  %587 = vmatpush2.msra.mxu0 0.0
  %588 = vmatprep.subr.mxu0 0.0
  %589 = vmatpush2.msra.mxu0 0.0
  %590 = vmatprep.subr.mxu0 0.0
  %591 = vmatpush2.msra.mxu0 0.0
  %592 = vmatprep.subr.mxu0 0.0
  %593 = vmatpush2.msra.mxu0 0.0
  %594 = vmatprep.subr.mxu0 0.0
  %595 = vmatpush2.msra.mxu0 0.0
  %596 = vmatprep.subr.mxu0 0.0
  %597 = vmatpush2.msra.mxu0 0.0
  %598 = vmatprep.subr.mxu0 0.0
  %599 = vmatpush2.msra.mxu0 0.0
  %600 = vmatprep.subr.mxu0 0.0
  %601 = vmatpush2.msra.mxu0 0.0
  %602 = vmatprep.subr.mxu0 0.0
  %603 = vmatpush2.msra.mxu0 0.0
  %604 = vmatprep.subr.mxu0 0.0
  %605 = vmatpush2.msra.mxu0 0.0
  %606 = vmatprep.subr.mxu0 0.0
  %607 = vmatpush2.msra.mxu0 0.0
  %608 = vmatprep.subr.mxu0 0.0
  %609 = vmatpush2.msra.mxu0 0.0
  %610 = vmatprep.subr.mxu0 0.0
  %611 = vmatpush2.msra.mxu0 0.0
  %612 = vmatprep.subr.mxu0 0.0
  %613 = vmatpush2.msra.mxu0 0.0
  %614 = vmatprep.subr.mxu0 0.0
  %615 = vmatpush2.msra.mxu0 0.0
  %616 = vmatprep.subr.mxu0 0.0
  %617 = vmatpush2.msra.mxu0 0.0
  %618 = vmatprep.mubr.f32.mxu0 0.0
  %619 = vmatmul.mubr.f32.gmra.mxu0 %v552
  %v620 = vpop.f32.mrf.mxu0
  %v621 = vadd.f32 0.0, %v620
  %v622 = vpop.f32.mrf.mxu0
  %623 = vdwg.mxu0
  %v624 = vld [vmem:[%s7] sm:$0xff]
  %625 = vrot.lane.b32.xlu0 %v288, 120
  %v626 = vpop.permute.xlu0 %625
  %627 = vrot.lane.b32.xlu0 %v288, 88
  %v628 = vpop.permute.xlu0 %627
  %v629 = vsel %vm66, %v626, 0
  %v631 = vsel %vm66, %v628, 0
  %633 = vmatprep.subr.mxu0 0.0
  %634 = vmatpush1.xpose.msra.mxu0 0.0
  %635 = vmatprep.subr.mxu0 0.0
  %636 = vmatpush1.xpose.msra.mxu0 0.0
  %637 = vmatprep.subr.mxu0 0.0
  %638 = vmatpush1.xpose.msra.mxu0 0.0
  %639 = vmatprep.subr.mxu0 0.0
  %640 = vmatpush1.xpose.msra.mxu0 0.0
  %641 = vmatprep.subr.mxu0 0.0
  %642 = vmatpush1.xpose.msra.mxu0 0.0
  %643 = vmatprep.subr.mxu0 0.0
  %644 = vmatpush1.xpose.msra.mxu0 0.0
  %645 = vmatprep.subr.mxu0 0.0
  %646 = vmatpush1.xpose.msra.mxu0 0.0
  %647 = vmatprep.subr.mxu0 0.0
  %648 = vmatpush1.xpose.msra.mxu0 0.0
  %649 = vmatprep.subr.mxu0 0.0
  %650 = vmatpush1.xpose.msra.mxu0 0.0
  %651 = vmatprep.subr.mxu0 0.0
  %652 = vmatpush1.xpose.msra.mxu0 0.0
  %653 = vmatprep.subr.mxu0 0.0
  %654 = vmatpush1.xpose.msra.mxu0 0.0
  %655 = vmatprep.subr.mxu0 0.0
  %656 = vmatpush1.xpose.msra.mxu0 0.0
  %657 = vmatprep.subr.mxu0 0.0
  %658 = vmatpush1.xpose.msra.mxu0 0.0
  %659 = vmatprep.subr.mxu0 0.0
  %660 = vmatpush1.xpose.msra.mxu0 0.0
  %661 = vmatprep.subr.mxu0 0.0
  %662 = vmatpush1.xpose.msra.mxu0 0.0
  %663 = vmatprep.subr.mxu0 0.0
  %664 = vmatpush1.xpose.msra.mxu0 %v631
  %665 = vmatprep.subr.mxu0 0.0
  %666 = vmatpush2.xpose.msra.mxu0 0.0
  %667 = vmatprep.subr.mxu0 0.0
  %668 = vmatpush2.xpose.msra.mxu0 0.0
  %669 = vmatprep.subr.mxu0 0.0
  %670 = vmatpush2.xpose.msra.mxu0 0.0
  %671 = vmatprep.subr.mxu0 0.0
  %672 = vmatpush2.xpose.msra.mxu0 0.0
  %673 = vmatprep.subr.mxu0 0.0
  %674 = vmatpush2.xpose.msra.mxu0 0.0
  %675 = vmatprep.subr.mxu0 0.0
  %676 = vmatpush2.xpose.msra.mxu0 0.0
  %677 = vmatprep.subr.mxu0 0.0
  %678 = vmatpush2.xpose.msra.mxu0 0.0
  %679 = vmatprep.subr.mxu0 0.0
  %680 = vmatpush2.xpose.msra.mxu0 0.0
  %681 = vmatprep.subr.mxu0 0.0
  %682 = vmatpush2.xpose.msra.mxu0 0.0
  %683 = vmatprep.subr.mxu0 0.0
  %684 = vmatpush2.xpose.msra.mxu0 0.0
  %685 = vmatprep.subr.mxu0 0.0
  %686 = vmatpush2.xpose.msra.mxu0 0.0
  %687 = vmatprep.subr.mxu0 0.0
  %688 = vmatpush2.xpose.msra.mxu0 0.0
  %689 = vmatprep.subr.mxu0 0.0
  %690 = vmatpush2.xpose.msra.mxu0 0.0
  %691 = vmatprep.subr.mxu0 0.0
  %692 = vmatpush2.xpose.msra.mxu0 0.0
  %693 = vmatprep.subr.mxu0 0.0
  %694 = vmatpush2.xpose.msra.mxu0 0.0
  %695 = vmatprep.subr.mxu0 0.0
  %696 = vmatpush2.xpose.msra.mxu0 0.0
  %697 = vmatprep.mubr.f32.mxu0 0.0
  %698 = vmatmul.mubr.f32.gmra.mxu0 %v629
  %v699 = vpop.f32.mrf.mxu0
  %v700 = vadd.f32 %v153, %v699
  %v701 = vpop.f32.mrf.mxu0
  %702 = vdwg.mxu0
  %703 = vrot.lane.b32.xlu0 %v293, 120
  %v704 = vpop.permute.xlu0 %703
  %705 = vrot.lane.b32.xlu0 %v293, 88
  %v706 = vpop.permute.xlu0 %705
  %v707 = vsel %vm66, %v704, 0
  %v709 = vsel %vm66, %v706, 0
  %711 = vmatprep.subr.mxu0 0.0
  %712 = vmatpush1.xpose.msra.mxu0 0.0
  %713 = vmatprep.subr.mxu0 0.0
  %714 = vmatpush1.xpose.msra.mxu0 0.0
  %715 = vmatprep.subr.mxu0 0.0
  %716 = vmatpush1.xpose.msra.mxu0 0.0
  %717 = vmatprep.subr.mxu0 0.0
  %718 = vmatpush1.xpose.msra.mxu0 0.0
  %719 = vmatprep.subr.mxu0 0.0
  %720 = vmatpush1.xpose.msra.mxu0 0.0
  %721 = vmatprep.subr.mxu0 0.0
  %722 = vmatpush1.xpose.msra.mxu0 0.0
  %723 = vmatprep.subr.mxu0 0.0
  %724 = vmatpush1.xpose.msra.mxu0 0.0
  %725 = vmatprep.subr.mxu0 0.0
  %726 = vmatpush1.xpose.msra.mxu0 0.0
  %727 = vmatprep.subr.mxu0 0.0
  %728 = vmatpush1.xpose.msra.mxu0 0.0
  %729 = vmatprep.subr.mxu0 0.0
  %730 = vmatpush1.xpose.msra.mxu0 0.0
  %731 = vmatprep.subr.mxu0 0.0
  %732 = vmatpush1.xpose.msra.mxu0 0.0
  %733 = vmatprep.subr.mxu0 0.0
  %734 = vmatpush1.xpose.msra.mxu0 0.0
  %735 = vmatprep.subr.mxu0 0.0
  %736 = vmatpush1.xpose.msra.mxu0 0.0
  %737 = vmatprep.subr.mxu0 0.0
  %738 = vmatpush1.xpose.msra.mxu0 0.0
  %739 = vmatprep.subr.mxu0 0.0
  %740 = vmatpush1.xpose.msra.mxu0 0.0
  %741 = vmatprep.subr.mxu0 0.0
  %742 = vmatpush1.xpose.msra.mxu0 %v709
  %743 = vmatprep.subr.mxu0 0.0
  %744 = vmatpush2.xpose.msra.mxu0 0.0
  %745 = vmatprep.subr.mxu0 0.0
  %746 = vmatpush2.xpose.msra.mxu0 0.0
  %747 = vmatprep.subr.mxu0 0.0
  %748 = vmatpush2.xpose.msra.mxu0 0.0
  %749 = vmatprep.subr.mxu0 0.0
  %750 = vmatpush2.xpose.msra.mxu0 0.0
  %751 = vmatprep.subr.mxu0 0.0
  %752 = vmatpush2.xpose.msra.mxu0 0.0
  %753 = vmatprep.subr.mxu0 0.0
  %754 = vmatpush2.xpose.msra.mxu0 0.0
  %755 = vmatprep.subr.mxu0 0.0
  %756 = vmatpush2.xpose.msra.mxu0 0.0
  %757 = vmatprep.subr.mxu0 0.0
  %758 = vmatpush2.xpose.msra.mxu0 0.0
  %759 = vmatprep.subr.mxu0 0.0
  %760 = vmatpush2.xpose.msra.mxu0 0.0
  %761 = vmatprep.subr.mxu0 0.0
  %762 = vmatpush2.xpose.msra.mxu0 0.0
  %763 = vmatprep.subr.mxu0 0.0
  %764 = vmatpush2.xpose.msra.mxu0 0.0
  %765 = vmatprep.subr.mxu0 0.0
  %766 = vmatpush2.xpose.msra.mxu0 0.0
  %767 = vmatprep.subr.mxu0 0.0
  %768 = vmatpush2.xpose.msra.mxu0 0.0
  %769 = vmatprep.subr.mxu0 0.0
  %770 = vmatpush2.xpose.msra.mxu0 0.0
  %771 = vmatprep.subr.mxu0 0.0
  %772 = vmatpush2.xpose.msra.mxu0 0.0
  %773 = vmatprep.subr.mxu0 0.0
  %774 = vmatpush2.xpose.msra.mxu0 0.0
  %775 = vmatprep.mubr.f32.mxu0 0.0
  %776 = vmatmul.mubr.f32.gmra.mxu0 %v707
  %v777 = vpop.f32.mrf.mxu0
  %v778 = vadd.f32 %v153, %v777
  %v779 = vpop.f32.mrf.mxu0
  %780 = vdwg.mxu0
  %v781 = vsel %vm66, %v700, -inf
  %782 = vmax.xlane.f32.xlu0 %v781
  %v783 = vpop.xlane.xlu0 %782
  %v784 = vsel %vm66, %v778, -inf
  %785 = vmax.xlane.f32.xlu0 %v784
  %v786 = vpop.xlane.xlu0 %785
  %v787 = vsub.f32 %v700, %v783
  %v788 = vsub.f32 %v778, %v786
  %v789 = vmul.f32 %v787, 1.442695
  %v790 = vpow.pop %v789
  %v791 = vmul.f32 %v788, 1.442695
  %v792 = vpow.pop %v791
  %v793 = vsel %vm66, %v790, 0.0
  %794 = vadd.xlane.f32.xlu0 %v793
  %v795 = vpop.xlane.xlu0 %794
  %v796 = vsel %vm66, %v792, 0.0
  %797 = vadd.xlane.f32.xlu0 %v796
  %v798 = vpop.xlane.xlu0 %797
  %v799 = vrcp.pop %v795
  %v800 = vrcp.pop %v798
  %v801 = vmul.f32 %v790, %v799
  %v802 = vmul.f32 %v792, %v800
  %803 = vrot.lane.b32.xlu0 %v288, 56
  %v804 = vpop.permute.xlu0 %803
  %v807 = vsel %vm66, %v801, 0
  %809 = vmatprep.subr.mxu0 0.0
  %810 = vmatpush1.msra.mxu0 0.0
  %811 = vmatprep.subr.mxu0 0.0
  %812 = vmatpush1.msra.mxu0 0.0
  %813 = vmatprep.subr.mxu0 0.0
  %814 = vmatpush1.msra.mxu0 0.0
  %815 = vmatprep.subr.mxu0 0.0
  %816 = vmatpush1.msra.mxu0 0.0
  %817 = vmatprep.subr.mxu0 0.0
  %818 = vmatpush1.msra.mxu0 0.0
  %819 = vmatprep.subr.mxu0 0.0
  %820 = vmatpush1.msra.mxu0 0.0
  %821 = vmatprep.subr.mxu0 0.0
  %822 = vmatpush1.msra.mxu0 0.0
  %823 = vmatprep.subr.mxu0 0.0
  %824 = vmatpush1.msra.mxu0 0.0
  %825 = vmatprep.subr.mxu0 0.0
  %826 = vmatpush1.msra.mxu0 0.0
  %827 = vmatprep.subr.mxu0 0.0
  %828 = vmatpush1.msra.mxu0 0.0
  %829 = vmatprep.subr.mxu0 0.0
  %830 = vmatpush1.msra.mxu0 0.0
  %831 = vmatprep.subr.mxu0 0.0
  %832 = vmatpush1.msra.mxu0 0.0
  %833 = vmatprep.subr.mxu0 0.0
  %834 = vmatpush1.msra.mxu0 0.0
  %835 = vmatprep.subr.mxu0 0.0
  %836 = vmatpush1.msra.mxu0 0.0
  %837 = vmatprep.subr.mxu0 0.0
  %838 = vmatpush1.msra.mxu0 0.0
  %839 = vmatprep.subr.mxu0 0.0
  %840 = vmatpush1.msra.mxu0 %v804
  %841 = vmatprep.subr.mxu0 0.0
  %842 = vmatpush2.msra.mxu0 0.0
  %843 = vmatprep.subr.mxu0 0.0
  %844 = vmatpush2.msra.mxu0 0.0
  %845 = vmatprep.subr.mxu0 0.0
  %846 = vmatpush2.msra.mxu0 0.0
  %847 = vmatprep.subr.mxu0 0.0
  %848 = vmatpush2.msra.mxu0 0.0
  %849 = vmatprep.subr.mxu0 0.0
  %850 = vmatpush2.msra.mxu0 0.0
  %851 = vmatprep.subr.mxu0 0.0
  %852 = vmatpush2.msra.mxu0 0.0
  %853 = vmatprep.subr.mxu0 0.0
  %854 = vmatpush2.msra.mxu0 0.0
  %855 = vmatprep.subr.mxu0 0.0
  %856 = vmatpush2.msra.mxu0 0.0
  %857 = vmatprep.subr.mxu0 0.0
  %858 = vmatpush2.msra.mxu0 0.0
  %859 = vmatprep.subr.mxu0 0.0
  %860 = vmatpush2.msra.mxu0 0.0
  %861 = vmatprep.subr.mxu0 0.0
  %862 = vmatpush2.msra.mxu0 0.0
  %863 = vmatprep.subr.mxu0 0.0
  %864 = vmatpush2.msra.mxu0 0.0
  %865 = vmatprep.subr.mxu0 0.0
  %866 = vmatpush2.msra.mxu0 0.0
  %867 = vmatprep.subr.mxu0 0.0
  %868 = vmatpush2.msra.mxu0 0.0
  %869 = vmatprep.subr.mxu0 0.0
  %870 = vmatpush2.msra.mxu0 0.0
  %871 = vmatprep.subr.mxu0 0.0
  %872 = vmatpush2.msra.mxu0 0.0
  %873 = vmatprep.mubr.f32.mxu0 0.0
  %874 = vmatmul.mubr.f32.gmra.mxu0 %v807
  %v875 = vpop.f32.mrf.mxu0
  %v876 = vadd.f32 0.0, %v875
  %v877 = vpop.f32.mrf.mxu0
  %878 = vdwg.mxu0
  %879 = vrot.lane.b32.xlu0 %v293, 56
  %v880 = vpop.permute.xlu0 %879
  %v883 = vsel %vm66, %v802, 0
  %885 = vmatprep.subr.mxu0 0.0
  %886 = vmatpush1.msra.mxu0 0.0
  %887 = vmatprep.subr.mxu0 0.0
  %888 = vmatpush1.msra.mxu0 0.0
  %889 = vmatprep.subr.mxu0 0.0
  %890 = vmatpush1.msra.mxu0 0.0
  %891 = vmatprep.subr.mxu0 0.0
  %892 = vmatpush1.msra.mxu0 0.0
  %893 = vmatprep.subr.mxu0 0.0
  %894 = vmatpush1.msra.mxu0 0.0
  %895 = vmatprep.subr.mxu0 0.0
  %896 = vmatpush1.msra.mxu0 0.0
  %897 = vmatprep.subr.mxu0 0.0
  %898 = vmatpush1.msra.mxu0 0.0
  %899 = vmatprep.subr.mxu0 0.0
  %900 = vmatpush1.msra.mxu0 0.0
  %901 = vmatprep.subr.mxu0 0.0
  %902 = vmatpush1.msra.mxu0 0.0
  %903 = vmatprep.subr.mxu0 0.0
  %904 = vmatpush1.msra.mxu0 0.0
  %905 = vmatprep.subr.mxu0 0.0
  %906 = vmatpush1.msra.mxu0 0.0
  %907 = vmatprep.subr.mxu0 0.0
  %908 = vmatpush1.msra.mxu0 0.0
  %909 = vmatprep.subr.mxu0 0.0
  %910 = vmatpush1.msra.mxu0 0.0
  %911 = vmatprep.subr.mxu0 0.0
  %912 = vmatpush1.msra.mxu0 0.0
  %913 = vmatprep.subr.mxu0 0.0
  %914 = vmatpush1.msra.mxu0 0.0
  %915 = vmatprep.subr.mxu0 0.0
  %916 = vmatpush1.msra.mxu0 %v880
  %917 = vmatprep.subr.mxu0 0.0
  %918 = vmatpush2.msra.mxu0 0.0
  %919 = vmatprep.subr.mxu0 0.0
  %920 = vmatpush2.msra.mxu0 0.0
  %921 = vmatprep.subr.mxu0 0.0
  %922 = vmatpush2.msra.mxu0 0.0
  %923 = vmatprep.subr.mxu0 0.0
  %924 = vmatpush2.msra.mxu0 0.0
  %925 = vmatprep.subr.mxu0 0.0
  %926 = vmatpush2.msra.mxu0 0.0
  %927 = vmatprep.subr.mxu0 0.0
  %928 = vmatpush2.msra.mxu0 0.0
  %929 = vmatprep.subr.mxu0 0.0
  %930 = vmatpush2.msra.mxu0 0.0
  %931 = vmatprep.subr.mxu0 0.0
  %932 = vmatpush2.msra.mxu0 0.0
  %933 = vmatprep.subr.mxu0 0.0
  %934 = vmatpush2.msra.mxu0 0.0
  %935 = vmatprep.subr.mxu0 0.0
  %936 = vmatpush2.msra.mxu0 0.0
  %937 = vmatprep.subr.mxu0 0.0
  %938 = vmatpush2.msra.mxu0 0.0
  %939 = vmatprep.subr.mxu0 0.0
  %940 = vmatpush2.msra.mxu0 0.0
  %941 = vmatprep.subr.mxu0 0.0
  %942 = vmatpush2.msra.mxu0 0.0
  %943 = vmatprep.subr.mxu0 0.0
  %944 = vmatpush2.msra.mxu0 0.0
  %945 = vmatprep.subr.mxu0 0.0
  %946 = vmatpush2.msra.mxu0 0.0
  %947 = vmatprep.subr.mxu0 0.0
  %948 = vmatpush2.msra.mxu0 0.0
  %949 = vmatprep.mubr.f32.mxu0 0.0
  %950 = vmatmul.mubr.f32.gmra.mxu0 %v883
  %v951 = vpop.f32.mrf.mxu0
  %v952 = vadd.f32 0.0, %v951
  %v953 = vpop.f32.mrf.mxu0
  %954 = vdwg.mxu0
  %s955 = scalar_lea.vmem %s7, 8
  %v956 = vld [vmem:[%s955] sm:$0xff]
  %v958 = vsel %vm66, %v876, 0
  %v961 = vsel %vm66, %v952, 0
  %963 = vmatprep.subr.mxu0 0.0
  %964 = vmatpush1.msra.mxu0 0.0
  %965 = vmatprep.subr.mxu0 0.0
  %966 = vmatpush1.msra.mxu0 0.0
  %967 = vmatprep.subr.mxu0 0.0
  %968 = vmatpush1.msra.mxu0 0.0
  %969 = vmatprep.subr.mxu0 0.0
  %970 = vmatpush1.msra.mxu0 0.0
  %971 = vmatprep.subr.mxu0 0.0
  %972 = vmatpush1.msra.mxu0 0.0
  %973 = vmatprep.subr.mxu0 0.0
  %974 = vmatpush1.msra.mxu0 0.0
  %975 = vmatprep.subr.mxu0 0.0
  %976 = vmatpush1.msra.mxu0 0.0
  %977 = vmatprep.subr.mxu0 0.0
  %978 = vmatpush1.msra.mxu0 0.0
  %979 = vmatprep.subr.mxu0 0.0
  %980 = vmatpush1.msra.mxu0 0.0
  %981 = vmatprep.subr.mxu0 0.0
  %982 = vmatpush1.msra.mxu0 0.0
  %983 = vmatprep.subr.mxu0 0.0
  %984 = vmatpush1.msra.mxu0 0.0
  %985 = vmatprep.subr.mxu0 0.0
  %986 = vmatpush1.msra.mxu0 0.0
  %987 = vmatprep.subr.mxu0 0.0
  %988 = vmatpush1.msra.mxu0 0.0
  %989 = vmatprep.subr.mxu0 0.0
  %990 = vmatpush1.msra.mxu0 0.0
  %991 = vmatprep.subr.mxu0 0.0
  %992 = vmatpush1.msra.mxu0 0.0
  %993 = vmatprep.subr.mxu0 0.0
  %994 = vmatpush1.msra.mxu0 %v956
  %995 = vmatprep.subr.mxu0 0.0
  %996 = vmatpush2.msra.mxu0 0.0
  %997 = vmatprep.subr.mxu0 0.0
  %998 = vmatpush2.msra.mxu0 0.0
  %999 = vmatprep.subr.mxu0 0.0
  %1000 = vmatpush2.msra.mxu0 0.0
  %1001 = vmatprep.subr.mxu0 0.0
  %1002 = vmatpush2.msra.mxu0 0.0
  %1003 = vmatprep.subr.mxu0 0.0
  %1004 = vmatpush2.msra.mxu0 0.0
  %1005 = vmatprep.subr.mxu0 0.0
  %1006 = vmatpush2.msra.mxu0 0.0
  %1007 = vmatprep.subr.mxu0 0.0
  %1008 = vmatpush2.msra.mxu0 0.0
  %1009 = vmatprep.subr.mxu0 0.0
  %1010 = vmatpush2.msra.mxu0 0.0
  %1011 = vmatprep.subr.mxu0 0.0
  %1012 = vmatpush2.msra.mxu0 0.0
  %1013 = vmatprep.subr.mxu0 0.0
  %1014 = vmatpush2.msra.mxu0 0.0
  %1015 = vmatprep.subr.mxu0 0.0
  %1016 = vmatpush2.msra.mxu0 0.0
  %1017 = vmatprep.subr.mxu0 0.0
  %1018 = vmatpush2.msra.mxu0 0.0
  %1019 = vmatprep.subr.mxu0 0.0
  %1020 = vmatpush2.msra.mxu0 0.0
  %1021 = vmatprep.subr.mxu0 0.0
  %1022 = vmatpush2.msra.mxu0 0.0
  %1023 = vmatprep.subr.mxu0 0.0
  %1024 = vmatpush2.msra.mxu0 0.0
  %1025 = vmatprep.subr.mxu0 0.0
  %1026 = vmatpush2.msra.mxu0 0.0
  %1027 = vmatprep.mubr.f32.mxu0 0.0
  %1028 = vmatmul.mubr.f32.gmra.mxu0 %v958
  %v1029 = vpop.f32.mrf.mxu0
  %v1030 = vadd.f32 0.0, %v1029
  %v1031 = vpop.f32.mrf.mxu0
  %1032 = vmatprep.mubr.f32.mxu0 0.0
  %1033 = vmatmul.mubr.f32.gmra.mxu0 %v961
  %v1034 = vpop.f32.mrf.mxu0
  %v1035 = vadd.f32 0.0, %v1034
  %v1036 = vpop.f32.mrf.mxu0
  %1037 = vdwg.mxu0
  %v1039 = vsel %vm66, %v545, 0
  %v1042 = vsel %vm66, %v621, 0
  %1044 = vmatprep.subr.mxu0 0.0
  %1045 = vmatpush1.msra.mxu0 0.0
  %1046 = vmatprep.subr.mxu0 0.0
  %1047 = vmatpush1.msra.mxu0 0.0
  %1048 = vmatprep.subr.mxu0 0.0
  %1049 = vmatpush1.msra.mxu0 0.0
  %1050 = vmatprep.subr.mxu0 0.0
  %1051 = vmatpush1.msra.mxu0 0.0
  %1052 = vmatprep.subr.mxu0 0.0
  %1053 = vmatpush1.msra.mxu0 0.0
  %1054 = vmatprep.subr.mxu0 0.0
  %1055 = vmatpush1.msra.mxu0 0.0
  %1056 = vmatprep.subr.mxu0 0.0
  %1057 = vmatpush1.msra.mxu0 0.0
  %1058 = vmatprep.subr.mxu0 0.0
  %1059 = vmatpush1.msra.mxu0 0.0
  %1060 = vmatprep.subr.mxu0 0.0
  %1061 = vmatpush1.msra.mxu0 0.0
  %1062 = vmatprep.subr.mxu0 0.0
  %1063 = vmatpush1.msra.mxu0 0.0
  %1064 = vmatprep.subr.mxu0 0.0
  %1065 = vmatpush1.msra.mxu0 0.0
  %1066 = vmatprep.subr.mxu0 0.0
  %1067 = vmatpush1.msra.mxu0 0.0
  %1068 = vmatprep.subr.mxu0 0.0
  %1069 = vmatpush1.msra.mxu0 0.0
  %1070 = vmatprep.subr.mxu0 0.0
  %1071 = vmatpush1.msra.mxu0 0.0
  %1072 = vmatprep.subr.mxu0 0.0
  %1073 = vmatpush1.msra.mxu0 0.0
  %1074 = vmatprep.subr.mxu0 0.0
  %1075 = vmatpush1.msra.mxu0 %v624
  %1076 = vmatprep.subr.mxu0 0.0
  %1077 = vmatpush2.msra.mxu0 0.0
  %1078 = vmatprep.subr.mxu0 0.0
  %1079 = vmatpush2.msra.mxu0 0.0
  %1080 = vmatprep.subr.mxu0 0.0
  %1081 = vmatpush2.msra.mxu0 0.0
  %1082 = vmatprep.subr.mxu0 0.0
  %1083 = vmatpush2.msra.mxu0 0.0
  %1084 = vmatprep.subr.mxu0 0.0
  %1085 = vmatpush2.msra.mxu0 0.0
  %1086 = vmatprep.subr.mxu0 0.0
  %1087 = vmatpush2.msra.mxu0 0.0
  %1088 = vmatprep.subr.mxu0 0.0
  %1089 = vmatpush2.msra.mxu0 0.0
  %1090 = vmatprep.subr.mxu0 0.0
  %1091 = vmatpush2.msra.mxu0 0.0
  %1092 = vmatprep.subr.mxu0 0.0
  %1093 = vmatpush2.msra.mxu0 0.0
  %1094 = vmatprep.subr.mxu0 0.0
  %1095 = vmatpush2.msra.mxu0 0.0
  %1096 = vmatprep.subr.mxu0 0.0
  %1097 = vmatpush2.msra.mxu0 0.0
  %1098 = vmatprep.subr.mxu0 0.0
  %1099 = vmatpush2.msra.mxu0 0.0
  %1100 = vmatprep.subr.mxu0 0.0
  %1101 = vmatpush2.msra.mxu0 0.0
  %1102 = vmatprep.subr.mxu0 0.0
  %1103 = vmatpush2.msra.mxu0 0.0
  %1104 = vmatprep.subr.mxu0 0.0
  %1105 = vmatpush2.msra.mxu0 0.0
  %1106 = vmatprep.subr.mxu0 0.0
  %1107 = vmatpush2.msra.mxu0 0.0
  %1108 = vmatprep.mubr.f32.mxu0 0.0
  %1109 = vmatmul.mubr.f32.gmra.mxu0 %v1039
  %v1110 = vpop.f32.mrf.mxu0
  %v1111 = vadd.f32 %v1030, %v1110
  %v1112 = vpop.f32.mrf.mxu0
  %1113 = vmatprep.mubr.f32.mxu0 0.0
  %1114 = vmatmul.mubr.f32.gmra.mxu0 %v1042
  %v1115 = vpop.f32.mrf.mxu0
  %v1116 = vadd.f32 %v1035, %v1115
  %v1117 = vpop.f32.mrf.mxu0
  %1118 = vdwg.mxu0
  %1119 = vrot.lane.b32.xlu0 %v288, 112
  %v1120 = vpop.permute.xlu0 %1119
  %1121 = vrot.lane.b32.xlu0 %v288, 80
  %v1122 = vpop.permute.xlu0 %1121
  %v1123 = vsel %vm66, %v1120, 0
  %v1125 = vsel %vm66, %v1122, 0
  %1127 = vmatprep.subr.mxu0 0.0
  %1128 = vmatpush1.xpose.msra.mxu0 0.0
  %1129 = vmatprep.subr.mxu0 0.0
  %1130 = vmatpush1.xpose.msra.mxu0 0.0
  %1131 = vmatprep.subr.mxu0 0.0
  %1132 = vmatpush1.xpose.msra.mxu0 0.0
  %1133 = vmatprep.subr.mxu0 0.0
  %1134 = vmatpush1.xpose.msra.mxu0 0.0
  %1135 = vmatprep.subr.mxu0 0.0
  %1136 = vmatpush1.xpose.msra.mxu0 0.0
  %1137 = vmatprep.subr.mxu0 0.0
  %1138 = vmatpush1.xpose.msra.mxu0 0.0
  %1139 = vmatprep.subr.mxu0 0.0
  %1140 = vmatpush1.xpose.msra.mxu0 0.0
  %1141 = vmatprep.subr.mxu0 0.0
  %1142 = vmatpush1.xpose.msra.mxu0 0.0
  %1143 = vmatprep.subr.mxu0 0.0
  %1144 = vmatpush1.xpose.msra.mxu0 0.0
  %1145 = vmatprep.subr.mxu0 0.0
  %1146 = vmatpush1.xpose.msra.mxu0 0.0
  %1147 = vmatprep.subr.mxu0 0.0
  %1148 = vmatpush1.xpose.msra.mxu0 0.0
  %1149 = vmatprep.subr.mxu0 0.0
  %1150 = vmatpush1.xpose.msra.mxu0 0.0
  %1151 = vmatprep.subr.mxu0 0.0
  %1152 = vmatpush1.xpose.msra.mxu0 0.0
  %1153 = vmatprep.subr.mxu0 0.0
  %1154 = vmatpush1.xpose.msra.mxu0 0.0
  %1155 = vmatprep.subr.mxu0 0.0
  %1156 = vmatpush1.xpose.msra.mxu0 0.0
  %1157 = vmatprep.subr.mxu0 0.0
  %1158 = vmatpush1.xpose.msra.mxu0 %v1125
  %1159 = vmatprep.subr.mxu0 0.0
  %1160 = vmatpush2.xpose.msra.mxu0 0.0
  %1161 = vmatprep.subr.mxu0 0.0
  %1162 = vmatpush2.xpose.msra.mxu0 0.0
  %1163 = vmatprep.subr.mxu0 0.0
  %1164 = vmatpush2.xpose.msra.mxu0 0.0
  %1165 = vmatprep.subr.mxu0 0.0
  %1166 = vmatpush2.xpose.msra.mxu0 0.0
  %1167 = vmatprep.subr.mxu0 0.0
  %1168 = vmatpush2.xpose.msra.mxu0 0.0
  %1169 = vmatprep.subr.mxu0 0.0
  %1170 = vmatpush2.xpose.msra.mxu0 0.0
  %1171 = vmatprep.subr.mxu0 0.0
  %1172 = vmatpush2.xpose.msra.mxu0 0.0
  %1173 = vmatprep.subr.mxu0 0.0
  %1174 = vmatpush2.xpose.msra.mxu0 0.0
  %1175 = vmatprep.subr.mxu0 0.0
  %1176 = vmatpush2.xpose.msra.mxu0 0.0
  %1177 = vmatprep.subr.mxu0 0.0
  %1178 = vmatpush2.xpose.msra.mxu0 0.0
  %1179 = vmatprep.subr.mxu0 0.0
  %1180 = vmatpush2.xpose.msra.mxu0 0.0
  %1181 = vmatprep.subr.mxu0 0.0
  %1182 = vmatpush2.xpose.msra.mxu0 0.0
  %1183 = vmatprep.subr.mxu0 0.0
  %1184 = vmatpush2.xpose.msra.mxu0 0.0
  %1185 = vmatprep.subr.mxu0 0.0
  %1186 = vmatpush2.xpose.msra.mxu0 0.0
  %1187 = vmatprep.subr.mxu0 0.0
  %1188 = vmatpush2.xpose.msra.mxu0 0.0
  %1189 = vmatprep.subr.mxu0 0.0
  %1190 = vmatpush2.xpose.msra.mxu0 0.0
  %1191 = vmatprep.mubr.f32.mxu0 0.0
  %1192 = vmatmul.mubr.f32.gmra.mxu0 %v1123
  %v1193 = vpop.f32.mrf.mxu0
  %v1194 = vadd.f32 %v153, %v1193
  %v1195 = vpop.f32.mrf.mxu0
  %1196 = vdwg.mxu0
  %1197 = vrot.lane.b32.xlu0 %v293, 112
  %v1198 = vpop.permute.xlu0 %1197
  %1199 = vrot.lane.b32.xlu0 %v293, 80
  %v1200 = vpop.permute.xlu0 %1199
  %v1201 = vsel %vm66, %v1198, 0
  %v1203 = vsel %vm66, %v1200, 0
  %1205 = vmatprep.subr.mxu0 0.0
  %1206 = vmatpush1.xpose.msra.mxu0 0.0
  %1207 = vmatprep.subr.mxu0 0.0
  %1208 = vmatpush1.xpose.msra.mxu0 0.0
  %1209 = vmatprep.subr.mxu0 0.0
  %1210 = vmatpush1.xpose.msra.mxu0 0.0
  %1211 = vmatprep.subr.mxu0 0.0
  %1212 = vmatpush1.xpose.msra.mxu0 0.0
  %1213 = vmatprep.subr.mxu0 0.0
  %1214 = vmatpush1.xpose.msra.mxu0 0.0
  %1215 = vmatprep.subr.mxu0 0.0
  %1216 = vmatpush1.xpose.msra.mxu0 0.0
  %1217 = vmatprep.subr.mxu0 0.0
  %1218 = vmatpush1.xpose.msra.mxu0 0.0
  %1219 = vmatprep.subr.mxu0 0.0
  %1220 = vmatpush1.xpose.msra.mxu0 0.0
  %1221 = vmatprep.subr.mxu0 0.0
  %1222 = vmatpush1.xpose.msra.mxu0 0.0
  %1223 = vmatprep.subr.mxu0 0.0
  %1224 = vmatpush1.xpose.msra.mxu0 0.0
  %1225 = vmatprep.subr.mxu0 0.0
  %1226 = vmatpush1.xpose.msra.mxu0 0.0
  %1227 = vmatprep.subr.mxu0 0.0
  %1228 = vmatpush1.xpose.msra.mxu0 0.0
  %1229 = vmatprep.subr.mxu0 0.0
  %1230 = vmatpush1.xpose.msra.mxu0 0.0
  %1231 = vmatprep.subr.mxu0 0.0
  %1232 = vmatpush1.xpose.msra.mxu0 0.0
  %1233 = vmatprep.subr.mxu0 0.0
  %1234 = vmatpush1.xpose.msra.mxu0 0.0
  %1235 = vmatprep.subr.mxu0 0.0
  %1236 = vmatpush1.xpose.msra.mxu0 %v1203
  %1237 = vmatprep.subr.mxu0 0.0
  %1238 = vmatpush2.xpose.msra.mxu0 0.0
  %1239 = vmatprep.subr.mxu0 0.0
  %1240 = vmatpush2.xpose.msra.mxu0 0.0
  %1241 = vmatprep.subr.mxu0 0.0
  %1242 = vmatpush2.xpose.msra.mxu0 0.0
  %1243 = vmatprep.subr.mxu0 0.0
  %1244 = vmatpush2.xpose.msra.mxu0 0.0
  %1245 = vmatprep.subr.mxu0 0.0
  %1246 = vmatpush2.xpose.msra.mxu0 0.0
  %1247 = vmatprep.subr.mxu0 0.0
  %1248 = vmatpush2.xpose.msra.mxu0 0.0
  %1249 = vmatprep.subr.mxu0 0.0
  %1250 = vmatpush2.xpose.msra.mxu0 0.0
  %1251 = vmatprep.subr.mxu0 0.0
  %1252 = vmatpush2.xpose.msra.mxu0 0.0
  %1253 = vmatprep.subr.mxu0 0.0
  %1254 = vmatpush2.xpose.msra.mxu0 0.0
  %1255 = vmatprep.subr.mxu0 0.0
  %1256 = vmatpush2.xpose.msra.mxu0 0.0
  %1257 = vmatprep.subr.mxu0 0.0
  %1258 = vmatpush2.xpose.msra.mxu0 0.0
  %1259 = vmatprep.subr.mxu0 0.0
  %1260 = vmatpush2.xpose.msra.mxu0 0.0
  %1261 = vmatprep.subr.mxu0 0.0
  %1262 = vmatpush2.xpose.msra.mxu0 0.0
  %1263 = vmatprep.subr.mxu0 0.0
  %1264 = vmatpush2.xpose.msra.mxu0 0.0
  %1265 = vmatprep.subr.mxu0 0.0
  %1266 = vmatpush2.xpose.msra.mxu0 0.0
  %1267 = vmatprep.subr.mxu0 0.0
  %1268 = vmatpush2.xpose.msra.mxu0 0.0
  %1269 = vmatprep.mubr.f32.mxu0 0.0
  %1270 = vmatmul.mubr.f32.gmra.mxu0 %v1201
  %v1271 = vpop.f32.mrf.mxu0
  %v1272 = vadd.f32 %v153, %v1271
  %v1273 = vpop.f32.mrf.mxu0
  %1274 = vdwg.mxu0
  %v1275 = vsel %vm66, %v1194, -inf
  %1276 = vmax.xlane.f32.xlu0 %v1275
  %v1277 = vpop.xlane.xlu0 %1276
  %v1278 = vsel %vm66, %v1272, -inf
  %1279 = vmax.xlane.f32.xlu0 %v1278
  %v1280 = vpop.xlane.xlu0 %1279
  %v1281 = vsub.f32 %v1194, %v1277
  %v1282 = vsub.f32 %v1272, %v1280
  %v1283 = vmul.f32 %v1281, 1.442695
  %v1284 = vpow.pop %v1283
  %v1285 = vmul.f32 %v1282, 1.442695
  %v1286 = vpow.pop %v1285
  %v1287 = vsel %vm66, %v1284, 0.0
  %1288 = vadd.xlane.f32.xlu0 %v1287
  %v1289 = vpop.xlane.xlu0 %1288
  %v1290 = vsel %vm66, %v1286, 0.0
  %1291 = vadd.xlane.f32.xlu0 %v1290
  %v1292 = vpop.xlane.xlu0 %1291
  %v1293 = vrcp.pop %v1289
  %v1294 = vrcp.pop %v1292
  %v1295 = vmul.f32 %v1284, %v1293
  %v1296 = vmul.f32 %v1286, %v1294
  %1297 = vrot.lane.b32.xlu0 %v288, 48
  %v1298 = vpop.permute.xlu0 %1297
  %v1301 = vsel %vm66, %v1295, 0
  %1303 = vmatprep.subr.mxu0 0.0
  %1304 = vmatpush1.msra.mxu0 0.0
  %1305 = vmatprep.subr.mxu0 0.0
  %1306 = vmatpush1.msra.mxu0 0.0
  %1307 = vmatprep.subr.mxu0 0.0
  %1308 = vmatpush1.msra.mxu0 0.0
  %1309 = vmatprep.subr.mxu0 0.0
  %1310 = vmatpush1.msra.mxu0 0.0
  %1311 = vmatprep.subr.mxu0 0.0
  %1312 = vmatpush1.msra.mxu0 0.0
  %1313 = vmatprep.subr.mxu0 0.0
  %1314 = vmatpush1.msra.mxu0 0.0
  %1315 = vmatprep.subr.mxu0 0.0
  %1316 = vmatpush1.msra.mxu0 0.0
  %1317 = vmatprep.subr.mxu0 0.0
  %1318 = vmatpush1.msra.mxu0 0.0
  %1319 = vmatprep.subr.mxu0 0.0
  %1320 = vmatpush1.msra.mxu0 0.0
  %1321 = vmatprep.subr.mxu0 0.0
  %1322 = vmatpush1.msra.mxu0 0.0
  %1323 = vmatprep.subr.mxu0 0.0
  %1324 = vmatpush1.msra.mxu0 0.0
  %1325 = vmatprep.subr.mxu0 0.0
  %1326 = vmatpush1.msra.mxu0 0.0
  %1327 = vmatprep.subr.mxu0 0.0
  %1328 = vmatpush1.msra.mxu0 0.0
  %1329 = vmatprep.subr.mxu0 0.0
  %1330 = vmatpush1.msra.mxu0 0.0
  %1331 = vmatprep.subr.mxu0 0.0
  %1332 = vmatpush1.msra.mxu0 0.0
  %1333 = vmatprep.subr.mxu0 0.0
  %1334 = vmatpush1.msra.mxu0 %v1298
  %1335 = vmatprep.subr.mxu0 0.0
  %1336 = vmatpush2.msra.mxu0 0.0
  %1337 = vmatprep.subr.mxu0 0.0
  %1338 = vmatpush2.msra.mxu0 0.0
  %1339 = vmatprep.subr.mxu0 0.0
  %1340 = vmatpush2.msra.mxu0 0.0
  %1341 = vmatprep.subr.mxu0 0.0
  %1342 = vmatpush2.msra.mxu0 0.0
  %1343 = vmatprep.subr.mxu0 0.0
  %1344 = vmatpush2.msra.mxu0 0.0
  %1345 = vmatprep.subr.mxu0 0.0
  %1346 = vmatpush2.msra.mxu0 0.0
  %1347 = vmatprep.subr.mxu0 0.0
  %1348 = vmatpush2.msra.mxu0 0.0
  %1349 = vmatprep.subr.mxu0 0.0
  %1350 = vmatpush2.msra.mxu0 0.0
  %1351 = vmatprep.subr.mxu0 0.0
  %1352 = vmatpush2.msra.mxu0 0.0
  %1353 = vmatprep.subr.mxu0 0.0
  %1354 = vmatpush2.msra.mxu0 0.0
  %1355 = vmatprep.subr.mxu0 0.0
  %1356 = vmatpush2.msra.mxu0 0.0
  %1357 = vmatprep.subr.mxu0 0.0
  %1358 = vmatpush2.msra.mxu0 0.0
  %1359 = vmatprep.subr.mxu0 0.0
  %1360 = vmatpush2.msra.mxu0 0.0
  %1361 = vmatprep.subr.mxu0 0.0
  %1362 = vmatpush2.msra.mxu0 0.0
  %1363 = vmatprep.subr.mxu0 0.0
  %1364 = vmatpush2.msra.mxu0 0.0
  %1365 = vmatprep.subr.mxu0 0.0
  %1366 = vmatpush2.msra.mxu0 0.0
  %1367 = vmatprep.mubr.f32.mxu0 0.0
  %1368 = vmatmul.mubr.f32.gmra.mxu0 %v1301
  %v1369 = vpop.f32.mrf.mxu0
  %v1370 = vadd.f32 0.0, %v1369
  %v1371 = vpop.f32.mrf.mxu0
  %1372 = vdwg.mxu0
  %1373 = vrot.lane.b32.xlu0 %v293, 48
  %v1374 = vpop.permute.xlu0 %1373
  %v1377 = vsel %vm66, %v1296, 0
  %1379 = vmatprep.subr.mxu0 0.0
  %1380 = vmatpush1.msra.mxu0 0.0
  %1381 = vmatprep.subr.mxu0 0.0
  %1382 = vmatpush1.msra.mxu0 0.0
  %1383 = vmatprep.subr.mxu0 0.0
  %1384 = vmatpush1.msra.mxu0 0.0
  %1385 = vmatprep.subr.mxu0 0.0
  %1386 = vmatpush1.msra.mxu0 0.0
  %1387 = vmatprep.subr.mxu0 0.0
  %1388 = vmatpush1.msra.mxu0 0.0
  %1389 = vmatprep.subr.mxu0 0.0
  %1390 = vmatpush1.msra.mxu0 0.0
  %1391 = vmatprep.subr.mxu0 0.0
  %1392 = vmatpush1.msra.mxu0 0.0
  %1393 = vmatprep.subr.mxu0 0.0
  %1394 = vmatpush1.msra.mxu0 0.0
  %1395 = vmatprep.subr.mxu0 0.0
  %1396 = vmatpush1.msra.mxu0 0.0
  %1397 = vmatprep.subr.mxu0 0.0
  %1398 = vmatpush1.msra.mxu0 0.0
  %1399 = vmatprep.subr.mxu0 0.0
  %1400 = vmatpush1.msra.mxu0 0.0
  %1401 = vmatprep.subr.mxu0 0.0
  %1402 = vmatpush1.msra.mxu0 0.0
  %1403 = vmatprep.subr.mxu0 0.0
  %1404 = vmatpush1.msra.mxu0 0.0
  %1405 = vmatprep.subr.mxu0 0.0
  %1406 = vmatpush1.msra.mxu0 0.0
  %1407 = vmatprep.subr.mxu0 0.0
  %1408 = vmatpush1.msra.mxu0 0.0
  %1409 = vmatprep.subr.mxu0 0.0
  %1410 = vmatpush1.msra.mxu0 %v1374
  %1411 = vmatprep.subr.mxu0 0.0
  %1412 = vmatpush2.msra.mxu0 0.0
  %1413 = vmatprep.subr.mxu0 0.0
  %1414 = vmatpush2.msra.mxu0 0.0
  %1415 = vmatprep.subr.mxu0 0.0
  %1416 = vmatpush2.msra.mxu0 0.0
  %1417 = vmatprep.subr.mxu0 0.0
  %1418 = vmatpush2.msra.mxu0 0.0
  %1419 = vmatprep.subr.mxu0 0.0
  %1420 = vmatpush2.msra.mxu0 0.0
  %1421 = vmatprep.subr.mxu0 0.0
  %1422 = vmatpush2.msra.mxu0 0.0
  %1423 = vmatprep.subr.mxu0 0.0
  %1424 = vmatpush2.msra.mxu0 0.0
  %1425 = vmatprep.subr.mxu0 0.0
  %1426 = vmatpush2.msra.mxu0 0.0
  %1427 = vmatprep.subr.mxu0 0.0
  %1428 = vmatpush2.msra.mxu0 0.0
  %1429 = vmatprep.subr.mxu0 0.0
  %1430 = vmatpush2.msra.mxu0 0.0
  %1431 = vmatprep.subr.mxu0 0.0
  %1432 = vmatpush2.msra.mxu0 0.0
  %1433 = vmatprep.subr.mxu0 0.0
  %1434 = vmatpush2.msra.mxu0 0.0
  %1435 = vmatprep.subr.mxu0 0.0
  %1436 = vmatpush2.msra.mxu0 0.0
  %1437 = vmatprep.subr.mxu0 0.0
  %1438 = vmatpush2.msra.mxu0 0.0
  %1439 = vmatprep.subr.mxu0 0.0
  %1440 = vmatpush2.msra.mxu0 0.0
  %1441 = vmatprep.subr.mxu0 0.0
  %1442 = vmatpush2.msra.mxu0 0.0
  %1443 = vmatprep.mubr.f32.mxu0 0.0
  %1444 = vmatmul.mubr.f32.gmra.mxu0 %v1377
  %v1445 = vpop.f32.mrf.mxu0
  %v1446 = vadd.f32 0.0, %v1445
  %v1447 = vpop.f32.mrf.mxu0
  %1448 = vdwg.mxu0
  %s1449 = scalar_lea.vmem %s7, 16
  %v1450 = vld [vmem:[%s1449] sm:$0xff]
  %v1452 = vsel %vm66, %v1370, 0
  %v1455 = vsel %vm66, %v1446, 0
  %1457 = vmatprep.subr.mxu0 0.0
  %1458 = vmatpush1.msra.mxu0 0.0
  %1459 = vmatprep.subr.mxu0 0.0
  %1460 = vmatpush1.msra.mxu0 0.0
  %1461 = vmatprep.subr.mxu0 0.0
  %1462 = vmatpush1.msra.mxu0 0.0
  %1463 = vmatprep.subr.mxu0 0.0
  %1464 = vmatpush1.msra.mxu0 0.0
  %1465 = vmatprep.subr.mxu0 0.0
  %1466 = vmatpush1.msra.mxu0 0.0
  %1467 = vmatprep.subr.mxu0 0.0
  %1468 = vmatpush1.msra.mxu0 0.0
  %1469 = vmatprep.subr.mxu0 0.0
  %1470 = vmatpush1.msra.mxu0 0.0
  %1471 = vmatprep.subr.mxu0 0.0
  %1472 = vmatpush1.msra.mxu0 0.0
  %1473 = vmatprep.subr.mxu0 0.0
  %1474 = vmatpush1.msra.mxu0 0.0
  %1475 = vmatprep.subr.mxu0 0.0
  %1476 = vmatpush1.msra.mxu0 0.0
  %1477 = vmatprep.subr.mxu0 0.0
  %1478 = vmatpush1.msra.mxu0 0.0
  %1479 = vmatprep.subr.mxu0 0.0
  %1480 = vmatpush1.msra.mxu0 0.0
  %1481 = vmatprep.subr.mxu0 0.0
  %1482 = vmatpush1.msra.mxu0 0.0
  %1483 = vmatprep.subr.mxu0 0.0
  %1484 = vmatpush1.msra.mxu0 0.0
  %1485 = vmatprep.subr.mxu0 0.0
  %1486 = vmatpush1.msra.mxu0 0.0
  %1487 = vmatprep.subr.mxu0 0.0
  %1488 = vmatpush1.msra.mxu0 %v1450
  %1489 = vmatprep.subr.mxu0 0.0
  %1490 = vmatpush2.msra.mxu0 0.0
  %1491 = vmatprep.subr.mxu0 0.0
  %1492 = vmatpush2.msra.mxu0 0.0
  %1493 = vmatprep.subr.mxu0 0.0
  %1494 = vmatpush2.msra.mxu0 0.0
  %1495 = vmatprep.subr.mxu0 0.0
  %1496 = vmatpush2.msra.mxu0 0.0
  %1497 = vmatprep.subr.mxu0 0.0
  %1498 = vmatpush2.msra.mxu0 0.0
  %1499 = vmatprep.subr.mxu0 0.0
  %1500 = vmatpush2.msra.mxu0 0.0
  %1501 = vmatprep.subr.mxu0 0.0
  %1502 = vmatpush2.msra.mxu0 0.0
  %1503 = vmatprep.subr.mxu0 0.0
  %1504 = vmatpush2.msra.mxu0 0.0
  %1505 = vmatprep.subr.mxu0 0.0
  %1506 = vmatpush2.msra.mxu0 0.0
  %1507 = vmatprep.subr.mxu0 0.0
  %1508 = vmatpush2.msra.mxu0 0.0
  %1509 = vmatprep.subr.mxu0 0.0
  %1510 = vmatpush2.msra.mxu0 0.0
  %1511 = vmatprep.subr.mxu0 0.0
  %1512 = vmatpush2.msra.mxu0 0.0
  %1513 = vmatprep.subr.mxu0 0.0
  %1514 = vmatpush2.msra.mxu0 0.0
  %1515 = vmatprep.subr.mxu0 0.0
  %1516 = vmatpush2.msra.mxu0 0.0
  %1517 = vmatprep.subr.mxu0 0.0
  %1518 = vmatpush2.msra.mxu0 0.0
  %1519 = vmatprep.subr.mxu0 0.0
  %1520 = vmatpush2.msra.mxu0 0.0
  %1521 = vmatprep.mubr.f32.mxu0 0.0
  %1522 = vmatmul.mubr.f32.gmra.mxu0 %v1452
  %v1523 = vpop.f32.mrf.mxu0
  %v1524 = vadd.f32 0.0, %v1523
  %v1525 = vpop.f32.mrf.mxu0
  %1526 = vmatprep.mubr.f32.mxu0 0.0
  %1527 = vmatmul.mubr.f32.gmra.mxu0 %v1455
  %v1528 = vpop.f32.mrf.mxu0
  %v1529 = vadd.f32 0.0, %v1528
  %v1530 = vpop.f32.mrf.mxu0
  %1531 = vdwg.mxu0
  %v1532 = vadd.f32 %v1111, %v1524
  %v1533 = vadd.f32 %v1116, %v1529
  %1534 = vrot.lane.b32.xlu0 %v288, 104
  %v1535 = vpop.permute.xlu0 %1534
  %1536 = vrot.lane.b32.xlu0 %v288, 72
  %v1537 = vpop.permute.xlu0 %1536
  %v1538 = vsel %vm66, %v1535, 0
  %v1540 = vsel %vm66, %v1537, 0
  %1542 = vmatprep.subr.mxu0 0.0
  %1543 = vmatpush1.xpose.msra.mxu0 0.0
  %1544 = vmatprep.subr.mxu0 0.0
  %1545 = vmatpush1.xpose.msra.mxu0 0.0
  %1546 = vmatprep.subr.mxu0 0.0
  %1547 = vmatpush1.xpose.msra.mxu0 0.0
  %1548 = vmatprep.subr.mxu0 0.0
  %1549 = vmatpush1.xpose.msra.mxu0 0.0
  %1550 = vmatprep.subr.mxu0 0.0
  %1551 = vmatpush1.xpose.msra.mxu0 0.0
  %1552 = vmatprep.subr.mxu0 0.0
  %1553 = vmatpush1.xpose.msra.mxu0 0.0
  %1554 = vmatprep.subr.mxu0 0.0
  %1555 = vmatpush1.xpose.msra.mxu0 0.0
  %1556 = vmatprep.subr.mxu0 0.0
  %1557 = vmatpush1.xpose.msra.mxu0 0.0
  %1558 = vmatprep.subr.mxu0 0.0
  %1559 = vmatpush1.xpose.msra.mxu0 0.0
  %1560 = vmatprep.subr.mxu0 0.0
  %1561 = vmatpush1.xpose.msra.mxu0 0.0
  %1562 = vmatprep.subr.mxu0 0.0
  %1563 = vmatpush1.xpose.msra.mxu0 0.0
  %1564 = vmatprep.subr.mxu0 0.0
  %1565 = vmatpush1.xpose.msra.mxu0 0.0
  %1566 = vmatprep.subr.mxu0 0.0
  %1567 = vmatpush1.xpose.msra.mxu0 0.0
  %1568 = vmatprep.subr.mxu0 0.0
  %1569 = vmatpush1.xpose.msra.mxu0 0.0
  %1570 = vmatprep.subr.mxu0 0.0
  %1571 = vmatpush1.xpose.msra.mxu0 0.0
  %1572 = vmatprep.subr.mxu0 0.0
  %1573 = vmatpush1.xpose.msra.mxu0 %v1540
  %1574 = vmatprep.subr.mxu0 0.0
  %1575 = vmatpush2.xpose.msra.mxu0 0.0
  %1576 = vmatprep.subr.mxu0 0.0
  %1577 = vmatpush2.xpose.msra.mxu0 0.0
  %1578 = vmatprep.subr.mxu0 0.0
  %1579 = vmatpush2.xpose.msra.mxu0 0.0
  %1580 = vmatprep.subr.mxu0 0.0
  %1581 = vmatpush2.xpose.msra.mxu0 0.0
  %1582 = vmatprep.subr.mxu0 0.0
  %1583 = vmatpush2.xpose.msra.mxu0 0.0
  %1584 = vmatprep.subr.mxu0 0.0
  %1585 = vmatpush2.xpose.msra.mxu0 0.0
  %1586 = vmatprep.subr.mxu0 0.0
  %1587 = vmatpush2.xpose.msra.mxu0 0.0
  %1588 = vmatprep.subr.mxu0 0.0
  %1589 = vmatpush2.xpose.msra.mxu0 0.0
  %1590 = vmatprep.subr.mxu0 0.0
  %1591 = vmatpush2.xpose.msra.mxu0 0.0
  %1592 = vmatprep.subr.mxu0 0.0
  %1593 = vmatpush2.xpose.msra.mxu0 0.0
  %1594 = vmatprep.subr.mxu0 0.0
  %1595 = vmatpush2.xpose.msra.mxu0 0.0
  %1596 = vmatprep.subr.mxu0 0.0
  %1597 = vmatpush2.xpose.msra.mxu0 0.0
  %1598 = vmatprep.subr.mxu0 0.0
  %1599 = vmatpush2.xpose.msra.mxu0 0.0
  %1600 = vmatprep.subr.mxu0 0.0
  %1601 = vmatpush2.xpose.msra.mxu0 0.0
  %1602 = vmatprep.subr.mxu0 0.0
  %1603 = vmatpush2.xpose.msra.mxu0 0.0
  %1604 = vmatprep.subr.mxu0 0.0
  %1605 = vmatpush2.xpose.msra.mxu0 0.0
  %1606 = vmatprep.mubr.f32.mxu0 0.0
  %1607 = vmatmul.mubr.f32.gmra.mxu0 %v1538
  %v1608 = vpop.f32.mrf.mxu0
  %v1609 = vadd.f32 %v153, %v1608
  %v1610 = vpop.f32.mrf.mxu0
  %1611 = vdwg.mxu0
  %1612 = vrot.lane.b32.xlu0 %v293, 104
  %v1613 = vpop.permute.xlu0 %1612
  %1614 = vrot.lane.b32.xlu0 %v293, 72
  %v1615 = vpop.permute.xlu0 %1614
  %v1616 = vsel %vm66, %v1613, 0
  %v1618 = vsel %vm66, %v1615, 0
  %1620 = vmatprep.subr.mxu0 0.0
  %1621 = vmatpush1.xpose.msra.mxu0 0.0
  %1622 = vmatprep.subr.mxu0 0.0
  %1623 = vmatpush1.xpose.msra.mxu0 0.0
  %1624 = vmatprep.subr.mxu0 0.0
  %1625 = vmatpush1.xpose.msra.mxu0 0.0
  %1626 = vmatprep.subr.mxu0 0.0
  %1627 = vmatpush1.xpose.msra.mxu0 0.0
  %1628 = vmatprep.subr.mxu0 0.0
  %1629 = vmatpush1.xpose.msra.mxu0 0.0
  %1630 = vmatprep.subr.mxu0 0.0
  %1631 = vmatpush1.xpose.msra.mxu0 0.0
  %1632 = vmatprep.subr.mxu0 0.0
  %1633 = vmatpush1.xpose.msra.mxu0 0.0
  %1634 = vmatprep.subr.mxu0 0.0
  %1635 = vmatpush1.xpose.msra.mxu0 0.0
  %1636 = vmatprep.subr.mxu0 0.0
  %1637 = vmatpush1.xpose.msra.mxu0 0.0
  %1638 = vmatprep.subr.mxu0 0.0
  %1639 = vmatpush1.xpose.msra.mxu0 0.0
  %1640 = vmatprep.subr.mxu0 0.0
  %1641 = vmatpush1.xpose.msra.mxu0 0.0
  %1642 = vmatprep.subr.mxu0 0.0
  %1643 = vmatpush1.xpose.msra.mxu0 0.0
  %1644 = vmatprep.subr.mxu0 0.0
  %1645 = vmatpush1.xpose.msra.mxu0 0.0
  %1646 = vmatprep.subr.mxu0 0.0
  %1647 = vmatpush1.xpose.msra.mxu0 0.0
  %1648 = vmatprep.subr.mxu0 0.0
  %1649 = vmatpush1.xpose.msra.mxu0 0.0
  %1650 = vmatprep.subr.mxu0 0.0
  %1651 = vmatpush1.xpose.msra.mxu0 %v1618
  %1652 = vmatprep.subr.mxu0 0.0
  %1653 = vmatpush2.xpose.msra.mxu0 0.0
  %1654 = vmatprep.subr.mxu0 0.0
  %1655 = vmatpush2.xpose.msra.mxu0 0.0
  %1656 = vmatprep.subr.mxu0 0.0
  %1657 = vmatpush2.xpose.msra.mxu0 0.0
  %1658 = vmatprep.subr.mxu0 0.0
  %1659 = vmatpush2.xpose.msra.mxu0 0.0
  %1660 = vmatprep.subr.mxu0 0.0
  %1661 = vmatpush2.xpose.msra.mxu0 0.0
  %1662 = vmatprep.subr.mxu0 0.0
  %1663 = vmatpush2.xpose.msra.mxu0 0.0
  %1664 = vmatprep.subr.mxu0 0.0
  %1665 = vmatpush2.xpose.msra.mxu0 0.0
  %1666 = vmatprep.subr.mxu0 0.0
  %1667 = vmatpush2.xpose.msra.mxu0 0.0
  %1668 = vmatprep.subr.mxu0 0.0
  %1669 = vmatpush2.xpose.msra.mxu0 0.0
  %1670 = vmatprep.subr.mxu0 0.0
  %1671 = vmatpush2.xpose.msra.mxu0 0.0
  %1672 = vmatprep.subr.mxu0 0.0
  %1673 = vmatpush2.xpose.msra.mxu0 0.0
  %1674 = vmatprep.subr.mxu0 0.0
  %1675 = vmatpush2.xpose.msra.mxu0 0.0
  %1676 = vmatprep.subr.mxu0 0.0
  %1677 = vmatpush2.xpose.msra.mxu0 0.0
  %1678 = vmatprep.subr.mxu0 0.0
  %1679 = vmatpush2.xpose.msra.mxu0 0.0
  %1680 = vmatprep.subr.mxu0 0.0
  %1681 = vmatpush2.xpose.msra.mxu0 0.0
  %1682 = vmatprep.subr.mxu0 0.0
  %1683 = vmatpush2.xpose.msra.mxu0 0.0
  %1684 = vmatprep.mubr.f32.mxu0 0.0
  %1685 = vmatmul.mubr.f32.gmra.mxu0 %v1616
  %v1686 = vpop.f32.mrf.mxu0
  %v1687 = vadd.f32 %v153, %v1686
  %v1688 = vpop.f32.mrf.mxu0
  %1689 = vdwg.mxu0
  %v1690 = vsel %vm66, %v1609, -inf
  %1691 = vmax.xlane.f32.xlu0 %v1690
  %v1692 = vpop.xlane.xlu0 %1691
  %v1693 = vsel %vm66, %v1687, -inf
  %1694 = vmax.xlane.f32.xlu0 %v1693
  %v1695 = vpop.xlane.xlu0 %1694
  %v1696 = vsub.f32 %v1609, %v1692
  %v1697 = vsub.f32 %v1687, %v1695
  %v1698 = vmul.f32 %v1696, 1.442695
  %v1699 = vpow.pop %v1698
  %v1700 = vmul.f32 %v1697, 1.442695
  %v1701 = vpow.pop %v1700
  %v1702 = vsel %vm66, %v1699, 0.0
  %1703 = vadd.xlane.f32.xlu0 %v1702
  %v1704 = vpop.xlane.xlu0 %1703
  %v1705 = vsel %vm66, %v1701, 0.0
  %1706 = vadd.xlane.f32.xlu0 %v1705
  %v1707 = vpop.xlane.xlu0 %1706
  %v1708 = vrcp.pop %v1704
  %v1709 = vrcp.pop %v1707
  %v1710 = vmul.f32 %v1699, %v1708
  %v1711 = vmul.f32 %v1701, %v1709
  %1712 = vrot.lane.b32.xlu0 %v288, 40
  %v1713 = vpop.permute.xlu0 %1712
  %v1716 = vsel %vm66, %v1710, 0
  %1718 = vmatprep.subr.mxu0 0.0
  %1719 = vmatpush1.msra.mxu0 0.0
  %1720 = vmatprep.subr.mxu0 0.0
  %1721 = vmatpush1.msra.mxu0 0.0
  %1722 = vmatprep.subr.mxu0 0.0
  %1723 = vmatpush1.msra.mxu0 0.0
  %1724 = vmatprep.subr.mxu0 0.0
  %1725 = vmatpush1.msra.mxu0 0.0
  %1726 = vmatprep.subr.mxu0 0.0
  %1727 = vmatpush1.msra.mxu0 0.0
  %1728 = vmatprep.subr.mxu0 0.0
  %1729 = vmatpush1.msra.mxu0 0.0
  %1730 = vmatprep.subr.mxu0 0.0
  %1731 = vmatpush1.msra.mxu0 0.0
  %1732 = vmatprep.subr.mxu0 0.0
  %1733 = vmatpush1.msra.mxu0 0.0
  %1734 = vmatprep.subr.mxu0 0.0
  %1735 = vmatpush1.msra.mxu0 0.0
  %1736 = vmatprep.subr.mxu0 0.0
  %1737 = vmatpush1.msra.mxu0 0.0
  %1738 = vmatprep.subr.mxu0 0.0
  %1739 = vmatpush1.msra.mxu0 0.0
  %1740 = vmatprep.subr.mxu0 0.0
  %1741 = vmatpush1.msra.mxu0 0.0
  %1742 = vmatprep.subr.mxu0 0.0
  %1743 = vmatpush1.msra.mxu0 0.0
  %1744 = vmatprep.subr.mxu0 0.0
  %1745 = vmatpush1.msra.mxu0 0.0
  %1746 = vmatprep.subr.mxu0 0.0
  %1747 = vmatpush1.msra.mxu0 0.0
  %1748 = vmatprep.subr.mxu0 0.0
  %1749 = vmatpush1.msra.mxu0 %v1713
  %1750 = vmatprep.subr.mxu0 0.0
  %1751 = vmatpush2.msra.mxu0 0.0
  %1752 = vmatprep.subr.mxu0 0.0
  %1753 = vmatpush2.msra.mxu0 0.0
  %1754 = vmatprep.subr.mxu0 0.0
  %1755 = vmatpush2.msra.mxu0 0.0
  %1756 = vmatprep.subr.mxu0 0.0
  %1757 = vmatpush2.msra.mxu0 0.0
  %1758 = vmatprep.subr.mxu0 0.0
  %1759 = vmatpush2.msra.mxu0 0.0
  %1760 = vmatprep.subr.mxu0 0.0
  %1761 = vmatpush2.msra.mxu0 0.0
  %1762 = vmatprep.subr.mxu0 0.0
  %1763 = vmatpush2.msra.mxu0 0.0
  %1764 = vmatprep.subr.mxu0 0.0
  %1765 = vmatpush2.msra.mxu0 0.0
  %1766 = vmatprep.subr.mxu0 0.0
  %1767 = vmatpush2.msra.mxu0 0.0
  %1768 = vmatprep.subr.mxu0 0.0
  %1769 = vmatpush2.msra.mxu0 0.0
  %1770 = vmatprep.subr.mxu0 0.0
  %1771 = vmatpush2.msra.mxu0 0.0
  %1772 = vmatprep.subr.mxu0 0.0
  %1773 = vmatpush2.msra.mxu0 0.0
  %1774 = vmatprep.subr.mxu0 0.0
  %1775 = vmatpush2.msra.mxu0 0.0
  %1776 = vmatprep.subr.mxu0 0.0
  %1777 = vmatpush2.msra.mxu0 0.0
  %1778 = vmatprep.subr.mxu0 0.0
  %1779 = vmatpush2.msra.mxu0 0.0
  %1780 = vmatprep.subr.mxu0 0.0
  %1781 = vmatpush2.msra.mxu0 0.0
  %1782 = vmatprep.mubr.f32.mxu0 0.0
  %1783 = vmatmul.mubr.f32.gmra.mxu0 %v1716
  %v1784 = vpop.f32.mrf.mxu0
  %v1785 = vadd.f32 0.0, %v1784
  %v1786 = vpop.f32.mrf.mxu0
  %1787 = vdwg.mxu0
  %1788 = vrot.lane.b32.xlu0 %v293, 40
  %v1789 = vpop.permute.xlu0 %1788
  %v1792 = vsel %vm66, %v1711, 0
  %1794 = vmatprep.subr.mxu0 0.0
  %1795 = vmatpush1.msra.mxu0 0.0
  %1796 = vmatprep.subr.mxu0 0.0
  %1797 = vmatpush1.msra.mxu0 0.0
  %1798 = vmatprep.subr.mxu0 0.0
  %1799 = vmatpush1.msra.mxu0 0.0
  %1800 = vmatprep.subr.mxu0 0.0
  %1801 = vmatpush1.msra.mxu0 0.0
  %1802 = vmatprep.subr.mxu0 0.0
  %1803 = vmatpush1.msra.mxu0 0.0
  %1804 = vmatprep.subr.mxu0 0.0
  %1805 = vmatpush1.msra.mxu0 0.0
  %1806 = vmatprep.subr.mxu0 0.0
  %1807 = vmatpush1.msra.mxu0 0.0
  %1808 = vmatprep.subr.mxu0 0.0
  %1809 = vmatpush1.msra.mxu0 0.0
  %1810 = vmatprep.subr.mxu0 0.0
  %1811 = vmatpush1.msra.mxu0 0.0
  %1812 = vmatprep.subr.mxu0 0.0
  %1813 = vmatpush1.msra.mxu0 0.0
  %1814 = vmatprep.subr.mxu0 0.0
  %1815 = vmatpush1.msra.mxu0 0.0
  %1816 = vmatprep.subr.mxu0 0.0
  %1817 = vmatpush1.msra.mxu0 0.0
  %1818 = vmatprep.subr.mxu0 0.0
  %1819 = vmatpush1.msra.mxu0 0.0
  %1820 = vmatprep.subr.mxu0 0.0
  %1821 = vmatpush1.msra.mxu0 0.0
  %1822 = vmatprep.subr.mxu0 0.0
  %1823 = vmatpush1.msra.mxu0 0.0
  %1824 = vmatprep.subr.mxu0 0.0
  %1825 = vmatpush1.msra.mxu0 %v1789
  %1826 = vmatprep.subr.mxu0 0.0
  %1827 = vmatpush2.msra.mxu0 0.0
  %1828 = vmatprep.subr.mxu0 0.0
  %1829 = vmatpush2.msra.mxu0 0.0
  %1830 = vmatprep.subr.mxu0 0.0
  %1831 = vmatpush2.msra.mxu0 0.0
  %1832 = vmatprep.subr.mxu0 0.0
  %1833 = vmatpush2.msra.mxu0 0.0
  %1834 = vmatprep.subr.mxu0 0.0
  %1835 = vmatpush2.msra.mxu0 0.0
  %1836 = vmatprep.subr.mxu0 0.0
  %1837 = vmatpush2.msra.mxu0 0.0
  %1838 = vmatprep.subr.mxu0 0.0
  %1839 = vmatpush2.msra.mxu0 0.0
  %1840 = vmatprep.subr.mxu0 0.0
  %1841 = vmatpush2.msra.mxu0 0.0
  %1842 = vmatprep.subr.mxu0 0.0
  %1843 = vmatpush2.msra.mxu0 0.0
  %1844 = vmatprep.subr.mxu0 0.0
  %1845 = vmatpush2.msra.mxu0 0.0
  %1846 = vmatprep.subr.mxu0 0.0
  %1847 = vmatpush2.msra.mxu0 0.0
  %1848 = vmatprep.subr.mxu0 0.0
  %1849 = vmatpush2.msra.mxu0 0.0
  %1850 = vmatprep.subr.mxu0 0.0
  %1851 = vmatpush2.msra.mxu0 0.0
  %1852 = vmatprep.subr.mxu0 0.0
  %1853 = vmatpush2.msra.mxu0 0.0
  %1854 = vmatprep.subr.mxu0 0.0
  %1855 = vmatpush2.msra.mxu0 0.0
  %1856 = vmatprep.subr.mxu0 0.0
  %1857 = vmatpush2.msra.mxu0 0.0
  %1858 = vmatprep.mubr.f32.mxu0 0.0
  %1859 = vmatmul.mubr.f32.gmra.mxu0 %v1792
  %v1860 = vpop.f32.mrf.mxu0
  %v1861 = vadd.f32 0.0, %v1860
  %v1862 = vpop.f32.mrf.mxu0
  %1863 = vdwg.mxu0
  %s1864 = scalar_lea.vmem %s7, 24
  %v1865 = vld [vmem:[%s1864] sm:$0xff]
  %v1867 = vsel %vm66, %v1785, 0
  %v1870 = vsel %vm66, %v1861, 0
  %1872 = vmatprep.subr.mxu0 0.0
  %1873 = vmatpush1.msra.mxu0 0.0
  %1874 = vmatprep.subr.mxu0 0.0
  %1875 = vmatpush1.msra.mxu0 0.0
  %1876 = vmatprep.subr.mxu0 0.0
  %1877 = vmatpush1.msra.mxu0 0.0
  %1878 = vmatprep.subr.mxu0 0.0
  %1879 = vmatpush1.msra.mxu0 0.0
  %1880 = vmatprep.subr.mxu0 0.0
  %1881 = vmatpush1.msra.mxu0 0.0
  %1882 = vmatprep.subr.mxu0 0.0
  %1883 = vmatpush1.msra.mxu0 0.0
  %1884 = vmatprep.subr.mxu0 0.0
  %1885 = vmatpush1.msra.mxu0 0.0
  %1886 = vmatprep.subr.mxu0 0.0
  %1887 = vmatpush1.msra.mxu0 0.0
  %1888 = vmatprep.subr.mxu0 0.0
  %1889 = vmatpush1.msra.mxu0 0.0
  %1890 = vmatprep.subr.mxu0 0.0
  %1891 = vmatpush1.msra.mxu0 0.0
  %1892 = vmatprep.subr.mxu0 0.0
  %1893 = vmatpush1.msra.mxu0 0.0
  %1894 = vmatprep.subr.mxu0 0.0
  %1895 = vmatpush1.msra.mxu0 0.0
  %1896 = vmatprep.subr.mxu0 0.0
  %1897 = vmatpush1.msra.mxu0 0.0
  %1898 = vmatprep.subr.mxu0 0.0
  %1899 = vmatpush1.msra.mxu0 0.0
  %1900 = vmatprep.subr.mxu0 0.0
  %1901 = vmatpush1.msra.mxu0 0.0
  %1902 = vmatprep.subr.mxu0 0.0
  %1903 = vmatpush1.msra.mxu0 %v1865
  %1904 = vmatprep.subr.mxu0 0.0
  %1905 = vmatpush2.msra.mxu0 0.0
  %1906 = vmatprep.subr.mxu0 0.0
  %1907 = vmatpush2.msra.mxu0 0.0
  %1908 = vmatprep.subr.mxu0 0.0
  %1909 = vmatpush2.msra.mxu0 0.0
  %1910 = vmatprep.subr.mxu0 0.0
  %1911 = vmatpush2.msra.mxu0 0.0
  %1912 = vmatprep.subr.mxu0 0.0
  %1913 = vmatpush2.msra.mxu0 0.0
  %1914 = vmatprep.subr.mxu0 0.0
  %1915 = vmatpush2.msra.mxu0 0.0
  %1916 = vmatprep.subr.mxu0 0.0
  %1917 = vmatpush2.msra.mxu0 0.0
  %1918 = vmatprep.subr.mxu0 0.0
  %1919 = vmatpush2.msra.mxu0 0.0
  %1920 = vmatprep.subr.mxu0 0.0
  %1921 = vmatpush2.msra.mxu0 0.0
  %1922 = vmatprep.subr.mxu0 0.0
  %1923 = vmatpush2.msra.mxu0 0.0
  %1924 = vmatprep.subr.mxu0 0.0
  %1925 = vmatpush2.msra.mxu0 0.0
  %1926 = vmatprep.subr.mxu0 0.0
  %1927 = vmatpush2.msra.mxu0 0.0
  %1928 = vmatprep.subr.mxu0 0.0
  %1929 = vmatpush2.msra.mxu0 0.0
  %1930 = vmatprep.subr.mxu0 0.0
  %1931 = vmatpush2.msra.mxu0 0.0
  %1932 = vmatprep.subr.mxu0 0.0
  %1933 = vmatpush2.msra.mxu0 0.0
  %1934 = vmatprep.subr.mxu0 0.0
  %1935 = vmatpush2.msra.mxu0 0.0
  %1936 = vmatprep.mubr.f32.mxu0 0.0
  %1937 = vmatmul.mubr.f32.gmra.mxu0 %v1867
  %v1938 = vpop.f32.mrf.mxu0
  %v1939 = vadd.f32 0.0, %v1938
  %v1940 = vpop.f32.mrf.mxu0
  %1941 = vmatprep.mubr.f32.mxu0 0.0
  %1942 = vmatmul.mubr.f32.gmra.mxu0 %v1870
  %v1943 = vpop.f32.mrf.mxu0
  %v1944 = vadd.f32 0.0, %v1943
  %v1945 = vpop.f32.mrf.mxu0
  %1946 = vdwg.mxu0
  %v1947 = vadd.f32 %v1532, %v1939
  %v1948 = vadd.f32 %v1533, %v1944
  %v1949 = vadd.f32 %v140, %v1947
  %v1950 = vadd.f32 %v145, %v1948
  %v1951 = vld [vmem:[%s8] sm:$0x1]
  %v1953 = vlaneseq
  %v1954 = vshrl.u32 %v1953, 7
  %v1955 = vsub.s32 0, %v1954
  %v1956 = vrot.slane %v1951, %v1955
  %v1958 = vadd.f32 %v1949, %v1956
  %v1959 = vadd.f32 %v1950, %v1956
  %v1960 = vld [vmem:[%s9] sm:$0x1]
  %v1961 = vld [vmem:[%s10] sm:$0x1]
  %v1962 = vsel %vm156, %v1958, 0.0
  %1963 = vadd.xlane.f32.xlu0 %v1962
  %v1964 = vpop.xlane.xlu0 %1963
  %v1965 = vsel %vm156, %v1959, 0.0
  %1966 = vadd.xlane.f32.xlu0 %v1965
  %v1967 = vpop.xlane.xlu0 %1966
  %v1968 = vmul.f32 %v1964, %v163
  %v1969 = vmul.f32 %v1967, %v163
  %v1970 = vmul.f32 %v1958, %v1958
  %v1971 = vmul.f32 %v1959, %v1959
  %v1972 = vsel %vm156, %v1970, 0.0
  %1973 = vadd.xlane.f32.xlu0 %v1972
  %v1974 = vpop.xlane.xlu0 %1973
  %v1975 = vsel %vm156, %v1971, 0.0
  %1976 = vadd.xlane.f32.xlu0 %v1975
  %v1977 = vpop.xlane.xlu0 %1976
  %v1978 = vmul.f32 %v1974, %v163
  %v1979 = vmul.f32 %v1977, %v163
  %v1980 = vmul.f32 %v1968, %v1968
  %v1981 = vmul.f32 %v1969, %v1969
  %v1982 = vsub.f32 %v1978, %v1980
  %v1983 = vsub.f32 %v1979, %v1981
  %v1984 = vsub.f32 %v1958, %v1968
  %v1985 = vsub.f32 %v1959, %v1969
  %v1986 = vadd.f32 %v1982, 1e-05
  %v1987 = vadd.f32 %v1983, 1e-05
  %v1988 = vrsqrt.pop %v1986
  %v1989 = vrsqrt.pop %v1987
  %v1990 = vmul.f32 %v1984, %v1988
  %v1991 = vmul.f32 %v1985, %v1989
  %v1993 = vlaneseq
  %v1994 = vshrl.u32 %v1993, 7
  %v1995 = vsub.s32 0, %v1994
  %v1996 = vrot.slane %v1960, %v1995
  %v1998 = vmul.f32 %v1990, %v1996
  %v1999 = vmul.f32 %v1991, %v1996
  %v2001 = vlaneseq
  %v2002 = vshrl.u32 %v2001, 7
  %v2003 = vsub.s32 0, %v2002
  %v2004 = vrot.slane %v1961, %v2003
  %v2006 = vadd.f32 %v1998, %v2004
  %v2007 = vadd.f32 %v1999, %v2004
  %v2008 = vld [vmem:[%s11] sm:$0xff]
  %v2009 = vld [vmem:[%s11 + $0x8] sm:$0xff]
  %v2010 = vld [vmem:[%s11 + $0x10] sm:$0xff]
  %v2011 = vld [vmem:[%s11 + $0x18] sm:$0xff]
  %v2012 = vld [vmem:[%s12] sm:$0x1]
  %v2014 = vlaneseq
  %v2015 = vshrl.u32 %v2014, 7
  %v2016 = vsub.s32 0, %v2015
  %v2017 = vrot.slane %v2012, %v2016
  %v2020 = vsel %vm156, %v2006, 0
  %v2023 = vsel %vm156, %v2007, 0
  %2025 = vmatprep.subr.mxu0 0.0
  %2026 = vmatpush1.msra.mxu0 0.0
  %2027 = vmatprep.subr.mxu0 0.0
  %2028 = vmatpush1.msra.mxu0 0.0
  %2029 = vmatprep.subr.mxu0 0.0
  %2030 = vmatpush1.msra.mxu0 0.0
  %2031 = vmatprep.subr.mxu0 0.0
  %2032 = vmatpush1.msra.mxu0 0.0
  %2033 = vmatprep.subr.mxu0 0.0
  %2034 = vmatpush1.msra.mxu0 0.0
  %2035 = vmatprep.subr.mxu0 0.0
  %2036 = vmatpush1.msra.mxu0 0.0
  %2037 = vmatprep.subr.mxu0 0.0
  %2038 = vmatpush1.msra.mxu0 0.0
  %2039 = vmatprep.subr.mxu0 0.0
  %2040 = vmatpush1.msra.mxu0 0.0
  %2041 = vmatprep.subr.mxu0 0.0
  %2042 = vmatpush1.msra.mxu0 0.0
  %2043 = vmatprep.subr.mxu0 0.0
  %2044 = vmatpush1.msra.mxu0 0.0
  %2045 = vmatprep.subr.mxu0 0.0
  %2046 = vmatpush1.msra.mxu0 0.0
  %2047 = vmatprep.subr.mxu0 0.0
  %2048 = vmatpush1.msra.mxu0 0.0
  %2049 = vmatprep.subr.mxu0 0.0
  %2050 = vmatpush1.msra.mxu0 %v2011
  %2051 = vmatprep.subr.mxu0 0.0
  %2052 = vmatpush1.msra.mxu0 %v2010
  %2053 = vmatprep.subr.mxu0 0.0
  %2054 = vmatpush1.msra.mxu0 %v2009
  %2055 = vmatprep.subr.mxu0 0.0
  %2056 = vmatpush1.msra.mxu0 %v2008
  %2057 = vmatprep.subr.mxu0 0.0
  %2058 = vmatpush2.msra.mxu0 0.0
  %2059 = vmatprep.subr.mxu0 0.0
  %2060 = vmatpush2.msra.mxu0 0.0
  %2061 = vmatprep.subr.mxu0 0.0
  %2062 = vmatpush2.msra.mxu0 0.0
  %2063 = vmatprep.subr.mxu0 0.0
  %2064 = vmatpush2.msra.mxu0 0.0
  %2065 = vmatprep.subr.mxu0 0.0
  %2066 = vmatpush2.msra.mxu0 0.0
  %2067 = vmatprep.subr.mxu0 0.0
  %2068 = vmatpush2.msra.mxu0 0.0
  %2069 = vmatprep.subr.mxu0 0.0
  %2070 = vmatpush2.msra.mxu0 0.0
  %2071 = vmatprep.subr.mxu0 0.0
  %2072 = vmatpush2.msra.mxu0 0.0
  %2073 = vmatprep.subr.mxu0 0.0
  %2074 = vmatpush2.msra.mxu0 0.0
  %2075 = vmatprep.subr.mxu0 0.0
  %2076 = vmatpush2.msra.mxu0 0.0
  %2077 = vmatprep.subr.mxu0 0.0
  %2078 = vmatpush2.msra.mxu0 0.0
  %2079 = vmatprep.subr.mxu0 0.0
  %2080 = vmatpush2.msra.mxu0 0.0
  %2081 = vmatprep.subr.mxu0 0.0
  %2082 = vmatpush2.msra.mxu0 0.0
  %2083 = vmatprep.subr.mxu0 0.0
  %2084 = vmatpush2.msra.mxu0 0.0
  %2085 = vmatprep.subr.mxu0 0.0
  %2086 = vmatpush2.msra.mxu0 0.0
  %2087 = vmatprep.subr.mxu0 0.0
  %2088 = vmatpush2.msra.mxu0 0.0
  %2089 = vmatprep.mubr.f32.mxu0 0.0
  %2090 = vmatmul.mubr.f32.gmra.mxu0 %v2020
  %v2091 = vpop.f32.mrf.mxu0
  %v2092 = vadd.f32 %v2017, %v2091
  %v2093 = vpop.f32.mrf.mxu0
  %2094 = vmatprep.mubr.f32.mxu0 0.0
  %2095 = vmatmul.mubr.f32.gmra.mxu0 %v2023
  %v2096 = vpop.f32.mrf.mxu0
  %v2097 = vadd.f32 %v2017, %v2096
  %v2098 = vpop.f32.mrf.mxu0
  %2099 = vdwg.mxu0
  %v2100 = vmul.f32 %v2092, 0.5
  %v2101 = vmul.f32 %v2097, 0.5
  %v2102 = vmul.f32 %v2092, 0.044715
  %v2103 = vmul.f32 %v2097, 0.044715
  %v2104 = vmul.f32 %v2102, %v2092
  %v2105 = vmul.f32 %v2103, %v2097
  %v2106 = vmul.f32 %v2104, %v2092
  %v2107 = vmul.f32 %v2105, %v2097
  %v2108 = vadd.f32 %v2092, %v2106
  %v2109 = vadd.f32 %v2097, %v2107
  %v2110 = vmul.f32 %v2108, 0.7978846
  %v2111 = vmul.f32 %v2109, 0.7978846
  %v2112 = vtanh.pop %v2110
  %v2113 = vtanh.pop %v2111
  %v2114 = vadd.f32 %v2112, 1.0
  %v2115 = vadd.f32 %v2113, 1.0
  %v2116 = vmul.f32 %v2100, %v2114
  %v2117 = vmul.f32 %v2101, %v2115
  %v2118 = vld [vmem:[%s13] sm:$0xff]
  %v2119 = vld [vmem:[%s13 + $0x8] sm:$0xff]
  %v2120 = vld [vmem:[%s13 + $0x10] sm:$0xff]
  %v2121 = vld [vmem:[%s13 + $0x18] sm:$0xff]
  %v2122 = vld [vmem:[%s13 + $0x20] sm:$0xff]
  %v2123 = vld [vmem:[%s13 + $0x28] sm:$0xff]
  %v2124 = vld [vmem:[%s13 + $0x30] sm:$0xff]
  %v2125 = vld [vmem:[%s13 + $0x38] sm:$0xff]
  %v2126 = vld [vmem:[%s13 + $0x40] sm:$0xff]
  %v2127 = vld [vmem:[%s13 + $0x48] sm:$0xff]
  %v2128 = vld [vmem:[%s13 + $0x50] sm:$0xff]
  %v2129 = vld [vmem:[%s13 + $0x58] sm:$0xff]
  %v2130 = vld [vmem:[%s13 + $0x60] sm:$0xff]
  %v2131 = vld [vmem:[%s13 + $0x68] sm:$0xff]
  %v2132 = vld [vmem:[%s13 + $0x70] sm:$0xff]
  %v2133 = vld [vmem:[%s13 + $0x78] sm:$0xff]
  %v2134 = vld [vmem:[%s14] sm:$0x1]
  %v2136 = vlaneseq
  %v2137 = vshrl.u32 %v2136, 7
  %v2138 = vsub.s32 0, %v2137
  %v2139 = vrot.slane %v2134, %v2138
  %2141 = vmatprep.subr.mxu0 0.0
  %2142 = vmatpush1.msra.mxu0 %v2133
  %2143 = vmatprep.subr.mxu0 0.0
  %2144 = vmatpush1.msra.mxu0 %v2132
  %2145 = vmatprep.subr.mxu0 0.0
  %2146 = vmatpush1.msra.mxu0 %v2131
  %2147 = vmatprep.subr.mxu0 0.0
  %2148 = vmatpush1.msra.mxu0 %v2130
  %2149 = vmatprep.subr.mxu0 0.0
  %2150 = vmatpush1.msra.mxu0 %v2129
  %2151 = vmatprep.subr.mxu0 0.0
  %2152 = vmatpush1.msra.mxu0 %v2128
  %2153 = vmatprep.subr.mxu0 0.0
  %2154 = vmatpush1.msra.mxu0 %v2127
  %2155 = vmatprep.subr.mxu0 0.0
  %2156 = vmatpush1.msra.mxu0 %v2126
  %2157 = vmatprep.subr.mxu0 0.0
  %2158 = vmatpush1.msra.mxu0 %v2125
  %2159 = vmatprep.subr.mxu0 0.0
  %2160 = vmatpush1.msra.mxu0 %v2124
  %2161 = vmatprep.subr.mxu0 0.0
  %2162 = vmatpush1.msra.mxu0 %v2123
  %2163 = vmatprep.subr.mxu0 0.0
  %2164 = vmatpush1.msra.mxu0 %v2122
  %2165 = vmatprep.subr.mxu0 0.0
  %2166 = vmatpush1.msra.mxu0 %v2121
  %2167 = vmatprep.subr.mxu0 0.0
  %2168 = vmatpush1.msra.mxu0 %v2120
  %2169 = vmatprep.subr.mxu0 0.0
  %2170 = vmatpush1.msra.mxu0 %v2119
  %2171 = vmatprep.subr.mxu0 0.0
  %2172 = vmatpush1.msra.mxu0 %v2118
  %2173 = vmatprep.subr.mxu0 0.0
  %2174 = vmatpush2.msra.mxu0 0.0
  %2175 = vmatprep.subr.mxu0 0.0
  %2176 = vmatpush2.msra.mxu0 0.0
  %2177 = vmatprep.subr.mxu0 0.0
  %2178 = vmatpush2.msra.mxu0 0.0
  %2179 = vmatprep.subr.mxu0 0.0
  %2180 = vmatpush2.msra.mxu0 0.0
  %2181 = vmatprep.subr.mxu0 0.0
  %2182 = vmatpush2.msra.mxu0 0.0
  %2183 = vmatprep.subr.mxu0 0.0
  %2184 = vmatpush2.msra.mxu0 0.0
  %2185 = vmatprep.subr.mxu0 0.0
  %2186 = vmatpush2.msra.mxu0 0.0
  %2187 = vmatprep.subr.mxu0 0.0
  %2188 = vmatpush2.msra.mxu0 0.0
  %2189 = vmatprep.subr.mxu0 0.0
  %2190 = vmatpush2.msra.mxu0 0.0
  %2191 = vmatprep.subr.mxu0 0.0
  %2192 = vmatpush2.msra.mxu0 0.0
  %2193 = vmatprep.subr.mxu0 0.0
  %2194 = vmatpush2.msra.mxu0 0.0
  %2195 = vmatprep.subr.mxu0 0.0
  %2196 = vmatpush2.msra.mxu0 0.0
  %2197 = vmatprep.subr.mxu0 0.0
  %2198 = vmatpush2.msra.mxu0 0.0
  %2199 = vmatprep.subr.mxu0 0.0
  %2200 = vmatpush2.msra.mxu0 0.0
  %2201 = vmatprep.subr.mxu0 0.0
  %2202 = vmatpush2.msra.mxu0 0.0
  %2203 = vmatprep.subr.mxu0 0.0
  %2204 = vmatpush2.msra.mxu0 0.0
  %2205 = vmatprep.mubr.f32.mxu0 0.0
  %2206 = vmatmul.mubr.f32.gmra.mxu0 %v2116
  %v2207 = vpop.f32.mrf.mxu0
  %v2208 = vadd.f32 %v2139, %v2207
  %v2209 = vpop.f32.mrf.mxu0
  %2210 = vmatprep.mubr.f32.mxu0 0.0
  %2211 = vmatmul.mubr.f32.gmra.mxu0 %v2117
  %v2212 = vpop.f32.mrf.mxu0
  %v2213 = vadd.f32 %v2139, %v2212
  %v2214 = vpop.f32.mrf.mxu0
  %2215 = vdwg.mxu0
  %v2216 = vadd.f32 %v1958, %v2208
  %v2217 = vadd.f32 %v1959, %v2213
  %s2218 = scalar_lea.vmem %s3, 1
  %v2219 = vld [vmem:[%s2218] sm:$0x1]
  %s2220 = scalar_lea.vmem %s4, 1
  %v2221 = vld [vmem:[%s2220] sm:$0x1]
  %v2222 = vsel %vm156, %v2216, 0.0
  %2223 = vadd.xlane.f32.xlu0 %v2222
  %v2224 = vpop.xlane.xlu0 %2223
  %v2225 = vsel %vm156, %v2217, 0.0
  %2226 = vadd.xlane.f32.xlu0 %v2225
  %v2227 = vpop.xlane.xlu0 %2226
  %v2228 = vmul.f32 %v2224, %v163
  %v2229 = vmul.f32 %v2227, %v163
  %v2230 = vmul.f32 %v2216, %v2216
  %v2231 = vmul.f32 %v2217, %v2217
  %v2232 = vsel %vm156, %v2230, 0.0
  %2233 = vadd.xlane.f32.xlu0 %v2232
  %v2234 = vpop.xlane.xlu0 %2233
  %v2235 = vsel %vm156, %v2231, 0.0
  %2236 = vadd.xlane.f32.xlu0 %v2235
  %v2237 = vpop.xlane.xlu0 %2236
  %v2238 = vmul.f32 %v2234, %v163
  %v2239 = vmul.f32 %v2237, %v163
  %v2240 = vmul.f32 %v2228, %v2228
  %v2241 = vmul.f32 %v2229, %v2229
  %v2242 = vsub.f32 %v2238, %v2240
  %v2243 = vsub.f32 %v2239, %v2241
  %v2244 = vsub.f32 %v2216, %v2228
  %v2245 = vsub.f32 %v2217, %v2229
  %v2246 = vadd.f32 %v2242, 1e-05
  %v2247 = vadd.f32 %v2243, 1e-05
  %v2248 = vrsqrt.pop %v2246
  %v2249 = vrsqrt.pop %v2247
  %v2250 = vmul.f32 %v2244, %v2248
  %v2251 = vmul.f32 %v2245, %v2249
  %v2253 = vlaneseq
  %v2254 = vshrl.u32 %v2253, 7
  %v2255 = vsub.s32 0, %v2254
  %v2256 = vrot.slane %v2219, %v2255
  %v2258 = vmul.f32 %v2250, %v2256
  %v2259 = vmul.f32 %v2251, %v2256
  %v2261 = vlaneseq
  %v2262 = vshrl.u32 %v2261, 7
  %v2263 = vsub.s32 0, %v2262
  %v2264 = vrot.slane %v2221, %v2263
  %v2266 = vadd.f32 %v2258, %v2264
  %v2267 = vadd.f32 %v2259, %v2264
  %s2268 = scalar_lea.vmem %s5, 32
  %v2269 = vld [vmem:[%s2268] sm:$0xff]
  %v2270 = vld [vmem:[%s2268 + $0x8] sm:$0xff]
  %v2271 = vld [vmem:[%s2268 + $0x10] sm:$0xff]
  %v2272 = vld [vmem:[%s2268 + $0x18] sm:$0xff]
  %s2273 = scalar_lea.vmem %s6, 1
  %v2274 = vld [vmem:[%s2273] sm:$0x1]
  %v2276 = vlaneseq
  %v2277 = vshrl.u32 %v2276, 7
  %v2278 = vsub.s32 0, %v2277
  %v2279 = vrot.slane %v2274, %v2278
  %v2282 = vsel %vm156, %v2266, 0
  %v2285 = vsel %vm156, %v2267, 0
  %2287 = vmatprep.subr.mxu0 0.0
  %2288 = vmatpush1.msra.mxu0 0.0
  %2289 = vmatprep.subr.mxu0 0.0
  %2290 = vmatpush1.msra.mxu0 0.0
  %2291 = vmatprep.subr.mxu0 0.0
  %2292 = vmatpush1.msra.mxu0 0.0
  %2293 = vmatprep.subr.mxu0 0.0
  %2294 = vmatpush1.msra.mxu0 0.0
  %2295 = vmatprep.subr.mxu0 0.0
  %2296 = vmatpush1.msra.mxu0 0.0
  %2297 = vmatprep.subr.mxu0 0.0
  %2298 = vmatpush1.msra.mxu0 0.0
  %2299 = vmatprep.subr.mxu0 0.0
  %2300 = vmatpush1.msra.mxu0 0.0
  %2301 = vmatprep.subr.mxu0 0.0
  %2302 = vmatpush1.msra.mxu0 0.0
  %2303 = vmatprep.subr.mxu0 0.0
  %2304 = vmatpush1.msra.mxu0 0.0
  %2305 = vmatprep.subr.mxu0 0.0
  %2306 = vmatpush1.msra.mxu0 0.0
  %2307 = vmatprep.subr.mxu0 0.0
  %2308 = vmatpush1.msra.mxu0 0.0
  %2309 = vmatprep.subr.mxu0 0.0
  %2310 = vmatpush1.msra.mxu0 0.0
  %2311 = vmatprep.subr.mxu0 0.0
  %2312 = vmatpush1.msra.mxu0 %v2272
  %2313 = vmatprep.subr.mxu0 0.0
  %2314 = vmatpush1.msra.mxu0 %v2271
  %2315 = vmatprep.subr.mxu0 0.0
  %2316 = vmatpush1.msra.mxu0 %v2270
  %2317 = vmatprep.subr.mxu0 0.0
  %2318 = vmatpush1.msra.mxu0 %v2269
  %2319 = vmatprep.subr.mxu0 0.0
  %2320 = vmatpush2.msra.mxu0 0.0
  %2321 = vmatprep.subr.mxu0 0.0
  %2322 = vmatpush2.msra.mxu0 0.0
  %2323 = vmatprep.subr.mxu0 0.0
  %2324 = vmatpush2.msra.mxu0 0.0
  %2325 = vmatprep.subr.mxu0 0.0
  %2326 = vmatpush2.msra.mxu0 0.0
  %2327 = vmatprep.subr.mxu0 0.0
  %2328 = vmatpush2.msra.mxu0 0.0
  %2329 = vmatprep.subr.mxu0 0.0
  %2330 = vmatpush2.msra.mxu0 0.0
  %2331 = vmatprep.subr.mxu0 0.0
  %2332 = vmatpush2.msra.mxu0 0.0
  %2333 = vmatprep.subr.mxu0 0.0
  %2334 = vmatpush2.msra.mxu0 0.0
  %2335 = vmatprep.subr.mxu0 0.0
  %2336 = vmatpush2.msra.mxu0 0.0
  %2337 = vmatprep.subr.mxu0 0.0
  %2338 = vmatpush2.msra.mxu0 0.0
  %2339 = vmatprep.subr.mxu0 0.0
  %2340 = vmatpush2.msra.mxu0 0.0
  %2341 = vmatprep.subr.mxu0 0.0
  %2342 = vmatpush2.msra.mxu0 0.0
  %2343 = vmatprep.subr.mxu0 0.0
  %2344 = vmatpush2.msra.mxu0 0.0
  %2345 = vmatprep.subr.mxu0 0.0
  %2346 = vmatpush2.msra.mxu0 0.0
  %2347 = vmatprep.subr.mxu0 0.0
  %2348 = vmatpush2.msra.mxu0 0.0
  %2349 = vmatprep.subr.mxu0 0.0
  %2350 = vmatpush2.msra.mxu0 0.0
  %2351 = vmatprep.mubr.f32.mxu0 0.0
  %2352 = vmatmul.mubr.f32.gmra.mxu0 %v2282
  %v2353 = vpop.f32.mrf.mxu0
  %v2354 = vadd.f32 %v2279, %v2353
  %v2355 = vpop.f32.mrf.mxu0
  %2356 = vmatprep.mubr.f32.mxu0 0.0
  %2357 = vmatmul.mubr.f32.gmra.mxu0 %v2285
  %v2358 = vpop.f32.mrf.mxu0
  %v2359 = vadd.f32 %v2279, %v2358
  %v2360 = vpop.f32.mrf.mxu0
  %2361 = vdwg.mxu0
  %2363 = vrot.lane.b32.xlu0 %v2354, 96
  %v2364 = vpop.permute.xlu0 %2363
  %v2365 = vsel %vm66, %v2354, 0
  %v2367 = vsel %vm66, %v2364, 0
  %2369 = vmatprep.subr.mxu0 0.0
  %2370 = vmatpush1.xpose.msra.mxu0 0.0
  %2371 = vmatprep.subr.mxu0 0.0
  %2372 = vmatpush1.xpose.msra.mxu0 0.0
  %2373 = vmatprep.subr.mxu0 0.0
  %2374 = vmatpush1.xpose.msra.mxu0 0.0
  %2375 = vmatprep.subr.mxu0 0.0
  %2376 = vmatpush1.xpose.msra.mxu0 0.0
  %2377 = vmatprep.subr.mxu0 0.0
  %2378 = vmatpush1.xpose.msra.mxu0 0.0
  %2379 = vmatprep.subr.mxu0 0.0
  %2380 = vmatpush1.xpose.msra.mxu0 0.0
  %2381 = vmatprep.subr.mxu0 0.0
  %2382 = vmatpush1.xpose.msra.mxu0 0.0
  %2383 = vmatprep.subr.mxu0 0.0
  %2384 = vmatpush1.xpose.msra.mxu0 0.0
  %2385 = vmatprep.subr.mxu0 0.0
  %2386 = vmatpush1.xpose.msra.mxu0 0.0
  %2387 = vmatprep.subr.mxu0 0.0
  %2388 = vmatpush1.xpose.msra.mxu0 0.0
  %2389 = vmatprep.subr.mxu0 0.0
  %2390 = vmatpush1.xpose.msra.mxu0 0.0
  %2391 = vmatprep.subr.mxu0 0.0
  %2392 = vmatpush1.xpose.msra.mxu0 0.0
  %2393 = vmatprep.subr.mxu0 0.0
  %2394 = vmatpush1.xpose.msra.mxu0 0.0
  %2395 = vmatprep.subr.mxu0 0.0
  %2396 = vmatpush1.xpose.msra.mxu0 0.0
  %2397 = vmatprep.subr.mxu0 0.0
  %2398 = vmatpush1.xpose.msra.mxu0 0.0
  %2399 = vmatprep.subr.mxu0 0.0
  %2400 = vmatpush1.xpose.msra.mxu0 %v2367
  %2401 = vmatprep.subr.mxu0 0.0
  %2402 = vmatpush2.xpose.msra.mxu0 0.0
  %2403 = vmatprep.subr.mxu0 0.0
  %2404 = vmatpush2.xpose.msra.mxu0 0.0
  %2405 = vmatprep.subr.mxu0 0.0
  %2406 = vmatpush2.xpose.msra.mxu0 0.0
  %2407 = vmatprep.subr.mxu0 0.0
  %2408 = vmatpush2.xpose.msra.mxu0 0.0
  %2409 = vmatprep.subr.mxu0 0.0
  %2410 = vmatpush2.xpose.msra.mxu0 0.0
  %2411 = vmatprep.subr.mxu0 0.0
  %2412 = vmatpush2.xpose.msra.mxu0 0.0
  %2413 = vmatprep.subr.mxu0 0.0
  %2414 = vmatpush2.xpose.msra.mxu0 0.0
  %2415 = vmatprep.subr.mxu0 0.0
  %2416 = vmatpush2.xpose.msra.mxu0 0.0
  %2417 = vmatprep.subr.mxu0 0.0
  %2418 = vmatpush2.xpose.msra.mxu0 0.0
  %2419 = vmatprep.subr.mxu0 0.0
  %2420 = vmatpush2.xpose.msra.mxu0 0.0
  %2421 = vmatprep.subr.mxu0 0.0
  %2422 = vmatpush2.xpose.msra.mxu0 0.0
  %2423 = vmatprep.subr.mxu0 0.0
  %2424 = vmatpush2.xpose.msra.mxu0 0.0
  %2425 = vmatprep.subr.mxu0 0.0
  %2426 = vmatpush2.xpose.msra.mxu0 0.0
  %2427 = vmatprep.subr.mxu0 0.0
  %2428 = vmatpush2.xpose.msra.mxu0 0.0
  %2429 = vmatprep.subr.mxu0 0.0
  %2430 = vmatpush2.xpose.msra.mxu0 0.0
  %2431 = vmatprep.subr.mxu0 0.0
  %2432 = vmatpush2.xpose.msra.mxu0 0.0
  %2433 = vmatprep.mubr.f32.mxu0 0.0
  %2434 = vmatmul.mubr.f32.gmra.mxu0 %v2365
  %v2435 = vpop.f32.mrf.mxu0
  %v2436 = vadd.f32 %v153, %v2435
  %v2437 = vpop.f32.mrf.mxu0
  %2438 = vdwg.mxu0
  %2440 = vrot.lane.b32.xlu0 %v2359, 96
  %v2441 = vpop.permute.xlu0 %2440
  %v2442 = vsel %vm66, %v2359, 0
  %v2444 = vsel %vm66, %v2441, 0
  %2446 = vmatprep.subr.mxu0 0.0
  %2447 = vmatpush1.xpose.msra.mxu0 0.0
  %2448 = vmatprep.subr.mxu0 0.0
  %2449 = vmatpush1.xpose.msra.mxu0 0.0
  %2450 = vmatprep.subr.mxu0 0.0
  %2451 = vmatpush1.xpose.msra.mxu0 0.0
  %2452 = vmatprep.subr.mxu0 0.0
  %2453 = vmatpush1.xpose.msra.mxu0 0.0
  %2454 = vmatprep.subr.mxu0 0.0
  %2455 = vmatpush1.xpose.msra.mxu0 0.0
  %2456 = vmatprep.subr.mxu0 0.0
  %2457 = vmatpush1.xpose.msra.mxu0 0.0
  %2458 = vmatprep.subr.mxu0 0.0
  %2459 = vmatpush1.xpose.msra.mxu0 0.0
  %2460 = vmatprep.subr.mxu0 0.0
  %2461 = vmatpush1.xpose.msra.mxu0 0.0
  %2462 = vmatprep.subr.mxu0 0.0
  %2463 = vmatpush1.xpose.msra.mxu0 0.0
  %2464 = vmatprep.subr.mxu0 0.0
  %2465 = vmatpush1.xpose.msra.mxu0 0.0
  %2466 = vmatprep.subr.mxu0 0.0
  %2467 = vmatpush1.xpose.msra.mxu0 0.0
  %2468 = vmatprep.subr.mxu0 0.0
  %2469 = vmatpush1.xpose.msra.mxu0 0.0
  %2470 = vmatprep.subr.mxu0 0.0
  %2471 = vmatpush1.xpose.msra.mxu0 0.0
  %2472 = vmatprep.subr.mxu0 0.0
  %2473 = vmatpush1.xpose.msra.mxu0 0.0
  %2474 = vmatprep.subr.mxu0 0.0
  %2475 = vmatpush1.xpose.msra.mxu0 0.0
  %2476 = vmatprep.subr.mxu0 0.0
  %2477 = vmatpush1.xpose.msra.mxu0 %v2444
  %2478 = vmatprep.subr.mxu0 0.0
  %2479 = vmatpush2.xpose.msra.mxu0 0.0
  %2480 = vmatprep.subr.mxu0 0.0
  %2481 = vmatpush2.xpose.msra.mxu0 0.0
  %2482 = vmatprep.subr.mxu0 0.0
  %2483 = vmatpush2.xpose.msra.mxu0 0.0
  %2484 = vmatprep.subr.mxu0 0.0
  %2485 = vmatpush2.xpose.msra.mxu0 0.0
  %2486 = vmatprep.subr.mxu0 0.0
  %2487 = vmatpush2.xpose.msra.mxu0 0.0
  %2488 = vmatprep.subr.mxu0 0.0
  %2489 = vmatpush2.xpose.msra.mxu0 0.0
  %2490 = vmatprep.subr.mxu0 0.0
  %2491 = vmatpush2.xpose.msra.mxu0 0.0
  %2492 = vmatprep.subr.mxu0 0.0
  %2493 = vmatpush2.xpose.msra.mxu0 0.0
  %2494 = vmatprep.subr.mxu0 0.0
  %2495 = vmatpush2.xpose.msra.mxu0 0.0
  %2496 = vmatprep.subr.mxu0 0.0
  %2497 = vmatpush2.xpose.msra.mxu0 0.0
  %2498 = vmatprep.subr.mxu0 0.0
  %2499 = vmatpush2.xpose.msra.mxu0 0.0
  %2500 = vmatprep.subr.mxu0 0.0
  %2501 = vmatpush2.xpose.msra.mxu0 0.0
  %2502 = vmatprep.subr.mxu0 0.0
  %2503 = vmatpush2.xpose.msra.mxu0 0.0
  %2504 = vmatprep.subr.mxu0 0.0
  %2505 = vmatpush2.xpose.msra.mxu0 0.0
  %2506 = vmatprep.subr.mxu0 0.0
  %2507 = vmatpush2.xpose.msra.mxu0 0.0
  %2508 = vmatprep.subr.mxu0 0.0
  %2509 = vmatpush2.xpose.msra.mxu0 0.0
  %2510 = vmatprep.mubr.f32.mxu0 0.0
  %2511 = vmatmul.mubr.f32.gmra.mxu0 %v2442
  %v2512 = vpop.f32.mrf.mxu0
  %v2513 = vadd.f32 %v153, %v2512
  %v2514 = vpop.f32.mrf.mxu0
  %2515 = vdwg.mxu0
  %v2516 = vsel %vm66, %v2436, -inf
  %2517 = vmax.xlane.f32.xlu0 %v2516
  %v2518 = vpop.xlane.xlu0 %2517
  %v2519 = vsel %vm66, %v2513, -inf
  %2520 = vmax.xlane.f32.xlu0 %v2519
  %v2521 = vpop.xlane.xlu0 %2520
  %v2522 = vsub.f32 %v2436, %v2518
  %v2523 = vsub.f32 %v2513, %v2521
  %v2524 = vmul.f32 %v2522, 1.442695
  %v2525 = vpow.pop %v2524
  %v2526 = vmul.f32 %v2523, 1.442695
  %v2527 = vpow.pop %v2526
  %v2528 = vsel %vm66, %v2525, 0.0
  %2529 = vadd.xlane.f32.xlu0 %v2528
  %v2530 = vpop.xlane.xlu0 %2529
  %v2531 = vsel %vm66, %v2527, 0.0
  %2532 = vadd.xlane.f32.xlu0 %v2531
  %v2533 = vpop.xlane.xlu0 %2532
  %v2534 = vrcp.pop %v2530
  %v2535 = vrcp.pop %v2533
  %v2536 = vmul.f32 %v2525, %v2534
  %v2537 = vmul.f32 %v2527, %v2535
  %2538 = vrot.lane.b32.xlu0 %v2354, 64
  %v2539 = vpop.permute.xlu0 %2538
  %v2542 = vsel %vm66, %v2536, 0
  %2544 = vmatprep.subr.mxu0 0.0
  %2545 = vmatpush1.msra.mxu0 0.0
  %2546 = vmatprep.subr.mxu0 0.0
  %2547 = vmatpush1.msra.mxu0 0.0
  %2548 = vmatprep.subr.mxu0 0.0
  %2549 = vmatpush1.msra.mxu0 0.0
  %2550 = vmatprep.subr.mxu0 0.0
  %2551 = vmatpush1.msra.mxu0 0.0
  %2552 = vmatprep.subr.mxu0 0.0
  %2553 = vmatpush1.msra.mxu0 0.0
  %2554 = vmatprep.subr.mxu0 0.0
  %2555 = vmatpush1.msra.mxu0 0.0
  %2556 = vmatprep.subr.mxu0 0.0
  %2557 = vmatpush1.msra.mxu0 0.0
  %2558 = vmatprep.subr.mxu0 0.0
  %2559 = vmatpush1.msra.mxu0 0.0
  %2560 = vmatprep.subr.mxu0 0.0
  %2561 = vmatpush1.msra.mxu0 0.0
  %2562 = vmatprep.subr.mxu0 0.0
  %2563 = vmatpush1.msra.mxu0 0.0
  %2564 = vmatprep.subr.mxu0 0.0
  %2565 = vmatpush1.msra.mxu0 0.0
  %2566 = vmatprep.subr.mxu0 0.0
  %2567 = vmatpush1.msra.mxu0 0.0
  %2568 = vmatprep.subr.mxu0 0.0
  %2569 = vmatpush1.msra.mxu0 0.0
  %2570 = vmatprep.subr.mxu0 0.0
  %2571 = vmatpush1.msra.mxu0 0.0
  %2572 = vmatprep.subr.mxu0 0.0
  %2573 = vmatpush1.msra.mxu0 0.0
  %2574 = vmatprep.subr.mxu0 0.0
  %2575 = vmatpush1.msra.mxu0 %v2539
  %2576 = vmatprep.subr.mxu0 0.0
  %2577 = vmatpush2.msra.mxu0 0.0
  %2578 = vmatprep.subr.mxu0 0.0
  %2579 = vmatpush2.msra.mxu0 0.0
  %2580 = vmatprep.subr.mxu0 0.0
  %2581 = vmatpush2.msra.mxu0 0.0
  %2582 = vmatprep.subr.mxu0 0.0
  %2583 = vmatpush2.msra.mxu0 0.0
  %2584 = vmatprep.subr.mxu0 0.0
  %2585 = vmatpush2.msra.mxu0 0.0
  %2586 = vmatprep.subr.mxu0 0.0
  %2587 = vmatpush2.msra.mxu0 0.0
  %2588 = vmatprep.subr.mxu0 0.0
  %2589 = vmatpush2.msra.mxu0 0.0
  %2590 = vmatprep.subr.mxu0 0.0
  %2591 = vmatpush2.msra.mxu0 0.0
  %2592 = vmatprep.subr.mxu0 0.0
  %2593 = vmatpush2.msra.mxu0 0.0
  %2594 = vmatprep.subr.mxu0 0.0
  %2595 = vmatpush2.msra.mxu0 0.0
  %2596 = vmatprep.subr.mxu0 0.0
  %2597 = vmatpush2.msra.mxu0 0.0
  %2598 = vmatprep.subr.mxu0 0.0
  %2599 = vmatpush2.msra.mxu0 0.0
  %2600 = vmatprep.subr.mxu0 0.0
  %2601 = vmatpush2.msra.mxu0 0.0
  %2602 = vmatprep.subr.mxu0 0.0
  %2603 = vmatpush2.msra.mxu0 0.0
  %2604 = vmatprep.subr.mxu0 0.0
  %2605 = vmatpush2.msra.mxu0 0.0
  %2606 = vmatprep.subr.mxu0 0.0
  %2607 = vmatpush2.msra.mxu0 0.0
  %2608 = vmatprep.mubr.f32.mxu0 0.0
  %2609 = vmatmul.mubr.f32.gmra.mxu0 %v2542
  %v2610 = vpop.f32.mrf.mxu0
  %v2611 = vadd.f32 0.0, %v2610
  %v2612 = vpop.f32.mrf.mxu0
  %2613 = vdwg.mxu0
  %2614 = vrot.lane.b32.xlu0 %v2359, 64
  %v2615 = vpop.permute.xlu0 %2614
  %v2618 = vsel %vm66, %v2537, 0
  %2620 = vmatprep.subr.mxu0 0.0
  %2621 = vmatpush1.msra.mxu0 0.0
  %2622 = vmatprep.subr.mxu0 0.0
  %2623 = vmatpush1.msra.mxu0 0.0
  %2624 = vmatprep.subr.mxu0 0.0
  %2625 = vmatpush1.msra.mxu0 0.0
  %2626 = vmatprep.subr.mxu0 0.0
  %2627 = vmatpush1.msra.mxu0 0.0
  %2628 = vmatprep.subr.mxu0 0.0
  %2629 = vmatpush1.msra.mxu0 0.0
  %2630 = vmatprep.subr.mxu0 0.0
  %2631 = vmatpush1.msra.mxu0 0.0
  %2632 = vmatprep.subr.mxu0 0.0
  %2633 = vmatpush1.msra.mxu0 0.0
  %2634 = vmatprep.subr.mxu0 0.0
  %2635 = vmatpush1.msra.mxu0 0.0
  %2636 = vmatprep.subr.mxu0 0.0
  %2637 = vmatpush1.msra.mxu0 0.0
  %2638 = vmatprep.subr.mxu0 0.0
  %2639 = vmatpush1.msra.mxu0 0.0
  %2640 = vmatprep.subr.mxu0 0.0
  %2641 = vmatpush1.msra.mxu0 0.0
  %2642 = vmatprep.subr.mxu0 0.0
  %2643 = vmatpush1.msra.mxu0 0.0
  %2644 = vmatprep.subr.mxu0 0.0
  %2645 = vmatpush1.msra.mxu0 0.0
  %2646 = vmatprep.subr.mxu0 0.0
  %2647 = vmatpush1.msra.mxu0 0.0
  %2648 = vmatprep.subr.mxu0 0.0
  %2649 = vmatpush1.msra.mxu0 0.0
  %2650 = vmatprep.subr.mxu0 0.0
  %2651 = vmatpush1.msra.mxu0 %v2615
  %2652 = vmatprep.subr.mxu0 0.0
  %2653 = vmatpush2.msra.mxu0 0.0
  %2654 = vmatprep.subr.mxu0 0.0
  %2655 = vmatpush2.msra.mxu0 0.0
  %2656 = vmatprep.subr.mxu0 0.0
  %2657 = vmatpush2.msra.mxu0 0.0
  %2658 = vmatprep.subr.mxu0 0.0
  %2659 = vmatpush2.msra.mxu0 0.0
  %2660 = vmatprep.subr.mxu0 0.0
  %2661 = vmatpush2.msra.mxu0 0.0
  %2662 = vmatprep.subr.mxu0 0.0
  %2663 = vmatpush2.msra.mxu0 0.0
  %2664 = vmatprep.subr.mxu0 0.0
  %2665 = vmatpush2.msra.mxu0 0.0
  %2666 = vmatprep.subr.mxu0 0.0
  %2667 = vmatpush2.msra.mxu0 0.0
  %2668 = vmatprep.subr.mxu0 0.0
  %2669 = vmatpush2.msra.mxu0 0.0
  %2670 = vmatprep.subr.mxu0 0.0
  %2671 = vmatpush2.msra.mxu0 0.0
  %2672 = vmatprep.subr.mxu0 0.0
  %2673 = vmatpush2.msra.mxu0 0.0
  %2674 = vmatprep.subr.mxu0 0.0
  %2675 = vmatpush2.msra.mxu0 0.0
  %2676 = vmatprep.subr.mxu0 0.0
  %2677 = vmatpush2.msra.mxu0 0.0
  %2678 = vmatprep.subr.mxu0 0.0
  %2679 = vmatpush2.msra.mxu0 0.0
  %2680 = vmatprep.subr.mxu0 0.0
  %2681 = vmatpush2.msra.mxu0 0.0
  %2682 = vmatprep.subr.mxu0 0.0
  %2683 = vmatpush2.msra.mxu0 0.0
  %2684 = vmatprep.mubr.f32.mxu0 0.0
  %2685 = vmatmul.mubr.f32.gmra.mxu0 %v2618
  %v2686 = vpop.f32.mrf.mxu0
  %v2687 = vadd.f32 0.0, %v2686
  %v2688 = vpop.f32.mrf.mxu0
  %2689 = vdwg.mxu0
  %s2690 = scalar_lea.vmem %s7, 32
  %v2691 = vld [vmem:[%s2690] sm:$0xff]
  %2692 = vrot.lane.b32.xlu0 %v2354, 120
  %v2693 = vpop.permute.xlu0 %2692
  %2694 = vrot.lane.b32.xlu0 %v2354, 88
  %v2695 = vpop.permute.xlu0 %2694
  %v2696 = vsel %vm66, %v2693, 0
  %v2698 = vsel %vm66, %v2695, 0
  %2700 = vmatprep.subr.mxu0 0.0
  %2701 = vmatpush1.xpose.msra.mxu0 0.0
  %2702 = vmatprep.subr.mxu0 0.0
  %2703 = vmatpush1.xpose.msra.mxu0 0.0
  %2704 = vmatprep.subr.mxu0 0.0
  %2705 = vmatpush1.xpose.msra.mxu0 0.0
  %2706 = vmatprep.subr.mxu0 0.0
  %2707 = vmatpush1.xpose.msra.mxu0 0.0
  %2708 = vmatprep.subr.mxu0 0.0
  %2709 = vmatpush1.xpose.msra.mxu0 0.0
  %2710 = vmatprep.subr.mxu0 0.0
  %2711 = vmatpush1.xpose.msra.mxu0 0.0
  %2712 = vmatprep.subr.mxu0 0.0
  %2713 = vmatpush1.xpose.msra.mxu0 0.0
  %2714 = vmatprep.subr.mxu0 0.0
  %2715 = vmatpush1.xpose.msra.mxu0 0.0
  %2716 = vmatprep.subr.mxu0 0.0
  %2717 = vmatpush1.xpose.msra.mxu0 0.0
  %2718 = vmatprep.subr.mxu0 0.0
  %2719 = vmatpush1.xpose.msra.mxu0 0.0
  %2720 = vmatprep.subr.mxu0 0.0
  %2721 = vmatpush1.xpose.msra.mxu0 0.0
  %2722 = vmatprep.subr.mxu0 0.0
  %2723 = vmatpush1.xpose.msra.mxu0 0.0
  %2724 = vmatprep.subr.mxu0 0.0
  %2725 = vmatpush1.xpose.msra.mxu0 0.0
  %2726 = vmatprep.subr.mxu0 0.0
  %2727 = vmatpush1.xpose.msra.mxu0 0.0
  %2728 = vmatprep.subr.mxu0 0.0
  %2729 = vmatpush1.xpose.msra.mxu0 0.0
  %2730 = vmatprep.subr.mxu0 0.0
  %2731 = vmatpush1.xpose.msra.mxu0 %v2698
  %2732 = vmatprep.subr.mxu0 0.0
  %2733 = vmatpush2.xpose.msra.mxu0 0.0
  %2734 = vmatprep.subr.mxu0 0.0
  %2735 = vmatpush2.xpose.msra.mxu0 0.0
  %2736 = vmatprep.subr.mxu0 0.0
  %2737 = vmatpush2.xpose.msra.mxu0 0.0
  %2738 = vmatprep.subr.mxu0 0.0
  %2739 = vmatpush2.xpose.msra.mxu0 0.0
  %2740 = vmatprep.subr.mxu0 0.0
  %2741 = vmatpush2.xpose.msra.mxu0 0.0
  %2742 = vmatprep.subr.mxu0 0.0
  %2743 = vmatpush2.xpose.msra.mxu0 0.0
  %2744 = vmatprep.subr.mxu0 0.0
  %2745 = vmatpush2.xpose.msra.mxu0 0.0
  %2746 = vmatprep.subr.mxu0 0.0
  %2747 = vmatpush2.xpose.msra.mxu0 0.0
  %2748 = vmatprep.subr.mxu0 0.0
  %2749 = vmatpush2.xpose.msra.mxu0 0.0
  %2750 = vmatprep.subr.mxu0 0.0
  %2751 = vmatpush2.xpose.msra.mxu0 0.0
  %2752 = vmatprep.subr.mxu0 0.0
  %2753 = vmatpush2.xpose.msra.mxu0 0.0
  %2754 = vmatprep.subr.mxu0 0.0
  %2755 = vmatpush2.xpose.msra.mxu0 0.0
  %2756 = vmatprep.subr.mxu0 0.0
  %2757 = vmatpush2.xpose.msra.mxu0 0.0
  %2758 = vmatprep.subr.mxu0 0.0
  %2759 = vmatpush2.xpose.msra.mxu0 0.0
  %2760 = vmatprep.subr.mxu0 0.0
  %2761 = vmatpush2.xpose.msra.mxu0 0.0
  %2762 = vmatprep.subr.mxu0 0.0
  %2763 = vmatpush2.xpose.msra.mxu0 0.0
  %2764 = vmatprep.mubr.f32.mxu0 0.0
  %2765 = vmatmul.mubr.f32.gmra.mxu0 %v2696
  %v2766 = vpop.f32.mrf.mxu0
  %v2767 = vadd.f32 %v153, %v2766
  %v2768 = vpop.f32.mrf.mxu0
  %2769 = vdwg.mxu0
  %2770 = vrot.lane.b32.xlu0 %v2359, 120
  %v2771 = vpop.permute.xlu0 %2770
  %2772 = vrot.lane.b32.xlu0 %v2359, 88
  %v2773 = vpop.permute.xlu0 %2772
  %v2774 = vsel %vm66, %v2771, 0
  %v2776 = vsel %vm66, %v2773, 0
  %2778 = vmatprep.subr.mxu0 0.0
  %2779 = vmatpush1.xpose.msra.mxu0 0.0
  %2780 = vmatprep.subr.mxu0 0.0
  %2781 = vmatpush1.xpose.msra.mxu0 0.0
  %2782 = vmatprep.subr.mxu0 0.0
  %2783 = vmatpush1.xpose.msra.mxu0 0.0
  %2784 = vmatprep.subr.mxu0 0.0
  %2785 = vmatpush1.xpose.msra.mxu0 0.0
  %2786 = vmatprep.subr.mxu0 0.0
  %2787 = vmatpush1.xpose.msra.mxu0 0.0
  %2788 = vmatprep.subr.mxu0 0.0
  %2789 = vmatpush1.xpose.msra.mxu0 0.0
  %2790 = vmatprep.subr.mxu0 0.0
  %2791 = vmatpush1.xpose.msra.mxu0 0.0
  %2792 = vmatprep.subr.mxu0 0.0
  %2793 = vmatpush1.xpose.msra.mxu0 0.0
  %2794 = vmatprep.subr.mxu0 0.0
  %2795 = vmatpush1.xpose.msra.mxu0 0.0
  %2796 = vmatprep.subr.mxu0 0.0
  %2797 = vmatpush1.xpose.msra.mxu0 0.0
  %2798 = vmatprep.subr.mxu0 0.0
  %2799 = vmatpush1.xpose.msra.mxu0 0.0
  %2800 = vmatprep.subr.mxu0 0.0
  %2801 = vmatpush1.xpose.msra.mxu0 0.0
  %2802 = vmatprep.subr.mxu0 0.0
  %2803 = vmatpush1.xpose.msra.mxu0 0.0
  %2804 = vmatprep.subr.mxu0 0.0
  %2805 = vmatpush1.xpose.msra.mxu0 0.0
  %2806 = vmatprep.subr.mxu0 0.0
  %2807 = vmatpush1.xpose.msra.mxu0 0.0
  %2808 = vmatprep.subr.mxu0 0.0
  %2809 = vmatpush1.xpose.msra.mxu0 %v2776
  %2810 = vmatprep.subr.mxu0 0.0
  %2811 = vmatpush2.xpose.msra.mxu0 0.0
  %2812 = vmatprep.subr.mxu0 0.0
  %2813 = vmatpush2.xpose.msra.mxu0 0.0
  %2814 = vmatprep.subr.mxu0 0.0
  %2815 = vmatpush2.xpose.msra.mxu0 0.0
  %2816 = vmatprep.subr.mxu0 0.0
  %2817 = vmatpush2.xpose.msra.mxu0 0.0
  %2818 = vmatprep.subr.mxu0 0.0
  %2819 = vmatpush2.xpose.msra.mxu0 0.0
  %2820 = vmatprep.subr.mxu0 0.0
  %2821 = vmatpush2.xpose.msra.mxu0 0.0
  %2822 = vmatprep.subr.mxu0 0.0
  %2823 = vmatpush2.xpose.msra.mxu0 0.0
  %2824 = vmatprep.subr.mxu0 0.0
  %2825 = vmatpush2.xpose.msra.mxu0 0.0
  %2826 = vmatprep.subr.mxu0 0.0
  %2827 = vmatpush2.xpose.msra.mxu0 0.0
  %2828 = vmatprep.subr.mxu0 0.0
  %2829 = vmatpush2.xpose.msra.mxu0 0.0
  %2830 = vmatprep.subr.mxu0 0.0
  %2831 = vmatpush2.xpose.msra.mxu0 0.0
  %2832 = vmatprep.subr.mxu0 0.0
  %2833 = vmatpush2.xpose.msra.mxu0 0.0
  %2834 = vmatprep.subr.mxu0 0.0
  %2835 = vmatpush2.xpose.msra.mxu0 0.0
  %2836 = vmatprep.subr.mxu0 0.0
  %2837 = vmatpush2.xpose.msra.mxu0 0.0
  %2838 = vmatprep.subr.mxu0 0.0
  %2839 = vmatpush2.xpose.msra.mxu0 0.0
  %2840 = vmatprep.subr.mxu0 0.0
  %2841 = vmatpush2.xpose.msra.mxu0 0.0
  %2842 = vmatprep.mubr.f32.mxu0 0.0
  %2843 = vmatmul.mubr.f32.gmra.mxu0 %v2774
  %v2844 = vpop.f32.mrf.mxu0
  %v2845 = vadd.f32 %v153, %v2844
  %v2846 = vpop.f32.mrf.mxu0
  %2847 = vdwg.mxu0
  %v2848 = vsel %vm66, %v2767, -inf
  %2849 = vmax.xlane.f32.xlu0 %v2848
  %v2850 = vpop.xlane.xlu0 %2849
  %v2851 = vsel %vm66, %v2845, -inf
  %2852 = vmax.xlane.f32.xlu0 %v2851
  %v2853 = vpop.xlane.xlu0 %2852
  %v2854 = vsub.f32 %v2767, %v2850
  %v2855 = vsub.f32 %v2845, %v2853
  %v2856 = vmul.f32 %v2854, 1.442695
  %v2857 = vpow.pop %v2856
  %v2858 = vmul.f32 %v2855, 1.442695
  %v2859 = vpow.pop %v2858
  %v2860 = vsel %vm66, %v2857, 0.0
  %2861 = vadd.xlane.f32.xlu0 %v2860
  %v2862 = vpop.xlane.xlu0 %2861
  %v2863 = vsel %vm66, %v2859, 0.0
  %2864 = vadd.xlane.f32.xlu0 %v2863
  %v2865 = vpop.xlane.xlu0 %2864
  %v2866 = vrcp.pop %v2862
  %v2867 = vrcp.pop %v2865
  %v2868 = vmul.f32 %v2857, %v2866
  %v2869 = vmul.f32 %v2859, %v2867
  %2870 = vrot.lane.b32.xlu0 %v2354, 56
  %v2871 = vpop.permute.xlu0 %2870
  %v2874 = vsel %vm66, %v2868, 0
  %2876 = vmatprep.subr.mxu0 0.0
  %2877 = vmatpush1.msra.mxu0 0.0
  %2878 = vmatprep.subr.mxu0 0.0
  %2879 = vmatpush1.msra.mxu0 0.0
  %2880 = vmatprep.subr.mxu0 0.0
  %2881 = vmatpush1.msra.mxu0 0.0
  %2882 = vmatprep.subr.mxu0 0.0
  %2883 = vmatpush1.msra.mxu0 0.0
  %2884 = vmatprep.subr.mxu0 0.0
  %2885 = vmatpush1.msra.mxu0 0.0
  %2886 = vmatprep.subr.mxu0 0.0
  %2887 = vmatpush1.msra.mxu0 0.0
  %2888 = vmatprep.subr.mxu0 0.0
  %2889 = vmatpush1.msra.mxu0 0.0
  %2890 = vmatprep.subr.mxu0 0.0
  %2891 = vmatpush1.msra.mxu0 0.0
  %2892 = vmatprep.subr.mxu0 0.0
  %2893 = vmatpush1.msra.mxu0 0.0
  %2894 = vmatprep.subr.mxu0 0.0
  %2895 = vmatpush1.msra.mxu0 0.0
  %2896 = vmatprep.subr.mxu0 0.0
  %2897 = vmatpush1.msra.mxu0 0.0
  %2898 = vmatprep.subr.mxu0 0.0
  %2899 = vmatpush1.msra.mxu0 0.0
  %2900 = vmatprep.subr.mxu0 0.0
  %2901 = vmatpush1.msra.mxu0 0.0
  %2902 = vmatprep.subr.mxu0 0.0
  %2903 = vmatpush1.msra.mxu0 0.0
  %2904 = vmatprep.subr.mxu0 0.0
  %2905 = vmatpush1.msra.mxu0 0.0
  %2906 = vmatprep.subr.mxu0 0.0
  %2907 = vmatpush1.msra.mxu0 %v2871
  %2908 = vmatprep.subr.mxu0 0.0
  %2909 = vmatpush2.msra.mxu0 0.0
  %2910 = vmatprep.subr.mxu0 0.0
  %2911 = vmatpush2.msra.mxu0 0.0
  %2912 = vmatprep.subr.mxu0 0.0
  %2913 = vmatpush2.msra.mxu0 0.0
  %2914 = vmatprep.subr.mxu0 0.0
  %2915 = vmatpush2.msra.mxu0 0.0
  %2916 = vmatprep.subr.mxu0 0.0
  %2917 = vmatpush2.msra.mxu0 0.0
  %2918 = vmatprep.subr.mxu0 0.0
  %2919 = vmatpush2.msra.mxu0 0.0
  %2920 = vmatprep.subr.mxu0 0.0
  %2921 = vmatpush2.msra.mxu0 0.0
  %2922 = vmatprep.subr.mxu0 0.0
  %2923 = vmatpush2.msra.mxu0 0.0
  %2924 = vmatprep.subr.mxu0 0.0
  %2925 = vmatpush2.msra.mxu0 0.0
  %2926 = vmatprep.subr.mxu0 0.0
  %2927 = vmatpush2.msra.mxu0 0.0
  %2928 = vmatprep.subr.mxu0 0.0
  %2929 = vmatpush2.msra.mxu0 0.0
  %2930 = vmatprep.subr.mxu0 0.0
  %2931 = vmatpush2.msra.mxu0 0.0
  %2932 = vmatprep.subr.mxu0 0.0
  %2933 = vmatpush2.msra.mxu0 0.0
  %2934 = vmatprep.subr.mxu0 0.0
  %2935 = vmatpush2.msra.mxu0 0.0
  %2936 = vmatprep.subr.mxu0 0.0
  %2937 = vmatpush2.msra.mxu0 0.0
  %2938 = vmatprep.subr.mxu0 0.0
  %2939 = vmatpush2.msra.mxu0 0.0
  %2940 = vmatprep.mubr.f32.mxu0 0.0
  %2941 = vmatmul.mubr.f32.gmra.mxu0 %v2874
  %v2942 = vpop.f32.mrf.mxu0
  %v2943 = vadd.f32 0.0, %v2942
  %v2944 = vpop.f32.mrf.mxu0
  %2945 = vdwg.mxu0
  %2946 = vrot.lane.b32.xlu0 %v2359, 56
  %v2947 = vpop.permute.xlu0 %2946
  %v2950 = vsel %vm66, %v2869, 0
  %2952 = vmatprep.subr.mxu0 0.0
  %2953 = vmatpush1.msra.mxu0 0.0
  %2954 = vmatprep.subr.mxu0 0.0
  %2955 = vmatpush1.msra.mxu0 0.0
  %2956 = vmatprep.subr.mxu0 0.0
  %2957 = vmatpush1.msra.mxu0 0.0
  %2958 = vmatprep.subr.mxu0 0.0
  %2959 = vmatpush1.msra.mxu0 0.0
  %2960 = vmatprep.subr.mxu0 0.0
  %2961 = vmatpush1.msra.mxu0 0.0
  %2962 = vmatprep.subr.mxu0 0.0
  %2963 = vmatpush1.msra.mxu0 0.0
  %2964 = vmatprep.subr.mxu0 0.0
  %2965 = vmatpush1.msra.mxu0 0.0
  %2966 = vmatprep.subr.mxu0 0.0
  %2967 = vmatpush1.msra.mxu0 0.0
  %2968 = vmatprep.subr.mxu0 0.0
  %2969 = vmatpush1.msra.mxu0 0.0
  %2970 = vmatprep.subr.mxu0 0.0
  %2971 = vmatpush1.msra.mxu0 0.0
  %2972 = vmatprep.subr.mxu0 0.0
  %2973 = vmatpush1.msra.mxu0 0.0
  %2974 = vmatprep.subr.mxu0 0.0
  %2975 = vmatpush1.msra.mxu0 0.0
  %2976 = vmatprep.subr.mxu0 0.0
  %2977 = vmatpush1.msra.mxu0 0.0
  %2978 = vmatprep.subr.mxu0 0.0
  %2979 = vmatpush1.msra.mxu0 0.0
  %2980 = vmatprep.subr.mxu0 0.0
  %2981 = vmatpush1.msra.mxu0 0.0
  %2982 = vmatprep.subr.mxu0 0.0
  %2983 = vmatpush1.msra.mxu0 %v2947
  %2984 = vmatprep.subr.mxu0 0.0
  %2985 = vmatpush2.msra.mxu0 0.0
  %2986 = vmatprep.subr.mxu0 0.0
  %2987 = vmatpush2.msra.mxu0 0.0
  %2988 = vmatprep.subr.mxu0 0.0
  %2989 = vmatpush2.msra.mxu0 0.0
  %2990 = vmatprep.subr.mxu0 0.0
  %2991 = vmatpush2.msra.mxu0 0.0
  %2992 = vmatprep.subr.mxu0 0.0
  %2993 = vmatpush2.msra.mxu0 0.0
  %2994 = vmatprep.subr.mxu0 0.0
  %2995 = vmatpush2.msra.mxu0 0.0
  %2996 = vmatprep.subr.mxu0 0.0
  %2997 = vmatpush2.msra.mxu0 0.0
  %2998 = vmatprep.subr.mxu0 0.0
  %2999 = vmatpush2.msra.mxu0 0.0
  %3000 = vmatprep.subr.mxu0 0.0
  %3001 = vmatpush2.msra.mxu0 0.0
  %3002 = vmatprep.subr.mxu0 0.0
  %3003 = vmatpush2.msra.mxu0 0.0
  %3004 = vmatprep.subr.mxu0 0.0
  %3005 = vmatpush2.msra.mxu0 0.0
  %3006 = vmatprep.subr.mxu0 0.0
  %3007 = vmatpush2.msra.mxu0 0.0
  %3008 = vmatprep.subr.mxu0 0.0
  %3009 = vmatpush2.msra.mxu0 0.0
  %3010 = vmatprep.subr.mxu0 0.0
  %3011 = vmatpush2.msra.mxu0 0.0
  %3012 = vmatprep.subr.mxu0 0.0
  %3013 = vmatpush2.msra.mxu0 0.0
  %3014 = vmatprep.subr.mxu0 0.0
  %3015 = vmatpush2.msra.mxu0 0.0
  %3016 = vmatprep.mubr.f32.mxu0 0.0
  %3017 = vmatmul.mubr.f32.gmra.mxu0 %v2950
  %v3018 = vpop.f32.mrf.mxu0
  %v3019 = vadd.f32 0.0, %v3018
  %v3020 = vpop.f32.mrf.mxu0
  %3021 = vdwg.mxu0
  %s3022 = scalar_lea.vmem %s7, 40
  %v3023 = vld [vmem:[%s3022] sm:$0xff]
  %v3025 = vsel %vm66, %v2943, 0
  %v3028 = vsel %vm66, %v3019, 0
  %3030 = vmatprep.subr.mxu0 0.0
  %3031 = vmatpush1.msra.mxu0 0.0
  %3032 = vmatprep.subr.mxu0 0.0
  %3033 = vmatpush1.msra.mxu0 0.0
  %3034 = vmatprep.subr.mxu0 0.0
  %3035 = vmatpush1.msra.mxu0 0.0
  %3036 = vmatprep.subr.mxu0 0.0
  %3037 = vmatpush1.msra.mxu0 0.0
  %3038 = vmatprep.subr.mxu0 0.0
  %3039 = vmatpush1.msra.mxu0 0.0
  %3040 = vmatprep.subr.mxu0 0.0
  %3041 = vmatpush1.msra.mxu0 0.0
  %3042 = vmatprep.subr.mxu0 0.0
  %3043 = vmatpush1.msra.mxu0 0.0
  %3044 = vmatprep.subr.mxu0 0.0
  %3045 = vmatpush1.msra.mxu0 0.0
  %3046 = vmatprep.subr.mxu0 0.0
  %3047 = vmatpush1.msra.mxu0 0.0
  %3048 = vmatprep.subr.mxu0 0.0
  %3049 = vmatpush1.msra.mxu0 0.0
  %3050 = vmatprep.subr.mxu0 0.0
  %3051 = vmatpush1.msra.mxu0 0.0
  %3052 = vmatprep.subr.mxu0 0.0
  %3053 = vmatpush1.msra.mxu0 0.0
  %3054 = vmatprep.subr.mxu0 0.0
  %3055 = vmatpush1.msra.mxu0 0.0
  %3056 = vmatprep.subr.mxu0 0.0
  %3057 = vmatpush1.msra.mxu0 0.0
  %3058 = vmatprep.subr.mxu0 0.0
  %3059 = vmatpush1.msra.mxu0 0.0
  %3060 = vmatprep.subr.mxu0 0.0
  %3061 = vmatpush1.msra.mxu0 %v3023
  %3062 = vmatprep.subr.mxu0 0.0
  %3063 = vmatpush2.msra.mxu0 0.0
  %3064 = vmatprep.subr.mxu0 0.0
  %3065 = vmatpush2.msra.mxu0 0.0
  %3066 = vmatprep.subr.mxu0 0.0
  %3067 = vmatpush2.msra.mxu0 0.0
  %3068 = vmatprep.subr.mxu0 0.0
  %3069 = vmatpush2.msra.mxu0 0.0
  %3070 = vmatprep.subr.mxu0 0.0
  %3071 = vmatpush2.msra.mxu0 0.0
  %3072 = vmatprep.subr.mxu0 0.0
  %3073 = vmatpush2.msra.mxu0 0.0
  %3074 = vmatprep.subr.mxu0 0.0
  %3075 = vmatpush2.msra.mxu0 0.0
  %3076 = vmatprep.subr.mxu0 0.0
  %3077 = vmatpush2.msra.mxu0 0.0
  %3078 = vmatprep.subr.mxu0 0.0
  %3079 = vmatpush2.msra.mxu0 0.0
  %3080 = vmatprep.subr.mxu0 0.0
  %3081 = vmatpush2.msra.mxu0 0.0
  %3082 = vmatprep.subr.mxu0 0.0
  %3083 = vmatpush2.msra.mxu0 0.0
  %3084 = vmatprep.subr.mxu0 0.0
  %3085 = vmatpush2.msra.mxu0 0.0
  %3086 = vmatprep.subr.mxu0 0.0
  %3087 = vmatpush2.msra.mxu0 0.0
  %3088 = vmatprep.subr.mxu0 0.0
  %3089 = vmatpush2.msra.mxu0 0.0
  %3090 = vmatprep.subr.mxu0 0.0
  %3091 = vmatpush2.msra.mxu0 0.0
  %3092 = vmatprep.subr.mxu0 0.0
  %3093 = vmatpush2.msra.mxu0 0.0
  %3094 = vmatprep.mubr.f32.mxu0 0.0
  %3095 = vmatmul.mubr.f32.gmra.mxu0 %v3025
  %v3096 = vpop.f32.mrf.mxu0
  %v3097 = vadd.f32 0.0, %v3096
  %v3098 = vpop.f32.mrf.mxu0
  %3099 = vmatprep.mubr.f32.mxu0 0.0
  %3100 = vmatmul.mubr.f32.gmra.mxu0 %v3028
  %v3101 = vpop.f32.mrf.mxu0
  %v3102 = vadd.f32 0.0, %v3101
  %v3103 = vpop.f32.mrf.mxu0
  %3104 = vdwg.mxu0
  %v3106 = vsel %vm66, %v2611, 0
  %v3109 = vsel %vm66, %v2687, 0
  %3111 = vmatprep.subr.mxu0 0.0
  %3112 = vmatpush1.msra.mxu0 0.0
  %3113 = vmatprep.subr.mxu0 0.0
  %3114 = vmatpush1.msra.mxu0 0.0
  %3115 = vmatprep.subr.mxu0 0.0
  %3116 = vmatpush1.msra.mxu0 0.0
  %3117 = vmatprep.subr.mxu0 0.0
  %3118 = vmatpush1.msra.mxu0 0.0
  %3119 = vmatprep.subr.mxu0 0.0
  %3120 = vmatpush1.msra.mxu0 0.0
  %3121 = vmatprep.subr.mxu0 0.0
  %3122 = vmatpush1.msra.mxu0 0.0
  %3123 = vmatprep.subr.mxu0 0.0
  %3124 = vmatpush1.msra.mxu0 0.0
  %3125 = vmatprep.subr.mxu0 0.0
  %3126 = vmatpush1.msra.mxu0 0.0
  %3127 = vmatprep.subr.mxu0 0.0
  %3128 = vmatpush1.msra.mxu0 0.0
  %3129 = vmatprep.subr.mxu0 0.0
  %3130 = vmatpush1.msra.mxu0 0.0
  %3131 = vmatprep.subr.mxu0 0.0
  %3132 = vmatpush1.msra.mxu0 0.0
  %3133 = vmatprep.subr.mxu0 0.0
  %3134 = vmatpush1.msra.mxu0 0.0
  %3135 = vmatprep.subr.mxu0 0.0
  %3136 = vmatpush1.msra.mxu0 0.0
  %3137 = vmatprep.subr.mxu0 0.0
  %3138 = vmatpush1.msra.mxu0 0.0
  %3139 = vmatprep.subr.mxu0 0.0
  %3140 = vmatpush1.msra.mxu0 0.0
  %3141 = vmatprep.subr.mxu0 0.0
  %3142 = vmatpush1.msra.mxu0 %v2691
  %3143 = vmatprep.subr.mxu0 0.0
  %3144 = vmatpush2.msra.mxu0 0.0
  %3145 = vmatprep.subr.mxu0 0.0
  %3146 = vmatpush2.msra.mxu0 0.0
  %3147 = vmatprep.subr.mxu0 0.0
  %3148 = vmatpush2.msra.mxu0 0.0
  %3149 = vmatprep.subr.mxu0 0.0
  %3150 = vmatpush2.msra.mxu0 0.0
  %3151 = vmatprep.subr.mxu0 0.0
  %3152 = vmatpush2.msra.mxu0 0.0
  %3153 = vmatprep.subr.mxu0 0.0
  %3154 = vmatpush2.msra.mxu0 0.0
  %3155 = vmatprep.subr.mxu0 0.0
  %3156 = vmatpush2.msra.mxu0 0.0
  %3157 = vmatprep.subr.mxu0 0.0
  %3158 = vmatpush2.msra.mxu0 0.0
  %3159 = vmatprep.subr.mxu0 0.0
  %3160 = vmatpush2.msra.mxu0 0.0
  %3161 = vmatprep.subr.mxu0 0.0
  %3162 = vmatpush2.msra.mxu0 0.0
  %3163 = vmatprep.subr.mxu0 0.0
  %3164 = vmatpush2.msra.mxu0 0.0
  %3165 = vmatprep.subr.mxu0 0.0
  %3166 = vmatpush2.msra.mxu0 0.0
  %3167 = vmatprep.subr.mxu0 0.0
  %3168 = vmatpush2.msra.mxu0 0.0
  %3169 = vmatprep.subr.mxu0 0.0
  %3170 = vmatpush2.msra.mxu0 0.0
  %3171 = vmatprep.subr.mxu0 0.0
  %3172 = vmatpush2.msra.mxu0 0.0
  %3173 = vmatprep.subr.mxu0 0.0
  %3174 = vmatpush2.msra.mxu0 0.0
  %3175 = vmatprep.mubr.f32.mxu0 0.0
  %3176 = vmatmul.mubr.f32.gmra.mxu0 %v3106
  %v3177 = vpop.f32.mrf.mxu0
  %v3178 = vadd.f32 %v3097, %v3177
  %v3179 = vpop.f32.mrf.mxu0
  %3180 = vmatprep.mubr.f32.mxu0 0.0
  %3181 = vmatmul.mubr.f32.gmra.mxu0 %v3109
  %v3182 = vpop.f32.mrf.mxu0
  %v3183 = vadd.f32 %v3102, %v3182
  %v3184 = vpop.f32.mrf.mxu0
  %3185 = vdwg.mxu0
  %3186 = vrot.lane.b32.xlu0 %v2354, 112
  %v3187 = vpop.permute.xlu0 %3186
  %3188 = vrot.lane.b32.xlu0 %v2354, 80
  %v3189 = vpop.permute.xlu0 %3188
  %v3190 = vsel %vm66, %v3187, 0
  %v3192 = vsel %vm66, %v3189, 0
  %3194 = vmatprep.subr.mxu0 0.0
  %3195 = vmatpush1.xpose.msra.mxu0 0.0
  %3196 = vmatprep.subr.mxu0 0.0
  %3197 = vmatpush1.xpose.msra.mxu0 0.0
  %3198 = vmatprep.subr.mxu0 0.0
  %3199 = vmatpush1.xpose.msra.mxu0 0.0
  %3200 = vmatprep.subr.mxu0 0.0
  %3201 = vmatpush1.xpose.msra.mxu0 0.0
  %3202 = vmatprep.subr.mxu0 0.0
  %3203 = vmatpush1.xpose.msra.mxu0 0.0
  %3204 = vmatprep.subr.mxu0 0.0
  %3205 = vmatpush1.xpose.msra.mxu0 0.0
  %3206 = vmatprep.subr.mxu0 0.0
  %3207 = vmatpush1.xpose.msra.mxu0 0.0
  %3208 = vmatprep.subr.mxu0 0.0
  %3209 = vmatpush1.xpose.msra.mxu0 0.0
  %3210 = vmatprep.subr.mxu0 0.0
  %3211 = vmatpush1.xpose.msra.mxu0 0.0
  %3212 = vmatprep.subr.mxu0 0.0
  %3213 = vmatpush1.xpose.msra.mxu0 0.0
  %3214 = vmatprep.subr.mxu0 0.0
  %3215 = vmatpush1.xpose.msra.mxu0 0.0
  %3216 = vmatprep.subr.mxu0 0.0
  %3217 = vmatpush1.xpose.msra.mxu0 0.0
  %3218 = vmatprep.subr.mxu0 0.0
  %3219 = vmatpush1.xpose.msra.mxu0 0.0
  %3220 = vmatprep.subr.mxu0 0.0
  %3221 = vmatpush1.xpose.msra.mxu0 0.0
  %3222 = vmatprep.subr.mxu0 0.0
  %3223 = vmatpush1.xpose.msra.mxu0 0.0
  %3224 = vmatprep.subr.mxu0 0.0
  %3225 = vmatpush1.xpose.msra.mxu0 %v3192
  %3226 = vmatprep.subr.mxu0 0.0
  %3227 = vmatpush2.xpose.msra.mxu0 0.0
  %3228 = vmatprep.subr.mxu0 0.0
  %3229 = vmatpush2.xpose.msra.mxu0 0.0
  %3230 = vmatprep.subr.mxu0 0.0
  %3231 = vmatpush2.xpose.msra.mxu0 0.0
  %3232 = vmatprep.subr.mxu0 0.0
  %3233 = vmatpush2.xpose.msra.mxu0 0.0
  %3234 = vmatprep.subr.mxu0 0.0
  %3235 = vmatpush2.xpose.msra.mxu0 0.0
  %3236 = vmatprep.subr.mxu0 0.0
  %3237 = vmatpush2.xpose.msra.mxu0 0.0
  %3238 = vmatprep.subr.mxu0 0.0
  %3239 = vmatpush2.xpose.msra.mxu0 0.0
  %3240 = vmatprep.subr.mxu0 0.0
  %3241 = vmatpush2.xpose.msra.mxu0 0.0
  %3242 = vmatprep.subr.mxu0 0.0
  %3243 = vmatpush2.xpose.msra.mxu0 0.0
  %3244 = vmatprep.subr.mxu0 0.0
  %3245 = vmatpush2.xpose.msra.mxu0 0.0
  %3246 = vmatprep.subr.mxu0 0.0
  %3247 = vmatpush2.xpose.msra.mxu0 0.0
  %3248 = vmatprep.subr.mxu0 0.0
  %3249 = vmatpush2.xpose.msra.mxu0 0.0
  %3250 = vmatprep.subr.mxu0 0.0
  %3251 = vmatpush2.xpose.msra.mxu0 0.0
  %3252 = vmatprep.subr.mxu0 0.0
  %3253 = vmatpush2.xpose.msra.mxu0 0.0
  %3254 = vmatprep.subr.mxu0 0.0
  %3255 = vmatpush2.xpose.msra.mxu0 0.0
  %3256 = vmatprep.subr.mxu0 0.0
  %3257 = vmatpush2.xpose.msra.mxu0 0.0
  %3258 = vmatprep.mubr.f32.mxu0 0.0
  %3259 = vmatmul.mubr.f32.gmra.mxu0 %v3190
  %v3260 = vpop.f32.mrf.mxu0
  %v3261 = vadd.f32 %v153, %v3260
  %v3262 = vpop.f32.mrf.mxu0
  %3263 = vdwg.mxu0
  %3264 = vrot.lane.b32.xlu0 %v2359, 112
  %v3265 = vpop.permute.xlu0 %3264
  %3266 = vrot.lane.b32.xlu0 %v2359, 80
  %v3267 = vpop.permute.xlu0 %3266
  %v3268 = vsel %vm66, %v3265, 0
  %v3270 = vsel %vm66, %v3267, 0
  %3272 = vmatprep.subr.mxu0 0.0
  %3273 = vmatpush1.xpose.msra.mxu0 0.0
  %3274 = vmatprep.subr.mxu0 0.0
  %3275 = vmatpush1.xpose.msra.mxu0 0.0
  %3276 = vmatprep.subr.mxu0 0.0
  %3277 = vmatpush1.xpose.msra.mxu0 0.0
  %3278 = vmatprep.subr.mxu0 0.0
  %3279 = vmatpush1.xpose.msra.mxu0 0.0
  %3280 = vmatprep.subr.mxu0 0.0
  %3281 = vmatpush1.xpose.msra.mxu0 0.0
  %3282 = vmatprep.subr.mxu0 0.0
  %3283 = vmatpush1.xpose.msra.mxu0 0.0
  %3284 = vmatprep.subr.mxu0 0.0
  %3285 = vmatpush1.xpose.msra.mxu0 0.0
  %3286 = vmatprep.subr.mxu0 0.0
  %3287 = vmatpush1.xpose.msra.mxu0 0.0
  %3288 = vmatprep.subr.mxu0 0.0
  %3289 = vmatpush1.xpose.msra.mxu0 0.0
  %3290 = vmatprep.subr.mxu0 0.0
  %3291 = vmatpush1.xpose.msra.mxu0 0.0
  %3292 = vmatprep.subr.mxu0 0.0
  %3293 = vmatpush1.xpose.msra.mxu0 0.0
  %3294 = vmatprep.subr.mxu0 0.0
  %3295 = vmatpush1.xpose.msra.mxu0 0.0
  %3296 = vmatprep.subr.mxu0 0.0
  %3297 = vmatpush1.xpose.msra.mxu0 0.0
  %3298 = vmatprep.subr.mxu0 0.0
  %3299 = vmatpush1.xpose.msra.mxu0 0.0
  %3300 = vmatprep.subr.mxu0 0.0
  %3301 = vmatpush1.xpose.msra.mxu0 0.0
  %3302 = vmatprep.subr.mxu0 0.0
  %3303 = vmatpush1.xpose.msra.mxu0 %v3270
  %3304 = vmatprep.subr.mxu0 0.0
  %3305 = vmatpush2.xpose.msra.mxu0 0.0
  %3306 = vmatprep.subr.mxu0 0.0
  %3307 = vmatpush2.xpose.msra.mxu0 0.0
  %3308 = vmatprep.subr.mxu0 0.0
  %3309 = vmatpush2.xpose.msra.mxu0 0.0
  %3310 = vmatprep.subr.mxu0 0.0
  %3311 = vmatpush2.xpose.msra.mxu0 0.0
  %3312 = vmatprep.subr.mxu0 0.0
  %3313 = vmatpush2.xpose.msra.mxu0 0.0
  %3314 = vmatprep.subr.mxu0 0.0
  %3315 = vmatpush2.xpose.msra.mxu0 0.0
  %3316 = vmatprep.subr.mxu0 0.0
  %3317 = vmatpush2.xpose.msra.mxu0 0.0
  %3318 = vmatprep.subr.mxu0 0.0
  %3319 = vmatpush2.xpose.msra.mxu0 0.0
  %3320 = vmatprep.subr.mxu0 0.0
  %3321 = vmatpush2.xpose.msra.mxu0 0.0
  %3322 = vmatprep.subr.mxu0 0.0
  %3323 = vmatpush2.xpose.msra.mxu0 0.0
  %3324 = vmatprep.subr.mxu0 0.0
  %3325 = vmatpush2.xpose.msra.mxu0 0.0
  %3326 = vmatprep.subr.mxu0 0.0
  %3327 = vmatpush2.xpose.msra.mxu0 0.0
  %3328 = vmatprep.subr.mxu0 0.0
  %3329 = vmatpush2.xpose.msra.mxu0 0.0
  %3330 = vmatprep.subr.mxu0 0.0
  %3331 = vmatpush2.xpose.msra.mxu0 0.0
  %3332 = vmatprep.subr.mxu0 0.0
  %3333 = vmatpush2.xpose.msra.mxu0 0.0
  %3334 = vmatprep.subr.mxu0 0.0
  %3335 = vmatpush2.xpose.msra.mxu0 0.0
  %3336 = vmatprep.mubr.f32.mxu0 0.0
  %3337 = vmatmul.mubr.f32.gmra.mxu0 %v3268
  %v3338 = vpop.f32.mrf.mxu0
  %v3339 = vadd.f32 %v153, %v3338
  %v3340 = vpop.f32.mrf.mxu0
  %3341 = vdwg.mxu0
  %v3342 = vsel %vm66, %v3261, -inf
  %3343 = vmax.xlane.f32.xlu0 %v3342
  %v3344 = vpop.xlane.xlu0 %3343
  %v3345 = vsel %vm66, %v3339, -inf
  %3346 = vmax.xlane.f32.xlu0 %v3345
  %v3347 = vpop.xlane.xlu0 %3346
  %v3348 = vsub.f32 %v3261, %v3344
  %v3349 = vsub.f32 %v3339, %v3347
  %v3350 = vmul.f32 %v3348, 1.442695
  %v3351 = vpow.pop %v3350
  %v3352 = vmul.f32 %v3349, 1.442695
  %v3353 = vpow.pop %v3352
  %v3354 = vsel %vm66, %v3351, 0.0
  %3355 = vadd.xlane.f32.xlu0 %v3354
  %v3356 = vpop.xlane.xlu0 %3355
  %v3357 = vsel %vm66, %v3353, 0.0
  %3358 = vadd.xlane.f32.xlu0 %v3357
  %v3359 = vpop.xlane.xlu0 %3358
  %v3360 = vrcp.pop %v3356
  %v3361 = vrcp.pop %v3359
  %v3362 = vmul.f32 %v3351, %v3360
  %v3363 = vmul.f32 %v3353, %v3361
  %3364 = vrot.lane.b32.xlu0 %v2354, 48
  %v3365 = vpop.permute.xlu0 %3364
  %v3368 = vsel %vm66, %v3362, 0
  %3370 = vmatprep.subr.mxu0 0.0
  %3371 = vmatpush1.msra.mxu0 0.0
  %3372 = vmatprep.subr.mxu0 0.0
  %3373 = vmatpush1.msra.mxu0 0.0
  %3374 = vmatprep.subr.mxu0 0.0
  %3375 = vmatpush1.msra.mxu0 0.0
  %3376 = vmatprep.subr.mxu0 0.0
  %3377 = vmatpush1.msra.mxu0 0.0
  %3378 = vmatprep.subr.mxu0 0.0
  %3379 = vmatpush1.msra.mxu0 0.0
  %3380 = vmatprep.subr.mxu0 0.0
  %3381 = vmatpush1.msra.mxu0 0.0
  %3382 = vmatprep.subr.mxu0 0.0
  %3383 = vmatpush1.msra.mxu0 0.0
  %3384 = vmatprep.subr.mxu0 0.0
  %3385 = vmatpush1.msra.mxu0 0.0
  %3386 = vmatprep.subr.mxu0 0.0
  %3387 = vmatpush1.msra.mxu0 0.0
  %3388 = vmatprep.subr.mxu0 0.0
  %3389 = vmatpush1.msra.mxu0 0.0
  %3390 = vmatprep.subr.mxu0 0.0
  %3391 = vmatpush1.msra.mxu0 0.0
  %3392 = vmatprep.subr.mxu0 0.0
  %3393 = vmatpush1.msra.mxu0 0.0
  %3394 = vmatprep.subr.mxu0 0.0
  %3395 = vmatpush1.msra.mxu0 0.0
  %3396 = vmatprep.subr.mxu0 0.0
  %3397 = vmatpush1.msra.mxu0 0.0
  %3398 = vmatprep.subr.mxu0 0.0
  %3399 = vmatpush1.msra.mxu0 0.0
  %3400 = vmatprep.subr.mxu0 0.0
  %3401 = vmatpush1.msra.mxu0 %v3365
  %3402 = vmatprep.subr.mxu0 0.0
  %3403 = vmatpush2.msra.mxu0 0.0
  %3404 = vmatprep.subr.mxu0 0.0
  %3405 = vmatpush2.msra.mxu0 0.0
  %3406 = vmatprep.subr.mxu0 0.0
  %3407 = vmatpush2.msra.mxu0 0.0
  %3408 = vmatprep.subr.mxu0 0.0
  %3409 = vmatpush2.msra.mxu0 0.0
  %3410 = vmatprep.subr.mxu0 0.0
  %3411 = vmatpush2.msra.mxu0 0.0
  %3412 = vmatprep.subr.mxu0 0.0
  %3413 = vmatpush2.msra.mxu0 0.0
  %3414 = vmatprep.subr.mxu0 0.0
  %3415 = vmatpush2.msra.mxu0 0.0
  %3416 = vmatprep.subr.mxu0 0.0
  %3417 = vmatpush2.msra.mxu0 0.0
  %3418 = vmatprep.subr.mxu0 0.0
  %3419 = vmatpush2.msra.mxu0 0.0
  %3420 = vmatprep.subr.mxu0 0.0
  %3421 = vmatpush2.msra.mxu0 0.0
  %3422 = vmatprep.subr.mxu0 0.0
  %3423 = vmatpush2.msra.mxu0 0.0
  %3424 = vmatprep.subr.mxu0 0.0
  %3425 = vmatpush2.msra.mxu0 0.0
  %3426 = vmatprep.subr.mxu0 0.0
  %3427 = vmatpush2.msra.mxu0 0.0
  %3428 = vmatprep.subr.mxu0 0.0
  %3429 = vmatpush2.msra.mxu0 0.0
  %3430 = vmatprep.subr.mxu0 0.0
  %3431 = vmatpush2.msra.mxu0 0.0
  %3432 = vmatprep.subr.mxu0 0.0
  %3433 = vmatpush2.msra.mxu0 0.0
  %3434 = vmatprep.mubr.f32.mxu0 0.0
  %3435 = vmatmul.mubr.f32.gmra.mxu0 %v3368
  %v3436 = vpop.f32.mrf.mxu0
  %v3437 = vadd.f32 0.0, %v3436
  %v3438 = vpop.f32.mrf.mxu0
  %3439 = vdwg.mxu0
  %3440 = vrot.lane.b32.xlu0 %v2359, 48
  %v3441 = vpop.permute.xlu0 %3440
  %v3444 = vsel %vm66, %v3363, 0
  %3446 = vmatprep.subr.mxu0 0.0
  %3447 = vmatpush1.msra.mxu0 0.0
  %3448 = vmatprep.subr.mxu0 0.0
  %3449 = vmatpush1.msra.mxu0 0.0
  %3450 = vmatprep.subr.mxu0 0.0
  %3451 = vmatpush1.msra.mxu0 0.0
  %3452 = vmatprep.subr.mxu0 0.0
  %3453 = vmatpush1.msra.mxu0 0.0
  %3454 = vmatprep.subr.mxu0 0.0
  %3455 = vmatpush1.msra.mxu0 0.0
  %3456 = vmatprep.subr.mxu0 0.0
  %3457 = vmatpush1.msra.mxu0 0.0
  %3458 = vmatprep.subr.mxu0 0.0
  %3459 = vmatpush1.msra.mxu0 0.0
  %3460 = vmatprep.subr.mxu0 0.0
  %3461 = vmatpush1.msra.mxu0 0.0
  %3462 = vmatprep.subr.mxu0 0.0
  %3463 = vmatpush1.msra.mxu0 0.0
  %3464 = vmatprep.subr.mxu0 0.0
  %3465 = vmatpush1.msra.mxu0 0.0
  %3466 = vmatprep.subr.mxu0 0.0
  %3467 = vmatpush1.msra.mxu0 0.0
  %3468 = vmatprep.subr.mxu0 0.0
  %3469 = vmatpush1.msra.mxu0 0.0
  %3470 = vmatprep.subr.mxu0 0.0
  %3471 = vmatpush1.msra.mxu0 0.0
  %3472 = vmatprep.subr.mxu0 0.0
  %3473 = vmatpush1.msra.mxu0 0.0
  %3474 = vmatprep.subr.mxu0 0.0
  %3475 = vmatpush1.msra.mxu0 0.0
  %3476 = vmatprep.subr.mxu0 0.0
  %3477 = vmatpush1.msra.mxu0 %v3441
  %3478 = vmatprep.subr.mxu0 0.0
  %3479 = vmatpush2.msra.mxu0 0.0
  %3480 = vmatprep.subr.mxu0 0.0
  %3481 = vmatpush2.msra.mxu0 0.0
  %3482 = vmatprep.subr.mxu0 0.0
  %3483 = vmatpush2.msra.mxu0 0.0
  %3484 = vmatprep.subr.mxu0 0.0
  %3485 = vmatpush2.msra.mxu0 0.0
  %3486 = vmatprep.subr.mxu0 0.0
  %3487 = vmatpush2.msra.mxu0 0.0
  %3488 = vmatprep.subr.mxu0 0.0
  %3489 = vmatpush2.msra.mxu0 0.0
  %3490 = vmatprep.subr.mxu0 0.0
  %3491 = vmatpush2.msra.mxu0 0.0
  %3492 = vmatprep.subr.mxu0 0.0
  %3493 = vmatpush2.msra.mxu0 0.0
  %3494 = vmatprep.subr.mxu0 0.0
  %3495 = vmatpush2.msra.mxu0 0.0
  %3496 = vmatprep.subr.mxu0 0.0
  %3497 = vmatpush2.msra.mxu0 0.0
  %3498 = vmatprep.subr.mxu0 0.0
  %3499 = vmatpush2.msra.mxu0 0.0
  %3500 = vmatprep.subr.mxu0 0.0
  %3501 = vmatpush2.msra.mxu0 0.0
  %3502 = vmatprep.subr.mxu0 0.0
  %3503 = vmatpush2.msra.mxu0 0.0
  %3504 = vmatprep.subr.mxu0 0.0
  %3505 = vmatpush2.msra.mxu0 0.0
  %3506 = vmatprep.subr.mxu0 0.0
  %3507 = vmatpush2.msra.mxu0 0.0
  %3508 = vmatprep.subr.mxu0 0.0
  %3509 = vmatpush2.msra.mxu0 0.0
  %3510 = vmatprep.mubr.f32.mxu0 0.0
  %3511 = vmatmul.mubr.f32.gmra.mxu0 %v3444
  %v3512 = vpop.f32.mrf.mxu0
  %v3513 = vadd.f32 0.0, %v3512
  %v3514 = vpop.f32.mrf.mxu0
  %3515 = vdwg.mxu0
  %s3516 = scalar_lea.vmem %s7, 48
  %v3517 = vld [vmem:[%s3516] sm:$0xff]
  %v3519 = vsel %vm66, %v3437, 0
  %v3522 = vsel %vm66, %v3513, 0
  %3524 = vmatprep.subr.mxu0 0.0
  %3525 = vmatpush1.msra.mxu0 0.0
  %3526 = vmatprep.subr.mxu0 0.0
  %3527 = vmatpush1.msra.mxu0 0.0
  %3528 = vmatprep.subr.mxu0 0.0
  %3529 = vmatpush1.msra.mxu0 0.0
  %3530 = vmatprep.subr.mxu0 0.0
  %3531 = vmatpush1.msra.mxu0 0.0
  %3532 = vmatprep.subr.mxu0 0.0
  %3533 = vmatpush1.msra.mxu0 0.0
  %3534 = vmatprep.subr.mxu0 0.0
  %3535 = vmatpush1.msra.mxu0 0.0
  %3536 = vmatprep.subr.mxu0 0.0
  %3537 = vmatpush1.msra.mxu0 0.0
  %3538 = vmatprep.subr.mxu0 0.0
  %3539 = vmatpush1.msra.mxu0 0.0
  %3540 = vmatprep.subr.mxu0 0.0
  %3541 = vmatpush1.msra.mxu0 0.0
  %3542 = vmatprep.subr.mxu0 0.0
  %3543 = vmatpush1.msra.mxu0 0.0
  %3544 = vmatprep.subr.mxu0 0.0
  %3545 = vmatpush1.msra.mxu0 0.0
  %3546 = vmatprep.subr.mxu0 0.0
  %3547 = vmatpush1.msra.mxu0 0.0
  %3548 = vmatprep.subr.mxu0 0.0
  %3549 = vmatpush1.msra.mxu0 0.0
  %3550 = vmatprep.subr.mxu0 0.0
  %3551 = vmatpush1.msra.mxu0 0.0
  %3552 = vmatprep.subr.mxu0 0.0
  %3553 = vmatpush1.msra.mxu0 0.0
  %3554 = vmatprep.subr.mxu0 0.0
  %3555 = vmatpush1.msra.mxu0 %v3517
  %3556 = vmatprep.subr.mxu0 0.0
  %3557 = vmatpush2.msra.mxu0 0.0
  %3558 = vmatprep.subr.mxu0 0.0
  %3559 = vmatpush2.msra.mxu0 0.0
  %3560 = vmatprep.subr.mxu0 0.0
  %3561 = vmatpush2.msra.mxu0 0.0
  %3562 = vmatprep.subr.mxu0 0.0
  %3563 = vmatpush2.msra.mxu0 0.0
  %3564 = vmatprep.subr.mxu0 0.0
  %3565 = vmatpush2.msra.mxu0 0.0
  %3566 = vmatprep.subr.mxu0 0.0
  %3567 = vmatpush2.msra.mxu0 0.0
  %3568 = vmatprep.subr.mxu0 0.0
  %3569 = vmatpush2.msra.mxu0 0.0
  %3570 = vmatprep.subr.mxu0 0.0
  %3571 = vmatpush2.msra.mxu0 0.0
  %3572 = vmatprep.subr.mxu0 0.0
  %3573 = vmatpush2.msra.mxu0 0.0
  %3574 = vmatprep.subr.mxu0 0.0
  %3575 = vmatpush2.msra.mxu0 0.0
  %3576 = vmatprep.subr.mxu0 0.0
  %3577 = vmatpush2.msra.mxu0 0.0
  %3578 = vmatprep.subr.mxu0 0.0
  %3579 = vmatpush2.msra.mxu0 0.0
  %3580 = vmatprep.subr.mxu0 0.0
  %3581 = vmatpush2.msra.mxu0 0.0
  %3582 = vmatprep.subr.mxu0 0.0
  %3583 = vmatpush2.msra.mxu0 0.0
  %3584 = vmatprep.subr.mxu0 0.0
  %3585 = vmatpush2.msra.mxu0 0.0
  %3586 = vmatprep.subr.mxu0 0.0
  %3587 = vmatpush2.msra.mxu0 0.0
  %3588 = vmatprep.mubr.f32.mxu0 0.0
  %3589 = vmatmul.mubr.f32.gmra.mxu0 %v3519
  %v3590 = vpop.f32.mrf.mxu0
  %v3591 = vadd.f32 0.0, %v3590
  %v3592 = vpop.f32.mrf.mxu0
  %3593 = vmatprep.mubr.f32.mxu0 0.0
  %3594 = vmatmul.mubr.f32.gmra.mxu0 %v3522
  %v3595 = vpop.f32.mrf.mxu0
  %v3596 = vadd.f32 0.0, %v3595
  %v3597 = vpop.f32.mrf.mxu0
  %3598 = vdwg.mxu0
  %v3599 = vadd.f32 %v3178, %v3591
  %v3600 = vadd.f32 %v3183, %v3596
  %3601 = vrot.lane.b32.xlu0 %v2354, 104
  %v3602 = vpop.permute.xlu0 %3601
  %3603 = vrot.lane.b32.xlu0 %v2354, 72
  %v3604 = vpop.permute.xlu0 %3603
  %v3605 = vsel %vm66, %v3602, 0
  %v3607 = vsel %vm66, %v3604, 0
  %3609 = vmatprep.subr.mxu0 0.0
  %3610 = vmatpush1.xpose.msra.mxu0 0.0
  %3611 = vmatprep.subr.mxu0 0.0
  %3612 = vmatpush1.xpose.msra.mxu0 0.0
  %3613 = vmatprep.subr.mxu0 0.0
  %3614 = vmatpush1.xpose.msra.mxu0 0.0
  %3615 = vmatprep.subr.mxu0 0.0
  %3616 = vmatpush1.xpose.msra.mxu0 0.0
  %3617 = vmatprep.subr.mxu0 0.0
  %3618 = vmatpush1.xpose.msra.mxu0 0.0
  %3619 = vmatprep.subr.mxu0 0.0
  %3620 = vmatpush1.xpose.msra.mxu0 0.0
  %3621 = vmatprep.subr.mxu0 0.0
  %3622 = vmatpush1.xpose.msra.mxu0 0.0
  %3623 = vmatprep.subr.mxu0 0.0
  %3624 = vmatpush1.xpose.msra.mxu0 0.0
  %3625 = vmatprep.subr.mxu0 0.0
  %3626 = vmatpush1.xpose.msra.mxu0 0.0
  %3627 = vmatprep.subr.mxu0 0.0
  %3628 = vmatpush1.xpose.msra.mxu0 0.0
  %3629 = vmatprep.subr.mxu0 0.0
  %3630 = vmatpush1.xpose.msra.mxu0 0.0
  %3631 = vmatprep.subr.mxu0 0.0
  %3632 = vmatpush1.xpose.msra.mxu0 0.0
  %3633 = vmatprep.subr.mxu0 0.0
  %3634 = vmatpush1.xpose.msra.mxu0 0.0
  %3635 = vmatprep.subr.mxu0 0.0
  %3636 = vmatpush1.xpose.msra.mxu0 0.0
  %3637 = vmatprep.subr.mxu0 0.0
  %3638 = vmatpush1.xpose.msra.mxu0 0.0
  %3639 = vmatprep.subr.mxu0 0.0
  %3640 = vmatpush1.xpose.msra.mxu0 %v3607
  %3641 = vmatprep.subr.mxu0 0.0
  %3642 = vmatpush2.xpose.msra.mxu0 0.0
  %3643 = vmatprep.subr.mxu0 0.0
  %3644 = vmatpush2.xpose.msra.mxu0 0.0
  %3645 = vmatprep.subr.mxu0 0.0
  %3646 = vmatpush2.xpose.msra.mxu0 0.0
  %3647 = vmatprep.subr.mxu0 0.0
  %3648 = vmatpush2.xpose.msra.mxu0 0.0
  %3649 = vmatprep.subr.mxu0 0.0
  %3650 = vmatpush2.xpose.msra.mxu0 0.0
  %3651 = vmatprep.subr.mxu0 0.0
  %3652 = vmatpush2.xpose.msra.mxu0 0.0
  %3653 = vmatprep.subr.mxu0 0.0
  %3654 = vmatpush2.xpose.msra.mxu0 0.0
  %3655 = vmatprep.subr.mxu0 0.0
  %3656 = vmatpush2.xpose.msra.mxu0 0.0
  %3657 = vmatprep.subr.mxu0 0.0
  %3658 = vmatpush2.xpose.msra.mxu0 0.0
  %3659 = vmatprep.subr.mxu0 0.0
  %3660 = vmatpush2.xpose.msra.mxu0 0.0
  %3661 = vmatprep.subr.mxu0 0.0
  %3662 = vmatpush2.xpose.msra.mxu0 0.0
  %3663 = vmatprep.subr.mxu0 0.0
  %3664 = vmatpush2.xpose.msra.mxu0 0.0
  %3665 = vmatprep.subr.mxu0 0.0
  %3666 = vmatpush2.xpose.msra.mxu0 0.0
  %3667 = vmatprep.subr.mxu0 0.0
  %3668 = vmatpush2.xpose.msra.mxu0 0.0
  %3669 = vmatprep.subr.mxu0 0.0
  %3670 = vmatpush2.xpose.msra.mxu0 0.0
  %3671 = vmatprep.subr.mxu0 0.0
  %3672 = vmatpush2.xpose.msra.mxu0 0.0
  %3673 = vmatprep.mubr.f32.mxu0 0.0
  %3674 = vmatmul.mubr.f32.gmra.mxu0 %v3605
  %v3675 = vpop.f32.mrf.mxu0
  %v3676 = vadd.f32 %v153, %v3675
  %v3677 = vpop.f32.mrf.mxu0
  %3678 = vdwg.mxu0
  %3679 = vrot.lane.b32.xlu0 %v2359, 104
  %v3680 = vpop.permute.xlu0 %3679
  %3681 = vrot.lane.b32.xlu0 %v2359, 72
  %v3682 = vpop.permute.xlu0 %3681
  %v3683 = vsel %vm66, %v3680, 0
  %v3685 = vsel %vm66, %v3682, 0
  %3687 = vmatprep.subr.mxu0 0.0
  %3688 = vmatpush1.xpose.msra.mxu0 0.0
  %3689 = vmatprep.subr.mxu0 0.0
  %3690 = vmatpush1.xpose.msra.mxu0 0.0
  %3691 = vmatprep.subr.mxu0 0.0
  %3692 = vmatpush1.xpose.msra.mxu0 0.0
  %3693 = vmatprep.subr.mxu0 0.0
  %3694 = vmatpush1.xpose.msra.mxu0 0.0
  %3695 = vmatprep.subr.mxu0 0.0
  %3696 = vmatpush1.xpose.msra.mxu0 0.0
  %3697 = vmatprep.subr.mxu0 0.0
  %3698 = vmatpush1.xpose.msra.mxu0 0.0
  %3699 = vmatprep.subr.mxu0 0.0
  %3700 = vmatpush1.xpose.msra.mxu0 0.0
  %3701 = vmatprep.subr.mxu0 0.0
  %3702 = vmatpush1.xpose.msra.mxu0 0.0
  %3703 = vmatprep.subr.mxu0 0.0
  %3704 = vmatpush1.xpose.msra.mxu0 0.0
  %3705 = vmatprep.subr.mxu0 0.0
  %3706 = vmatpush1.xpose.msra.mxu0 0.0
  %3707 = vmatprep.subr.mxu0 0.0
  %3708 = vmatpush1.xpose.msra.mxu0 0.0
  %3709 = vmatprep.subr.mxu0 0.0
  %3710 = vmatpush1.xpose.msra.mxu0 0.0
  %3711 = vmatprep.subr.mxu0 0.0
  %3712 = vmatpush1.xpose.msra.mxu0 0.0
  %3713 = vmatprep.subr.mxu0 0.0
  %3714 = vmatpush1.xpose.msra.mxu0 0.0
  %3715 = vmatprep.subr.mxu0 0.0
  %3716 = vmatpush1.xpose.msra.mxu0 0.0
  %3717 = vmatprep.subr.mxu0 0.0
  %3718 = vmatpush1.xpose.msra.mxu0 %v3685
  %3719 = vmatprep.subr.mxu0 0.0
  %3720 = vmatpush2.xpose.msra.mxu0 0.0
  %3721 = vmatprep.subr.mxu0 0.0
  %3722 = vmatpush2.xpose.msra.mxu0 0.0
  %3723 = vmatprep.subr.mxu0 0.0
  %3724 = vmatpush2.xpose.msra.mxu0 0.0
  %3725 = vmatprep.subr.mxu0 0.0
  %3726 = vmatpush2.xpose.msra.mxu0 0.0
  %3727 = vmatprep.subr.mxu0 0.0
  %3728 = vmatpush2.xpose.msra.mxu0 0.0
  %3729 = vmatprep.subr.mxu0 0.0
  %3730 = vmatpush2.xpose.msra.mxu0 0.0
  %3731 = vmatprep.subr.mxu0 0.0
  %3732 = vmatpush2.xpose.msra.mxu0 0.0
  %3733 = vmatprep.subr.mxu0 0.0
  %3734 = vmatpush2.xpose.msra.mxu0 0.0
  %3735 = vmatprep.subr.mxu0 0.0
  %3736 = vmatpush2.xpose.msra.mxu0 0.0
  %3737 = vmatprep.subr.mxu0 0.0
  %3738 = vmatpush2.xpose.msra.mxu0 0.0
  %3739 = vmatprep.subr.mxu0 0.0
  %3740 = vmatpush2.xpose.msra.mxu0 0.0
  %3741 = vmatprep.subr.mxu0 0.0
  %3742 = vmatpush2.xpose.msra.mxu0 0.0
  %3743 = vmatprep.subr.mxu0 0.0
  %3744 = vmatpush2.xpose.msra.mxu0 0.0
  %3745 = vmatprep.subr.mxu0 0.0
  %3746 = vmatpush2.xpose.msra.mxu0 0.0
  %3747 = vmatprep.subr.mxu0 0.0
  %3748 = vmatpush2.xpose.msra.mxu0 0.0
  %3749 = vmatprep.subr.mxu0 0.0
  %3750 = vmatpush2.xpose.msra.mxu0 0.0
  %3751 = vmatprep.mubr.f32.mxu0 0.0
  %3752 = vmatmul.mubr.f32.gmra.mxu0 %v3683
  %v3753 = vpop.f32.mrf.mxu0
  %v3754 = vadd.f32 %v153, %v3753
  %v3755 = vpop.f32.mrf.mxu0
  %3756 = vdwg.mxu0
  %v3757 = vsel %vm66, %v3676, -inf
  %3758 = vmax.xlane.f32.xlu0 %v3757
  %v3759 = vpop.xlane.xlu0 %3758
  %v3760 = vsel %vm66, %v3754, -inf
  %3761 = vmax.xlane.f32.xlu0 %v3760
  %v3762 = vpop.xlane.xlu0 %3761
  %v3763 = vsub.f32 %v3676, %v3759
  %v3764 = vsub.f32 %v3754, %v3762
  %v3765 = vmul.f32 %v3763, 1.442695
  %v3766 = vpow.pop %v3765
  %v3767 = vmul.f32 %v3764, 1.442695
  %v3768 = vpow.pop %v3767
  %v3769 = vsel %vm66, %v3766, 0.0
  %3770 = vadd.xlane.f32.xlu0 %v3769
  %v3771 = vpop.xlane.xlu0 %3770
  %v3772 = vsel %vm66, %v3768, 0.0
  %3773 = vadd.xlane.f32.xlu0 %v3772
  %v3774 = vpop.xlane.xlu0 %3773
  %v3775 = vrcp.pop %v3771
  %v3776 = vrcp.pop %v3774
  %v3777 = vmul.f32 %v3766, %v3775
  %v3778 = vmul.f32 %v3768, %v3776
  %3779 = vrot.lane.b32.xlu0 %v2354, 40
  %v3780 = vpop.permute.xlu0 %3779
  %v3783 = vsel %vm66, %v3777, 0
  %3785 = vmatprep.subr.mxu0 0.0
  %3786 = vmatpush1.msra.mxu0 0.0
  %3787 = vmatprep.subr.mxu0 0.0
  %3788 = vmatpush1.msra.mxu0 0.0
  %3789 = vmatprep.subr.mxu0 0.0
  %3790 = vmatpush1.msra.mxu0 0.0
  %3791 = vmatprep.subr.mxu0 0.0
  %3792 = vmatpush1.msra.mxu0 0.0
  %3793 = vmatprep.subr.mxu0 0.0
  %3794 = vmatpush1.msra.mxu0 0.0
  %3795 = vmatprep.subr.mxu0 0.0
  %3796 = vmatpush1.msra.mxu0 0.0
  %3797 = vmatprep.subr.mxu0 0.0
  %3798 = vmatpush1.msra.mxu0 0.0
  %3799 = vmatprep.subr.mxu0 0.0
  %3800 = vmatpush1.msra.mxu0 0.0
  %3801 = vmatprep.subr.mxu0 0.0
  %3802 = vmatpush1.msra.mxu0 0.0
  %3803 = vmatprep.subr.mxu0 0.0
  %3804 = vmatpush1.msra.mxu0 0.0
  %3805 = vmatprep.subr.mxu0 0.0
  %3806 = vmatpush1.msra.mxu0 0.0
  %3807 = vmatprep.subr.mxu0 0.0
  %3808 = vmatpush1.msra.mxu0 0.0
  %3809 = vmatprep.subr.mxu0 0.0
  %3810 = vmatpush1.msra.mxu0 0.0
  %3811 = vmatprep.subr.mxu0 0.0
  %3812 = vmatpush1.msra.mxu0 0.0
  %3813 = vmatprep.subr.mxu0 0.0
  %3814 = vmatpush1.msra.mxu0 0.0
  %3815 = vmatprep.subr.mxu0 0.0
  %3816 = vmatpush1.msra.mxu0 %v3780
  %3817 = vmatprep.subr.mxu0 0.0
  %3818 = vmatpush2.msra.mxu0 0.0
  %3819 = vmatprep.subr.mxu0 0.0
  %3820 = vmatpush2.msra.mxu0 0.0
  %3821 = vmatprep.subr.mxu0 0.0
  %3822 = vmatpush2.msra.mxu0 0.0
  %3823 = vmatprep.subr.mxu0 0.0
  %3824 = vmatpush2.msra.mxu0 0.0
  %3825 = vmatprep.subr.mxu0 0.0
  %3826 = vmatpush2.msra.mxu0 0.0
  %3827 = vmatprep.subr.mxu0 0.0
  %3828 = vmatpush2.msra.mxu0 0.0
  %3829 = vmatprep.subr.mxu0 0.0
  %3830 = vmatpush2.msra.mxu0 0.0
  %3831 = vmatprep.subr.mxu0 0.0
  %3832 = vmatpush2.msra.mxu0 0.0
  %3833 = vmatprep.subr.mxu0 0.0
  %3834 = vmatpush2.msra.mxu0 0.0
  %3835 = vmatprep.subr.mxu0 0.0
  %3836 = vmatpush2.msra.mxu0 0.0
  %3837 = vmatprep.subr.mxu0 0.0
  %3838 = vmatpush2.msra.mxu0 0.0
  %3839 = vmatprep.subr.mxu0 0.0
  %3840 = vmatpush2.msra.mxu0 0.0
  %3841 = vmatprep.subr.mxu0 0.0
  %3842 = vmatpush2.msra.mxu0 0.0
  %3843 = vmatprep.subr.mxu0 0.0
  %3844 = vmatpush2.msra.mxu0 0.0
  %3845 = vmatprep.subr.mxu0 0.0
  %3846 = vmatpush2.msra.mxu0 0.0
  %3847 = vmatprep.subr.mxu0 0.0
  %3848 = vmatpush2.msra.mxu0 0.0
  %3849 = vmatprep.mubr.f32.mxu0 0.0
  %3850 = vmatmul.mubr.f32.gmra.mxu0 %v3783
  %v3851 = vpop.f32.mrf.mxu0
  %v3852 = vadd.f32 0.0, %v3851
  %v3853 = vpop.f32.mrf.mxu0
  %3854 = vdwg.mxu0
  %3855 = vrot.lane.b32.xlu0 %v2359, 40
  %v3856 = vpop.permute.xlu0 %3855
  %v3859 = vsel %vm66, %v3778, 0
  %3861 = vmatprep.subr.mxu0 0.0
  %3862 = vmatpush1.msra.mxu0 0.0
  %3863 = vmatprep.subr.mxu0 0.0
  %3864 = vmatpush1.msra.mxu0 0.0
  %3865 = vmatprep.subr.mxu0 0.0
  %3866 = vmatpush1.msra.mxu0 0.0
  %3867 = vmatprep.subr.mxu0 0.0
  %3868 = vmatpush1.msra.mxu0 0.0
  %3869 = vmatprep.subr.mxu0 0.0
  %3870 = vmatpush1.msra.mxu0 0.0
  %3871 = vmatprep.subr.mxu0 0.0
  %3872 = vmatpush1.msra.mxu0 0.0
  %3873 = vmatprep.subr.mxu0 0.0
  %3874 = vmatpush1.msra.mxu0 0.0
  %3875 = vmatprep.subr.mxu0 0.0
  %3876 = vmatpush1.msra.mxu0 0.0
  %3877 = vmatprep.subr.mxu0 0.0
  %3878 = vmatpush1.msra.mxu0 0.0
  %3879 = vmatprep.subr.mxu0 0.0
  %3880 = vmatpush1.msra.mxu0 0.0
  %3881 = vmatprep.subr.mxu0 0.0
  %3882 = vmatpush1.msra.mxu0 0.0
  %3883 = vmatprep.subr.mxu0 0.0
  %3884 = vmatpush1.msra.mxu0 0.0
  %3885 = vmatprep.subr.mxu0 0.0
  %3886 = vmatpush1.msra.mxu0 0.0
  %3887 = vmatprep.subr.mxu0 0.0
  %3888 = vmatpush1.msra.mxu0 0.0
  %3889 = vmatprep.subr.mxu0 0.0
  %3890 = vmatpush1.msra.mxu0 0.0
  %3891 = vmatprep.subr.mxu0 0.0
  %3892 = vmatpush1.msra.mxu0 %v3856
  %3893 = vmatprep.subr.mxu0 0.0
  %3894 = vmatpush2.msra.mxu0 0.0
  %3895 = vmatprep.subr.mxu0 0.0
  %3896 = vmatpush2.msra.mxu0 0.0
  %3897 = vmatprep.subr.mxu0 0.0
  %3898 = vmatpush2.msra.mxu0 0.0
  %3899 = vmatprep.subr.mxu0 0.0
  %3900 = vmatpush2.msra.mxu0 0.0
  %3901 = vmatprep.subr.mxu0 0.0
  %3902 = vmatpush2.msra.mxu0 0.0
  %3903 = vmatprep.subr.mxu0 0.0
  %3904 = vmatpush2.msra.mxu0 0.0
  %3905 = vmatprep.subr.mxu0 0.0
  %3906 = vmatpush2.msra.mxu0 0.0
  %3907 = vmatprep.subr.mxu0 0.0
  %3908 = vmatpush2.msra.mxu0 0.0
  %3909 = vmatprep.subr.mxu0 0.0
  %3910 = vmatpush2.msra.mxu0 0.0
  %3911 = vmatprep.subr.mxu0 0.0
  %3912 = vmatpush2.msra.mxu0 0.0
  %3913 = vmatprep.subr.mxu0 0.0
  %3914 = vmatpush2.msra.mxu0 0.0
  %3915 = vmatprep.subr.mxu0 0.0
  %3916 = vmatpush2.msra.mxu0 0.0
  %3917 = vmatprep.subr.mxu0 0.0
  %3918 = vmatpush2.msra.mxu0 0.0
  %3919 = vmatprep.subr.mxu0 0.0
  %3920 = vmatpush2.msra.mxu0 0.0
  %3921 = vmatprep.subr.mxu0 0.0
  %3922 = vmatpush2.msra.mxu0 0.0
  %3923 = vmatprep.subr.mxu0 0.0
  %3924 = vmatpush2.msra.mxu0 0.0
  %3925 = vmatprep.mubr.f32.mxu0 0.0
  %3926 = vmatmul.mubr.f32.gmra.mxu0 %v3859
  %v3927 = vpop.f32.mrf.mxu0
  %v3928 = vadd.f32 0.0, %v3927
  %v3929 = vpop.f32.mrf.mxu0
  %3930 = vdwg.mxu0
  %s3931 = scalar_lea.vmem %s7, 56
  %v3932 = vld [vmem:[%s3931] sm:$0xff]
  %v3934 = vsel %vm66, %v3852, 0
  %v3937 = vsel %vm66, %v3928, 0
  %3939 = vmatprep.subr.mxu0 0.0
  %3940 = vmatpush1.msra.mxu0 0.0
  %3941 = vmatprep.subr.mxu0 0.0
  %3942 = vmatpush1.msra.mxu0 0.0
  %3943 = vmatprep.subr.mxu0 0.0
  %3944 = vmatpush1.msra.mxu0 0.0
  %3945 = vmatprep.subr.mxu0 0.0
  %3946 = vmatpush1.msra.mxu0 0.0
  %3947 = vmatprep.subr.mxu0 0.0
  %3948 = vmatpush1.msra.mxu0 0.0
  %3949 = vmatprep.subr.mxu0 0.0
  %3950 = vmatpush1.msra.mxu0 0.0
  %3951 = vmatprep.subr.mxu0 0.0
  %3952 = vmatpush1.msra.mxu0 0.0
  %3953 = vmatprep.subr.mxu0 0.0
  %3954 = vmatpush1.msra.mxu0 0.0
  %3955 = vmatprep.subr.mxu0 0.0
  %3956 = vmatpush1.msra.mxu0 0.0
  %3957 = vmatprep.subr.mxu0 0.0
  %3958 = vmatpush1.msra.mxu0 0.0
  %3959 = vmatprep.subr.mxu0 0.0
  %3960 = vmatpush1.msra.mxu0 0.0
  %3961 = vmatprep.subr.mxu0 0.0
  %3962 = vmatpush1.msra.mxu0 0.0
  %3963 = vmatprep.subr.mxu0 0.0
  %3964 = vmatpush1.msra.mxu0 0.0
  %3965 = vmatprep.subr.mxu0 0.0
  %3966 = vmatpush1.msra.mxu0 0.0
  %3967 = vmatprep.subr.mxu0 0.0
  %3968 = vmatpush1.msra.mxu0 0.0
  %3969 = vmatprep.subr.mxu0 0.0
  %3970 = vmatpush1.msra.mxu0 %v3932
  %3971 = vmatprep.subr.mxu0 0.0
  %3972 = vmatpush2.msra.mxu0 0.0
  %3973 = vmatprep.subr.mxu0 0.0
  %3974 = vmatpush2.msra.mxu0 0.0
  %3975 = vmatprep.subr.mxu0 0.0
  %3976 = vmatpush2.msra.mxu0 0.0
  %3977 = vmatprep.subr.mxu0 0.0
  %3978 = vmatpush2.msra.mxu0 0.0
  %3979 = vmatprep.subr.mxu0 0.0
  %3980 = vmatpush2.msra.mxu0 0.0
  %3981 = vmatprep.subr.mxu0 0.0
  %3982 = vmatpush2.msra.mxu0 0.0
  %3983 = vmatprep.subr.mxu0 0.0
  %3984 = vmatpush2.msra.mxu0 0.0
  %3985 = vmatprep.subr.mxu0 0.0
  %3986 = vmatpush2.msra.mxu0 0.0
  %3987 = vmatprep.subr.mxu0 0.0
  %3988 = vmatpush2.msra.mxu0 0.0
  %3989 = vmatprep.subr.mxu0 0.0
  %3990 = vmatpush2.msra.mxu0 0.0
  %3991 = vmatprep.subr.mxu0 0.0
  %3992 = vmatpush2.msra.mxu0 0.0
  %3993 = vmatprep.subr.mxu0 0.0
  %3994 = vmatpush2.msra.mxu0 0.0
  %3995 = vmatprep.subr.mxu0 0.0
  %3996 = vmatpush2.msra.mxu0 0.0
  %3997 = vmatprep.subr.mxu0 0.0
  %3998 = vmatpush2.msra.mxu0 0.0
  %3999 = vmatprep.subr.mxu0 0.0
  %4000 = vmatpush2.msra.mxu0 0.0
  %4001 = vmatprep.subr.mxu0 0.0
  %4002 = vmatpush2.msra.mxu0 0.0
  %4003 = vmatprep.mubr.f32.mxu0 0.0
  %4004 = vmatmul.mubr.f32.gmra.mxu0 %v3934
  %v4005 = vpop.f32.mrf.mxu0
  %v4006 = vadd.f32 0.0, %v4005
  %v4007 = vpop.f32.mrf.mxu0
  %4008 = vmatprep.mubr.f32.mxu0 0.0
  %4009 = vmatmul.mubr.f32.gmra.mxu0 %v3937
  %v4010 = vpop.f32.mrf.mxu0
  %v4011 = vadd.f32 0.0, %v4010
  %v4012 = vpop.f32.mrf.mxu0
  %4013 = vdwg.mxu0
  %v4014 = vadd.f32 %v3599, %v4006
  %v4015 = vadd.f32 %v3600, %v4011
  %v4016 = vadd.f32 %v2216, %v4014
  %v4017 = vadd.f32 %v2217, %v4015
  %s4018 = scalar_lea.vmem %s8, 1
  %v4019 = vld [vmem:[%s4018] sm:$0x1]
  %v4021 = vlaneseq
  %v4022 = vshrl.u32 %v4021, 7
  %v4023 = vsub.s32 0, %v4022
  %v4024 = vrot.slane %v4019, %v4023
  %v4026 = vadd.f32 %v4016, %v4024
  %v4027 = vadd.f32 %v4017, %v4024
  %s4028 = scalar_lea.vmem %s9, 1
  %v4029 = vld [vmem:[%s4028] sm:$0x1]
  %s4030 = scalar_lea.vmem %s10, 1
  %v4031 = vld [vmem:[%s4030] sm:$0x1]
  %v4032 = vsel %vm156, %v4026, 0.0
  %4033 = vadd.xlane.f32.xlu0 %v4032
  %v4034 = vpop.xlane.xlu0 %4033
  %v4035 = vsel %vm156, %v4027, 0.0
  %4036 = vadd.xlane.f32.xlu0 %v4035
  %v4037 = vpop.xlane.xlu0 %4036
  %v4038 = vmul.f32 %v4034, %v163
  %v4039 = vmul.f32 %v4037, %v163
  %v4040 = vmul.f32 %v4026, %v4026
  %v4041 = vmul.f32 %v4027, %v4027
  %v4042 = vsel %vm156, %v4040, 0.0
  %4043 = vadd.xlane.f32.xlu0 %v4042
  %v4044 = vpop.xlane.xlu0 %4043
  %v4045 = vsel %vm156, %v4041, 0.0
  %4046 = vadd.xlane.f32.xlu0 %v4045
  %v4047 = vpop.xlane.xlu0 %4046
  %v4048 = vmul.f32 %v4044, %v163
  %v4049 = vmul.f32 %v4047, %v163
  %v4050 = vmul.f32 %v4038, %v4038
  %v4051 = vmul.f32 %v4039, %v4039
  %v4052 = vsub.f32 %v4048, %v4050
  %v4053 = vsub.f32 %v4049, %v4051
  %v4054 = vsub.f32 %v4026, %v4038
  %v4055 = vsub.f32 %v4027, %v4039
  %v4056 = vadd.f32 %v4052, 1e-05
  %v4057 = vadd.f32 %v4053, 1e-05
  %v4058 = vrsqrt.pop %v4056
  %v4059 = vrsqrt.pop %v4057
  %v4060 = vmul.f32 %v4054, %v4058
  %v4061 = vmul.f32 %v4055, %v4059
  %v4063 = vlaneseq
  %v4064 = vshrl.u32 %v4063, 7
  %v4065 = vsub.s32 0, %v4064
  %v4066 = vrot.slane %v4029, %v4065
  %v4068 = vmul.f32 %v4060, %v4066
  %v4069 = vmul.f32 %v4061, %v4066
  %v4071 = vlaneseq
  %v4072 = vshrl.u32 %v4071, 7
  %v4073 = vsub.s32 0, %v4072
  %v4074 = vrot.slane %v4031, %v4073
  %v4076 = vadd.f32 %v4068, %v4074
  %v4077 = vadd.f32 %v4069, %v4074
  %s4078 = scalar_lea.vmem %s11, 32
  %v4079 = vld [vmem:[%s4078] sm:$0xff]
  %v4080 = vld [vmem:[%s4078 + $0x8] sm:$0xff]
  %v4081 = vld [vmem:[%s4078 + $0x10] sm:$0xff]
  %v4082 = vld [vmem:[%s4078 + $0x18] sm:$0xff]
  %s4083 = scalar_lea.vmem %s12, 1
  %v4084 = vld [vmem:[%s4083] sm:$0x1]
  %v4086 = vlaneseq
  %v4087 = vshrl.u32 %v4086, 7
  %v4088 = vsub.s32 0, %v4087
  %v4089 = vrot.slane %v4084, %v4088
  %v4092 = vsel %vm156, %v4076, 0
  %v4095 = vsel %vm156, %v4077, 0
  %4097 = vmatprep.subr.mxu0 0.0
  %4098 = vmatpush1.msra.mxu0 0.0
  %4099 = vmatprep.subr.mxu0 0.0
  %4100 = vmatpush1.msra.mxu0 0.0
  %4101 = vmatprep.subr.mxu0 0.0
  %4102 = vmatpush1.msra.mxu0 0.0
  %4103 = vmatprep.subr.mxu0 0.0
  %4104 = vmatpush1.msra.mxu0 0.0
  %4105 = vmatprep.subr.mxu0 0.0
  %4106 = vmatpush1.msra.mxu0 0.0
  %4107 = vmatprep.subr.mxu0 0.0
  %4108 = vmatpush1.msra.mxu0 0.0
  %4109 = vmatprep.subr.mxu0 0.0
  %4110 = vmatpush1.msra.mxu0 0.0
  %4111 = vmatprep.subr.mxu0 0.0
  %4112 = vmatpush1.msra.mxu0 0.0
  %4113 = vmatprep.subr.mxu0 0.0
  %4114 = vmatpush1.msra.mxu0 0.0
  %4115 = vmatprep.subr.mxu0 0.0
  %4116 = vmatpush1.msra.mxu0 0.0
  %4117 = vmatprep.subr.mxu0 0.0
  %4118 = vmatpush1.msra.mxu0 0.0
  %4119 = vmatprep.subr.mxu0 0.0
  %4120 = vmatpush1.msra.mxu0 0.0
  %4121 = vmatprep.subr.mxu0 0.0
  %4122 = vmatpush1.msra.mxu0 %v4082
  %4123 = vmatprep.subr.mxu0 0.0
  %4124 = vmatpush1.msra.mxu0 %v4081
  %4125 = vmatprep.subr.mxu0 0.0
  %4126 = vmatpush1.msra.mxu0 %v4080
  %4127 = vmatprep.subr.mxu0 0.0
  %4128 = vmatpush1.msra.mxu0 %v4079
  %4129 = vmatprep.subr.mxu0 0.0
  %4130 = vmatpush2.msra.mxu0 0.0
  %4131 = vmatprep.subr.mxu0 0.0
  %4132 = vmatpush2.msra.mxu0 0.0
  %4133 = vmatprep.subr.mxu0 0.0
  %4134 = vmatpush2.msra.mxu0 0.0
  %4135 = vmatprep.subr.mxu0 0.0
  %4136 = vmatpush2.msra.mxu0 0.0
  %4137 = vmatprep.subr.mxu0 0.0
  %4138 = vmatpush2.msra.mxu0 0.0
  %4139 = vmatprep.subr.mxu0 0.0
  %4140 = vmatpush2.msra.mxu0 0.0
  %4141 = vmatprep.subr.mxu0 0.0
  %4142 = vmatpush2.msra.mxu0 0.0
  %4143 = vmatprep.subr.mxu0 0.0
  %4144 = vmatpush2.msra.mxu0 0.0
  %4145 = vmatprep.subr.mxu0 0.0
  %4146 = vmatpush2.msra.mxu0 0.0
  %4147 = vmatprep.subr.mxu0 0.0
  %4148 = vmatpush2.msra.mxu0 0.0
  %4149 = vmatprep.subr.mxu0 0.0
  %4150 = vmatpush2.msra.mxu0 0.0
  %4151 = vmatprep.subr.mxu0 0.0
  %4152 = vmatpush2.msra.mxu0 0.0
  %4153 = vmatprep.subr.mxu0 0.0
  %4154 = vmatpush2.msra.mxu0 0.0
  %4155 = vmatprep.subr.mxu0 0.0
  %4156 = vmatpush2.msra.mxu0 0.0
  %4157 = vmatprep.subr.mxu0 0.0
  %4158 = vmatpush2.msra.mxu0 0.0
  %4159 = vmatprep.subr.mxu0 0.0
  %4160 = vmatpush2.msra.mxu0 0.0
  %4161 = vmatprep.mubr.f32.mxu0 0.0
  %4162 = vmatmul.mubr.f32.gmra.mxu0 %v4092
  %v4163 = vpop.f32.mrf.mxu0
  %v4164 = vadd.f32 %v4089, %v4163
  %v4165 = vpop.f32.mrf.mxu0
  %4166 = vmatprep.mubr.f32.mxu0 0.0
  %4167 = vmatmul.mubr.f32.gmra.mxu0 %v4095
  %v4168 = vpop.f32.mrf.mxu0
  %v4169 = vadd.f32 %v4089, %v4168
  %v4170 = vpop.f32.mrf.mxu0
  %4171 = vdwg.mxu0
  %v4172 = vmul.f32 %v4164, 0.5
  %v4173 = vmul.f32 %v4169, 0.5
  %v4174 = vmul.f32 %v4164, 0.044715
  %v4175 = vmul.f32 %v4169, 0.044715
  %v4176 = vmul.f32 %v4174, %v4164
  %v4177 = vmul.f32 %v4175, %v4169
  %v4178 = vmul.f32 %v4176, %v4164
  %v4179 = vmul.f32 %v4177, %v4169
  %v4180 = vadd.f32 %v4164, %v4178
  %v4181 = vadd.f32 %v4169, %v4179
  %v4182 = vmul.f32 %v4180, 0.7978846
  %v4183 = vmul.f32 %v4181, 0.7978846
  %v4184 = vtanh.pop %v4182
  %v4185 = vtanh.pop %v4183
  %v4186 = vadd.f32 %v4184, 1.0
  %v4187 = vadd.f32 %v4185, 1.0
  %v4188 = vmul.f32 %v4172, %v4186
  %v4189 = vmul.f32 %v4173, %v4187
  %s4190 = scalar_lea.vmem %s13, 128
  %v4191 = vld [vmem:[%s4190] sm:$0xff]
  %v4192 = vld [vmem:[%s4190 + $0x8] sm:$0xff]
  %v4193 = vld [vmem:[%s4190 + $0x10] sm:$0xff]
  %v4194 = vld [vmem:[%s4190 + $0x18] sm:$0xff]
  %v4195 = vld [vmem:[%s4190 + $0x20] sm:$0xff]
  %v4196 = vld [vmem:[%s4190 + $0x28] sm:$0xff]
  %v4197 = vld [vmem:[%s4190 + $0x30] sm:$0xff]
  %v4198 = vld [vmem:[%s4190 + $0x38] sm:$0xff]
  %v4199 = vld [vmem:[%s4190 + $0x40] sm:$0xff]
  %v4200 = vld [vmem:[%s4190 + $0x48] sm:$0xff]
  %v4201 = vld [vmem:[%s4190 + $0x50] sm:$0xff]
  %v4202 = vld [vmem:[%s4190 + $0x58] sm:$0xff]
  %v4203 = vld [vmem:[%s4190 + $0x60] sm:$0xff]
  %v4204 = vld [vmem:[%s4190 + $0x68] sm:$0xff]
  %v4205 = vld [vmem:[%s4190 + $0x70] sm:$0xff]
  %v4206 = vld [vmem:[%s4190 + $0x78] sm:$0xff]
  %s4207 = scalar_lea.vmem %s14, 1
  %v4208 = vld [vmem:[%s4207] sm:$0x1]
  %v4210 = vlaneseq
  %v4211 = vshrl.u32 %v4210, 7
  %v4212 = vsub.s32 0, %v4211
  %v4213 = vrot.slane %v4208, %v4212
  %4215 = vmatprep.subr.mxu0 0.0
  %4216 = vmatpush1.msra.mxu0 %v4206
  %4217 = vmatprep.subr.mxu0 0.0
  %4218 = vmatpush1.msra.mxu0 %v4205
  %4219 = vmatprep.subr.mxu0 0.0
  %4220 = vmatpush1.msra.mxu0 %v4204
  %4221 = vmatprep.subr.mxu0 0.0
  %4222 = vmatpush1.msra.mxu0 %v4203
  %4223 = vmatprep.subr.mxu0 0.0
  %4224 = vmatpush1.msra.mxu0 %v4202
  %4225 = vmatprep.subr.mxu0 0.0
  %4226 = vmatpush1.msra.mxu0 %v4201
  %4227 = vmatprep.subr.mxu0 0.0
  %4228 = vmatpush1.msra.mxu0 %v4200
  %4229 = vmatprep.subr.mxu0 0.0
  %4230 = vmatpush1.msra.mxu0 %v4199
  %4231 = vmatprep.subr.mxu0 0.0
  %4232 = vmatpush1.msra.mxu0 %v4198
  %4233 = vmatprep.subr.mxu0 0.0
  %4234 = vmatpush1.msra.mxu0 %v4197
  %4235 = vmatprep.subr.mxu0 0.0
  %4236 = vmatpush1.msra.mxu0 %v4196
  %4237 = vmatprep.subr.mxu0 0.0
  %4238 = vmatpush1.msra.mxu0 %v4195
  %4239 = vmatprep.subr.mxu0 0.0
  %4240 = vmatpush1.msra.mxu0 %v4194
  %4241 = vmatprep.subr.mxu0 0.0
  %4242 = vmatpush1.msra.mxu0 %v4193
  %4243 = vmatprep.subr.mxu0 0.0
  %4244 = vmatpush1.msra.mxu0 %v4192
  %4245 = vmatprep.subr.mxu0 0.0
  %4246 = vmatpush1.msra.mxu0 %v4191
  %4247 = vmatprep.subr.mxu0 0.0
  %4248 = vmatpush2.msra.mxu0 0.0
  %4249 = vmatprep.subr.mxu0 0.0
  %4250 = vmatpush2.msra.mxu0 0.0
  %4251 = vmatprep.subr.mxu0 0.0
  %4252 = vmatpush2.msra.mxu0 0.0
  %4253 = vmatprep.subr.mxu0 0.0
  %4254 = vmatpush2.msra.mxu0 0.0
  %4255 = vmatprep.subr.mxu0 0.0
  %4256 = vmatpush2.msra.mxu0 0.0
  %4257 = vmatprep.subr.mxu0 0.0
  %4258 = vmatpush2.msra.mxu0 0.0
  %4259 = vmatprep.subr.mxu0 0.0
  %4260 = vmatpush2.msra.mxu0 0.0
  %4261 = vmatprep.subr.mxu0 0.0
  %4262 = vmatpush2.msra.mxu0 0.0
  %4263 = vmatprep.subr.mxu0 0.0
  %4264 = vmatpush2.msra.mxu0 0.0
  %4265 = vmatprep.subr.mxu0 0.0
  %4266 = vmatpush2.msra.mxu0 0.0
  %4267 = vmatprep.subr.mxu0 0.0
  %4268 = vmatpush2.msra.mxu0 0.0
  %4269 = vmatprep.subr.mxu0 0.0
  %4270 = vmatpush2.msra.mxu0 0.0
  %4271 = vmatprep.subr.mxu0 0.0
  %4272 = vmatpush2.msra.mxu0 0.0
  %4273 = vmatprep.subr.mxu0 0.0
  %4274 = vmatpush2.msra.mxu0 0.0
  %4275 = vmatprep.subr.mxu0 0.0
  %4276 = vmatpush2.msra.mxu0 0.0
  %4277 = vmatprep.subr.mxu0 0.0
  %4278 = vmatpush2.msra.mxu0 0.0
  %4279 = vmatprep.mubr.f32.mxu0 0.0
  %4280 = vmatmul.mubr.f32.gmra.mxu0 %v4188
  %v4281 = vpop.f32.mrf.mxu0
  %v4282 = vadd.f32 %v4213, %v4281
  %v4283 = vpop.f32.mrf.mxu0
  %4284 = vmatprep.mubr.f32.mxu0 0.0
  %4285 = vmatmul.mubr.f32.gmra.mxu0 %v4189
  %v4286 = vpop.f32.mrf.mxu0
  %v4287 = vadd.f32 %v4213, %v4286
  %v4288 = vpop.f32.mrf.mxu0
  %4289 = vdwg.mxu0
  %v4290 = vadd.f32 %v4026, %v4282
  %v4291 = vadd.f32 %v4027, %v4287
  %v4292 = vld [vmem:[%s15] sm:$0xff]
  %v4293 = vld [vmem:[%s15 + $0x8] sm:$0xff]
  %v4294 = vld [vmem:[%s15 + $0x10] sm:$0xff]
  %v4295 = vld [vmem:[%s15 + $0x18] sm:$0xff]
  %s4296 = scalar_lea.vmem %s15, 32
  %v4297 = vld [vmem:[%s4296] sm:$0xff]
  %v4298 = vld [vmem:[%s4296 + $0x8] sm:$0xff]
  %v4299 = vld [vmem:[%s4296 + $0x10] sm:$0xff]
  %v4300 = vld [vmem:[%s4296 + $0x18] sm:$0xff]
  %v4303 = vrot.slane %v4290, 1
  %vm4304 = vcmask 1041409
  %v4305 = vsel %vm4304, %v4291, %v4303
  %v4306 = vsel %vm156, %v4305, 0
  %4308 = vmatprep.subr.mxu0 0.0
  %4309 = vmatpush1.msra.mxu0 0.0
  %4310 = vmatprep.subr.mxu0 0.0
  %4311 = vmatpush1.msra.mxu0 0.0
  %4312 = vmatprep.subr.mxu0 0.0
  %4313 = vmatpush1.msra.mxu0 0.0
  %4314 = vmatprep.subr.mxu0 0.0
  %4315 = vmatpush1.msra.mxu0 0.0
  %4316 = vmatprep.subr.mxu0 0.0
  %4317 = vmatpush1.msra.mxu0 0.0
  %4318 = vmatprep.subr.mxu0 0.0
  %4319 = vmatpush1.msra.mxu0 0.0
  %4320 = vmatprep.subr.mxu0 0.0
  %4321 = vmatpush1.msra.mxu0 0.0
  %4322 = vmatprep.subr.mxu0 0.0
  %4323 = vmatpush1.msra.mxu0 0.0
  %4324 = vmatprep.subr.mxu0 0.0
  %4325 = vmatpush1.msra.mxu0 0.0
  %4326 = vmatprep.subr.mxu0 0.0
  %4327 = vmatpush1.msra.mxu0 0.0
  %4328 = vmatprep.subr.mxu0 0.0
  %4329 = vmatpush1.msra.mxu0 0.0
  %4330 = vmatprep.subr.mxu0 0.0
  %4331 = vmatpush1.msra.mxu0 0.0
  %4332 = vmatprep.subr.mxu0 0.0
  %4333 = vmatpush1.msra.mxu0 %v4300
  %4334 = vmatprep.subr.mxu0 0.0
  %4335 = vmatpush1.msra.mxu0 %v4299
  %4336 = vmatprep.subr.mxu0 0.0
  %4337 = vmatpush1.msra.mxu0 %v4298
  %4338 = vmatprep.subr.mxu0 0.0
  %4339 = vmatpush1.msra.mxu0 %v4297
  %4340 = vmatprep.subr.mxu0 0.0
  %4341 = vmatpush2.msra.mxu0 0.0
  %4342 = vmatprep.subr.mxu0 0.0
  %4343 = vmatpush2.msra.mxu0 0.0
  %4344 = vmatprep.subr.mxu0 0.0
  %4345 = vmatpush2.msra.mxu0 0.0
  %4346 = vmatprep.subr.mxu0 0.0
  %4347 = vmatpush2.msra.mxu0 0.0
  %4348 = vmatprep.subr.mxu0 0.0
  %4349 = vmatpush2.msra.mxu0 0.0
  %4350 = vmatprep.subr.mxu0 0.0
  %4351 = vmatpush2.msra.mxu0 0.0
  %4352 = vmatprep.subr.mxu0 0.0
  %4353 = vmatpush2.msra.mxu0 0.0
  %4354 = vmatprep.subr.mxu0 0.0
  %4355 = vmatpush2.msra.mxu0 0.0
  %4356 = vmatprep.subr.mxu0 0.0
  %4357 = vmatpush2.msra.mxu0 0.0
  %4358 = vmatprep.subr.mxu0 0.0
  %4359 = vmatpush2.msra.mxu0 0.0
  %4360 = vmatprep.subr.mxu0 0.0
  %4361 = vmatpush2.msra.mxu0 0.0
  %4362 = vmatprep.subr.mxu0 0.0
  %4363 = vmatpush2.msra.mxu0 0.0
  %4364 = vmatprep.subr.mxu0 0.0
  %4365 = vmatpush2.msra.mxu0 0.0
  %4366 = vmatprep.subr.mxu0 0.0
  %4367 = vmatpush2.msra.mxu0 0.0
  %4368 = vmatprep.subr.mxu0 0.0
  %4369 = vmatpush2.msra.mxu0 0.0
  %4370 = vmatprep.subr.mxu0 0.0
  %4371 = vmatpush2.msra.mxu0 0.0
  %4372 = vmatprep.mubr.f32.mxu0 0.0
  %4373 = vmatmul.mubr.f32.gmra.mxu0 %v4306
  %v4374 = vpop.f32.mrf.mxu0
  %v4375 = vadd.f32 0.0, %v4374
  %v4376 = vpop.f32.mrf.mxu0
  %4377 = vdwg.mxu0
  %s4378 = scalar_lea.vmem %s15, 64
  %v4379 = vld [vmem:[%s4378] sm:$0xff]
  %v4380 = vld [vmem:[%s4378 + $0x8] sm:$0xff]
  %v4381 = vld [vmem:[%s4378 + $0x10] sm:$0xff]
  %v4382 = vld [vmem:[%s4378 + $0x18] sm:$0xff]
  %s4383 = scalar_lea.vmem %s15, 96
  %v4384 = vld [vmem:[%s4383] sm:$0xff]
  %v4385 = vld [vmem:[%s4383 + $0x8] sm:$0xff]
  %v4386 = vld [vmem:[%s4383 + $0x10] sm:$0xff]
  %v4387 = vld [vmem:[%s4383 + $0x18] sm:$0xff]
  %v4388 = vrot.slane %v4290, 3
  %v4389 = vrot.slane %v4291, 2
  %v4390 = vsel %vm4304, %v4389, %v4388
  %v4391 = vsel %vm156, %v4390, 0
  %4393 = vmatprep.subr.mxu0 0.0
  %4394 = vmatpush1.msra.mxu0 0.0
  %4395 = vmatprep.subr.mxu0 0.0
  %4396 = vmatpush1.msra.mxu0 0.0
  %4397 = vmatprep.subr.mxu0 0.0
  %4398 = vmatpush1.msra.mxu0 0.0
  %4399 = vmatprep.subr.mxu0 0.0
  %4400 = vmatpush1.msra.mxu0 0.0
  %4401 = vmatprep.subr.mxu0 0.0
  %4402 = vmatpush1.msra.mxu0 0.0
  %4403 = vmatprep.subr.mxu0 0.0
  %4404 = vmatpush1.msra.mxu0 0.0
  %4405 = vmatprep.subr.mxu0 0.0
  %4406 = vmatpush1.msra.mxu0 0.0
  %4407 = vmatprep.subr.mxu0 0.0
  %4408 = vmatpush1.msra.mxu0 0.0
  %4409 = vmatprep.subr.mxu0 0.0
  %4410 = vmatpush1.msra.mxu0 0.0
  %4411 = vmatprep.subr.mxu0 0.0
  %4412 = vmatpush1.msra.mxu0 0.0
  %4413 = vmatprep.subr.mxu0 0.0
  %4414 = vmatpush1.msra.mxu0 0.0
  %4415 = vmatprep.subr.mxu0 0.0
  %4416 = vmatpush1.msra.mxu0 0.0
  %4417 = vmatprep.subr.mxu0 0.0
  %4418 = vmatpush1.msra.mxu0 %v4387
  %4419 = vmatprep.subr.mxu0 0.0
  %4420 = vmatpush1.msra.mxu0 %v4386
  %4421 = vmatprep.subr.mxu0 0.0
  %4422 = vmatpush1.msra.mxu0 %v4385
  %4423 = vmatprep.subr.mxu0 0.0
  %4424 = vmatpush1.msra.mxu0 %v4384
  %4425 = vmatprep.subr.mxu0 0.0
  %4426 = vmatpush2.msra.mxu0 0.0
  %4427 = vmatprep.subr.mxu0 0.0
  %4428 = vmatpush2.msra.mxu0 0.0
  %4429 = vmatprep.subr.mxu0 0.0
  %4430 = vmatpush2.msra.mxu0 0.0
  %4431 = vmatprep.subr.mxu0 0.0
  %4432 = vmatpush2.msra.mxu0 0.0
  %4433 = vmatprep.subr.mxu0 0.0
  %4434 = vmatpush2.msra.mxu0 0.0
  %4435 = vmatprep.subr.mxu0 0.0
  %4436 = vmatpush2.msra.mxu0 0.0
  %4437 = vmatprep.subr.mxu0 0.0
  %4438 = vmatpush2.msra.mxu0 0.0
  %4439 = vmatprep.subr.mxu0 0.0
  %4440 = vmatpush2.msra.mxu0 0.0
  %4441 = vmatprep.subr.mxu0 0.0
  %4442 = vmatpush2.msra.mxu0 0.0
  %4443 = vmatprep.subr.mxu0 0.0
  %4444 = vmatpush2.msra.mxu0 0.0
  %4445 = vmatprep.subr.mxu0 0.0
  %4446 = vmatpush2.msra.mxu0 0.0
  %4447 = vmatprep.subr.mxu0 0.0
  %4448 = vmatpush2.msra.mxu0 0.0
  %4449 = vmatprep.subr.mxu0 0.0
  %4450 = vmatpush2.msra.mxu0 0.0
  %4451 = vmatprep.subr.mxu0 0.0
  %4452 = vmatpush2.msra.mxu0 0.0
  %4453 = vmatprep.subr.mxu0 0.0
  %4454 = vmatpush2.msra.mxu0 0.0
  %4455 = vmatprep.subr.mxu0 0.0
  %4456 = vmatpush2.msra.mxu0 0.0
  %4457 = vmatprep.mubr.f32.mxu0 0.0
  %4458 = vmatmul.mubr.f32.gmra.mxu0 %v4391
  %v4459 = vpop.f32.mrf.mxu0
  %v4460 = vadd.f32 0.0, %v4459
  %v4461 = vpop.f32.mrf.mxu0
  %4462 = vdwg.mxu0
  %s4463 = scalar_lea.vmem %s15, 128
  %v4464 = vld [vmem:[%s4463] sm:$0xff]
  %v4465 = vld [vmem:[%s4463 + $0x8] sm:$0xff]
  %v4466 = vld [vmem:[%s4463 + $0x10] sm:$0xff]
  %v4467 = vld [vmem:[%s4463 + $0x18] sm:$0xff]
  %s4468 = scalar_lea.vmem %s15, 160
  %v4469 = vld [vmem:[%s4468] sm:$0xff]
  %v4470 = vld [vmem:[%s4468 + $0x8] sm:$0xff]
  %v4471 = vld [vmem:[%s4468 + $0x10] sm:$0xff]
  %v4472 = vld [vmem:[%s4468 + $0x18] sm:$0xff]
  %v4473 = vrot.slane %v4290, 5
  %v4474 = vrot.slane %v4291, 4
  %v4475 = vsel %vm4304, %v4474, %v4473
  %v4476 = vsel %vm156, %v4475, 0
  %4478 = vmatprep.subr.mxu0 0.0
  %4479 = vmatpush1.msra.mxu0 0.0
  %4480 = vmatprep.subr.mxu0 0.0
  %4481 = vmatpush1.msra.mxu0 0.0
  %4482 = vmatprep.subr.mxu0 0.0
  %4483 = vmatpush1.msra.mxu0 0.0
  %4484 = vmatprep.subr.mxu0 0.0
  %4485 = vmatpush1.msra.mxu0 0.0
  %4486 = vmatprep.subr.mxu0 0.0
  %4487 = vmatpush1.msra.mxu0 0.0
  %4488 = vmatprep.subr.mxu0 0.0
  %4489 = vmatpush1.msra.mxu0 0.0
  %4490 = vmatprep.subr.mxu0 0.0
  %4491 = vmatpush1.msra.mxu0 0.0
  %4492 = vmatprep.subr.mxu0 0.0
  %4493 = vmatpush1.msra.mxu0 0.0
  %4494 = vmatprep.subr.mxu0 0.0
  %4495 = vmatpush1.msra.mxu0 0.0
  %4496 = vmatprep.subr.mxu0 0.0
  %4497 = vmatpush1.msra.mxu0 0.0
  %4498 = vmatprep.subr.mxu0 0.0
  %4499 = vmatpush1.msra.mxu0 0.0
  %4500 = vmatprep.subr.mxu0 0.0
  %4501 = vmatpush1.msra.mxu0 0.0
  %4502 = vmatprep.subr.mxu0 0.0
  %4503 = vmatpush1.msra.mxu0 %v4472
  %4504 = vmatprep.subr.mxu0 0.0
  %4505 = vmatpush1.msra.mxu0 %v4471
  %4506 = vmatprep.subr.mxu0 0.0
  %4507 = vmatpush1.msra.mxu0 %v4470
  %4508 = vmatprep.subr.mxu0 0.0
  %4509 = vmatpush1.msra.mxu0 %v4469
  %4510 = vmatprep.subr.mxu0 0.0
  %4511 = vmatpush2.msra.mxu0 0.0
  %4512 = vmatprep.subr.mxu0 0.0
  %4513 = vmatpush2.msra.mxu0 0.0
  %4514 = vmatprep.subr.mxu0 0.0
  %4515 = vmatpush2.msra.mxu0 0.0
  %4516 = vmatprep.subr.mxu0 0.0
  %4517 = vmatpush2.msra.mxu0 0.0
  %4518 = vmatprep.subr.mxu0 0.0
  %4519 = vmatpush2.msra.mxu0 0.0
  %4520 = vmatprep.subr.mxu0 0.0
  %4521 = vmatpush2.msra.mxu0 0.0
  %4522 = vmatprep.subr.mxu0 0.0
  %4523 = vmatpush2.msra.mxu0 0.0
  %4524 = vmatprep.subr.mxu0 0.0
  %4525 = vmatpush2.msra.mxu0 0.0
  %4526 = vmatprep.subr.mxu0 0.0
  %4527 = vmatpush2.msra.mxu0 0.0
  %4528 = vmatprep.subr.mxu0 0.0
  %4529 = vmatpush2.msra.mxu0 0.0
  %4530 = vmatprep.subr.mxu0 0.0
  %4531 = vmatpush2.msra.mxu0 0.0
  %4532 = vmatprep.subr.mxu0 0.0
  %4533 = vmatpush2.msra.mxu0 0.0
  %4534 = vmatprep.subr.mxu0 0.0
  %4535 = vmatpush2.msra.mxu0 0.0
  %4536 = vmatprep.subr.mxu0 0.0
  %4537 = vmatpush2.msra.mxu0 0.0
  %4538 = vmatprep.subr.mxu0 0.0
  %4539 = vmatpush2.msra.mxu0 0.0
  %4540 = vmatprep.subr.mxu0 0.0
  %4541 = vmatpush2.msra.mxu0 0.0
  %4542 = vmatprep.mubr.f32.mxu0 0.0
  %4543 = vmatmul.mubr.f32.gmra.mxu0 %v4476
  %v4544 = vpop.f32.mrf.mxu0
  %v4545 = vadd.f32 0.0, %v4544
  %v4546 = vpop.f32.mrf.mxu0
  %4547 = vdwg.mxu0
  %s4548 = scalar_lea.vmem %s15, 192
  %v4549 = vld [vmem:[%s4548] sm:$0xff]
  %v4550 = vld [vmem:[%s4548 + $0x8] sm:$0xff]
  %v4551 = vld [vmem:[%s4548 + $0x10] sm:$0xff]
  %v4552 = vld [vmem:[%s4548 + $0x18] sm:$0xff]
  %s4553 = scalar_lea.vmem %s15, 224
  %v4554 = vld [vmem:[%s4553] sm:$0xff]
  %v4555 = vld [vmem:[%s4553 + $0x8] sm:$0xff]
  %v4556 = vld [vmem:[%s4553 + $0x10] sm:$0xff]
  %v4557 = vld [vmem:[%s4553 + $0x18] sm:$0xff]
  %v4558 = vrot.slane %v4290, 7
  %v4559 = vrot.slane %v4291, 6
  %v4560 = vsel %vm4304, %v4559, %v4558
  %v4561 = vsel %vm156, %v4560, 0
  %4563 = vmatprep.subr.mxu0 0.0
  %4564 = vmatpush1.msra.mxu0 0.0
  %4565 = vmatprep.subr.mxu0 0.0
  %4566 = vmatpush1.msra.mxu0 0.0
  %4567 = vmatprep.subr.mxu0 0.0
  %4568 = vmatpush1.msra.mxu0 0.0
  %4569 = vmatprep.subr.mxu0 0.0
  %4570 = vmatpush1.msra.mxu0 0.0
  %4571 = vmatprep.subr.mxu0 0.0
  %4572 = vmatpush1.msra.mxu0 0.0
  %4573 = vmatprep.subr.mxu0 0.0
  %4574 = vmatpush1.msra.mxu0 0.0
  %4575 = vmatprep.subr.mxu0 0.0
  %4576 = vmatpush1.msra.mxu0 0.0
  %4577 = vmatprep.subr.mxu0 0.0
  %4578 = vmatpush1.msra.mxu0 0.0
  %4579 = vmatprep.subr.mxu0 0.0
  %4580 = vmatpush1.msra.mxu0 0.0
  %4581 = vmatprep.subr.mxu0 0.0
  %4582 = vmatpush1.msra.mxu0 0.0
  %4583 = vmatprep.subr.mxu0 0.0
  %4584 = vmatpush1.msra.mxu0 0.0
  %4585 = vmatprep.subr.mxu0 0.0
  %4586 = vmatpush1.msra.mxu0 0.0
  %4587 = vmatprep.subr.mxu0 0.0
  %4588 = vmatpush1.msra.mxu0 %v4557
  %4589 = vmatprep.subr.mxu0 0.0
  %4590 = vmatpush1.msra.mxu0 %v4556
  %4591 = vmatprep.subr.mxu0 0.0
  %4592 = vmatpush1.msra.mxu0 %v4555
  %4593 = vmatprep.subr.mxu0 0.0
  %4594 = vmatpush1.msra.mxu0 %v4554
  %4595 = vmatprep.subr.mxu0 0.0
  %4596 = vmatpush2.msra.mxu0 0.0
  %4597 = vmatprep.subr.mxu0 0.0
  %4598 = vmatpush2.msra.mxu0 0.0
  %4599 = vmatprep.subr.mxu0 0.0
  %4600 = vmatpush2.msra.mxu0 0.0
  %4601 = vmatprep.subr.mxu0 0.0
  %4602 = vmatpush2.msra.mxu0 0.0
  %4603 = vmatprep.subr.mxu0 0.0
  %4604 = vmatpush2.msra.mxu0 0.0
  %4605 = vmatprep.subr.mxu0 0.0
  %4606 = vmatpush2.msra.mxu0 0.0
  %4607 = vmatprep.subr.mxu0 0.0
  %4608 = vmatpush2.msra.mxu0 0.0
  %4609 = vmatprep.subr.mxu0 0.0
  %4610 = vmatpush2.msra.mxu0 0.0
  %4611 = vmatprep.subr.mxu0 0.0
  %4612 = vmatpush2.msra.mxu0 0.0
  %4613 = vmatprep.subr.mxu0 0.0
  %4614 = vmatpush2.msra.mxu0 0.0
  %4615 = vmatprep.subr.mxu0 0.0
  %4616 = vmatpush2.msra.mxu0 0.0
  %4617 = vmatprep.subr.mxu0 0.0
  %4618 = vmatpush2.msra.mxu0 0.0
  %4619 = vmatprep.subr.mxu0 0.0
  %4620 = vmatpush2.msra.mxu0 0.0
  %4621 = vmatprep.subr.mxu0 0.0
  %4622 = vmatpush2.msra.mxu0 0.0
  %4623 = vmatprep.subr.mxu0 0.0
  %4624 = vmatpush2.msra.mxu0 0.0
  %4625 = vmatprep.subr.mxu0 0.0
  %4626 = vmatpush2.msra.mxu0 0.0
  %4627 = vmatprep.mubr.f32.mxu0 0.0
  %4628 = vmatmul.mubr.f32.gmra.mxu0 %v4561
  %v4629 = vpop.f32.mrf.mxu0
  %v4630 = vadd.f32 0.0, %v4629
  %v4631 = vpop.f32.mrf.mxu0
  %4632 = vdwg.mxu0
  %v4633 = vrot.slane %v4291, 7
  %v4634 = vsel %vm4304, %v4633, %v4290
  %v4635 = vsel %vm156, %v4634, 0
  %4637 = vmatprep.subr.mxu0 0.0
  %4638 = vmatpush1.msra.mxu0 0.0
  %4639 = vmatprep.subr.mxu0 0.0
  %4640 = vmatpush1.msra.mxu0 0.0
  %4641 = vmatprep.subr.mxu0 0.0
  %4642 = vmatpush1.msra.mxu0 0.0
  %4643 = vmatprep.subr.mxu0 0.0
  %4644 = vmatpush1.msra.mxu0 0.0
  %4645 = vmatprep.subr.mxu0 0.0
  %4646 = vmatpush1.msra.mxu0 0.0
  %4647 = vmatprep.subr.mxu0 0.0
  %4648 = vmatpush1.msra.mxu0 0.0
  %4649 = vmatprep.subr.mxu0 0.0
  %4650 = vmatpush1.msra.mxu0 0.0
  %4651 = vmatprep.subr.mxu0 0.0
  %4652 = vmatpush1.msra.mxu0 0.0
  %4653 = vmatprep.subr.mxu0 0.0
  %4654 = vmatpush1.msra.mxu0 0.0
  %4655 = vmatprep.subr.mxu0 0.0
  %4656 = vmatpush1.msra.mxu0 0.0
  %4657 = vmatprep.subr.mxu0 0.0
  %4658 = vmatpush1.msra.mxu0 0.0
  %4659 = vmatprep.subr.mxu0 0.0
  %4660 = vmatpush1.msra.mxu0 0.0
  %4661 = vmatprep.subr.mxu0 0.0
  %4662 = vmatpush1.msra.mxu0 %v4295
  %4663 = vmatprep.subr.mxu0 0.0
  %4664 = vmatpush1.msra.mxu0 %v4294
  %4665 = vmatprep.subr.mxu0 0.0
  %4666 = vmatpush1.msra.mxu0 %v4293
  %4667 = vmatprep.subr.mxu0 0.0
  %4668 = vmatpush1.msra.mxu0 %v4292
  %4669 = vmatprep.subr.mxu0 0.0
  %4670 = vmatpush2.msra.mxu0 0.0
  %4671 = vmatprep.subr.mxu0 0.0
  %4672 = vmatpush2.msra.mxu0 0.0
  %4673 = vmatprep.subr.mxu0 0.0
  %4674 = vmatpush2.msra.mxu0 0.0
  %4675 = vmatprep.subr.mxu0 0.0
  %4676 = vmatpush2.msra.mxu0 0.0
  %4677 = vmatprep.subr.mxu0 0.0
  %4678 = vmatpush2.msra.mxu0 0.0
  %4679 = vmatprep.subr.mxu0 0.0
  %4680 = vmatpush2.msra.mxu0 0.0
  %4681 = vmatprep.subr.mxu0 0.0
  %4682 = vmatpush2.msra.mxu0 0.0
  %4683 = vmatprep.subr.mxu0 0.0
  %4684 = vmatpush2.msra.mxu0 0.0
  %4685 = vmatprep.subr.mxu0 0.0
  %4686 = vmatpush2.msra.mxu0 0.0
  %4687 = vmatprep.subr.mxu0 0.0
  %4688 = vmatpush2.msra.mxu0 0.0
  %4689 = vmatprep.subr.mxu0 0.0
  %4690 = vmatpush2.msra.mxu0 0.0
  %4691 = vmatprep.subr.mxu0 0.0
  %4692 = vmatpush2.msra.mxu0 0.0
  %4693 = vmatprep.subr.mxu0 0.0
  %4694 = vmatpush2.msra.mxu0 0.0
  %4695 = vmatprep.subr.mxu0 0.0
  %4696 = vmatpush2.msra.mxu0 0.0
  %4697 = vmatprep.subr.mxu0 0.0
  %4698 = vmatpush2.msra.mxu0 0.0
  %4699 = vmatprep.subr.mxu0 0.0
  %4700 = vmatpush2.msra.mxu0 0.0
  %4701 = vmatprep.mubr.f32.mxu0 0.0
  %4702 = vmatmul.mubr.f32.gmra.mxu0 %v4635
  %v4703 = vpop.f32.mrf.mxu0
  %v4704 = vadd.f32 %v4375, %v4703
  %v4705 = vpop.f32.mrf.mxu0
  %4706 = vdwg.mxu0
  %v4707 = vrot.slane %v4290, 2
  %v4708 = vrot.slane %v4291, 1
  %v4709 = vsel %vm4304, %v4708, %v4707
  %v4710 = vsel %vm156, %v4709, 0
  %4712 = vmatprep.subr.mxu0 0.0
  %4713 = vmatpush1.msra.mxu0 0.0
  %4714 = vmatprep.subr.mxu0 0.0
  %4715 = vmatpush1.msra.mxu0 0.0
  %4716 = vmatprep.subr.mxu0 0.0
  %4717 = vmatpush1.msra.mxu0 0.0
  %4718 = vmatprep.subr.mxu0 0.0
  %4719 = vmatpush1.msra.mxu0 0.0
  %4720 = vmatprep.subr.mxu0 0.0
  %4721 = vmatpush1.msra.mxu0 0.0
  %4722 = vmatprep.subr.mxu0 0.0
  %4723 = vmatpush1.msra.mxu0 0.0
  %4724 = vmatprep.subr.mxu0 0.0
  %4725 = vmatpush1.msra.mxu0 0.0
  %4726 = vmatprep.subr.mxu0 0.0
  %4727 = vmatpush1.msra.mxu0 0.0
  %4728 = vmatprep.subr.mxu0 0.0
  %4729 = vmatpush1.msra.mxu0 0.0
  %4730 = vmatprep.subr.mxu0 0.0
  %4731 = vmatpush1.msra.mxu0 0.0
  %4732 = vmatprep.subr.mxu0 0.0
  %4733 = vmatpush1.msra.mxu0 0.0
  %4734 = vmatprep.subr.mxu0 0.0
  %4735 = vmatpush1.msra.mxu0 0.0
  %4736 = vmatprep.subr.mxu0 0.0
  %4737 = vmatpush1.msra.mxu0 %v4382
  %4738 = vmatprep.subr.mxu0 0.0
  %4739 = vmatpush1.msra.mxu0 %v4381
  %4740 = vmatprep.subr.mxu0 0.0
  %4741 = vmatpush1.msra.mxu0 %v4380
  %4742 = vmatprep.subr.mxu0 0.0
  %4743 = vmatpush1.msra.mxu0 %v4379
  %4744 = vmatprep.subr.mxu0 0.0
  %4745 = vmatpush2.msra.mxu0 0.0
  %4746 = vmatprep.subr.mxu0 0.0
  %4747 = vmatpush2.msra.mxu0 0.0
  %4748 = vmatprep.subr.mxu0 0.0
  %4749 = vmatpush2.msra.mxu0 0.0
  %4750 = vmatprep.subr.mxu0 0.0
  %4751 = vmatpush2.msra.mxu0 0.0
  %4752 = vmatprep.subr.mxu0 0.0
  %4753 = vmatpush2.msra.mxu0 0.0
  %4754 = vmatprep.subr.mxu0 0.0
  %4755 = vmatpush2.msra.mxu0 0.0
  %4756 = vmatprep.subr.mxu0 0.0
  %4757 = vmatpush2.msra.mxu0 0.0
  %4758 = vmatprep.subr.mxu0 0.0
  %4759 = vmatpush2.msra.mxu0 0.0
  %4760 = vmatprep.subr.mxu0 0.0
  %4761 = vmatpush2.msra.mxu0 0.0
  %4762 = vmatprep.subr.mxu0 0.0
  %4763 = vmatpush2.msra.mxu0 0.0
  %4764 = vmatprep.subr.mxu0 0.0
  %4765 = vmatpush2.msra.mxu0 0.0
  %4766 = vmatprep.subr.mxu0 0.0
  %4767 = vmatpush2.msra.mxu0 0.0
  %4768 = vmatprep.subr.mxu0 0.0
  %4769 = vmatpush2.msra.mxu0 0.0
  %4770 = vmatprep.subr.mxu0 0.0
  %4771 = vmatpush2.msra.mxu0 0.0
  %4772 = vmatprep.subr.mxu0 0.0
  %4773 = vmatpush2.msra.mxu0 0.0
  %4774 = vmatprep.subr.mxu0 0.0
  %4775 = vmatpush2.msra.mxu0 0.0
  %4776 = vmatprep.mubr.f32.mxu0 0.0
  %4777 = vmatmul.mubr.f32.gmra.mxu0 %v4710
  %v4778 = vpop.f32.mrf.mxu0
  %v4779 = vadd.f32 %v4460, %v4778
  %v4780 = vpop.f32.mrf.mxu0
  %4781 = vdwg.mxu0
  %v4782 = vrot.slane %v4290, 4
  %v4783 = vrot.slane %v4291, 3
  %v4784 = vsel %vm4304, %v4783, %v4782
  %v4785 = vsel %vm156, %v4784, 0
  %4787 = vmatprep.subr.mxu0 0.0
  %4788 = vmatpush1.msra.mxu0 0.0
  %4789 = vmatprep.subr.mxu0 0.0
  %4790 = vmatpush1.msra.mxu0 0.0
  %4791 = vmatprep.subr.mxu0 0.0
  %4792 = vmatpush1.msra.mxu0 0.0
  %4793 = vmatprep.subr.mxu0 0.0
  %4794 = vmatpush1.msra.mxu0 0.0
  %4795 = vmatprep.subr.mxu0 0.0
  %4796 = vmatpush1.msra.mxu0 0.0
  %4797 = vmatprep.subr.mxu0 0.0
  %4798 = vmatpush1.msra.mxu0 0.0
  %4799 = vmatprep.subr.mxu0 0.0
  %4800 = vmatpush1.msra.mxu0 0.0
  %4801 = vmatprep.subr.mxu0 0.0
  %4802 = vmatpush1.msra.mxu0 0.0
  %4803 = vmatprep.subr.mxu0 0.0
  %4804 = vmatpush1.msra.mxu0 0.0
  %4805 = vmatprep.subr.mxu0 0.0
  %4806 = vmatpush1.msra.mxu0 0.0
  %4807 = vmatprep.subr.mxu0 0.0
  %4808 = vmatpush1.msra.mxu0 0.0
  %4809 = vmatprep.subr.mxu0 0.0
  %4810 = vmatpush1.msra.mxu0 0.0
  %4811 = vmatprep.subr.mxu0 0.0
  %4812 = vmatpush1.msra.mxu0 %v4467
  %4813 = vmatprep.subr.mxu0 0.0
  %4814 = vmatpush1.msra.mxu0 %v4466
  %4815 = vmatprep.subr.mxu0 0.0
  %4816 = vmatpush1.msra.mxu0 %v4465
  %4817 = vmatprep.subr.mxu0 0.0
  %4818 = vmatpush1.msra.mxu0 %v4464
  %4819 = vmatprep.subr.mxu0 0.0
  %4820 = vmatpush2.msra.mxu0 0.0
  %4821 = vmatprep.subr.mxu0 0.0
  %4822 = vmatpush2.msra.mxu0 0.0
  %4823 = vmatprep.subr.mxu0 0.0
  %4824 = vmatpush2.msra.mxu0 0.0
  %4825 = vmatprep.subr.mxu0 0.0
  %4826 = vmatpush2.msra.mxu0 0.0
  %4827 = vmatprep.subr.mxu0 0.0
  %4828 = vmatpush2.msra.mxu0 0.0
  %4829 = vmatprep.subr.mxu0 0.0
  %4830 = vmatpush2.msra.mxu0 0.0
  %4831 = vmatprep.subr.mxu0 0.0
  %4832 = vmatpush2.msra.mxu0 0.0
  %4833 = vmatprep.subr.mxu0 0.0
  %4834 = vmatpush2.msra.mxu0 0.0
  %4835 = vmatprep.subr.mxu0 0.0
  %4836 = vmatpush2.msra.mxu0 0.0
  %4837 = vmatprep.subr.mxu0 0.0
  %4838 = vmatpush2.msra.mxu0 0.0
  %4839 = vmatprep.subr.mxu0 0.0
  %4840 = vmatpush2.msra.mxu0 0.0
  %4841 = vmatprep.subr.mxu0 0.0
  %4842 = vmatpush2.msra.mxu0 0.0
  %4843 = vmatprep.subr.mxu0 0.0
  %4844 = vmatpush2.msra.mxu0 0.0
  %4845 = vmatprep.subr.mxu0 0.0
  %4846 = vmatpush2.msra.mxu0 0.0
  %4847 = vmatprep.subr.mxu0 0.0
  %4848 = vmatpush2.msra.mxu0 0.0
  %4849 = vmatprep.subr.mxu0 0.0
  %4850 = vmatpush2.msra.mxu0 0.0
  %4851 = vmatprep.mubr.f32.mxu0 0.0
  %4852 = vmatmul.mubr.f32.gmra.mxu0 %v4785
  %v4853 = vpop.f32.mrf.mxu0
  %v4854 = vadd.f32 %v4545, %v4853
  %v4855 = vpop.f32.mrf.mxu0
  %4856 = vdwg.mxu0
  %v4857 = vrot.slane %v4290, 6
  %v4858 = vrot.slane %v4291, 5
  %v4859 = vsel %vm4304, %v4858, %v4857
  %v4860 = vsel %vm156, %v4859, 0
  %4862 = vmatprep.subr.mxu0 0.0
  %4863 = vmatpush1.msra.mxu0 0.0
  %4864 = vmatprep.subr.mxu0 0.0
  %4865 = vmatpush1.msra.mxu0 0.0
  %4866 = vmatprep.subr.mxu0 0.0
  %4867 = vmatpush1.msra.mxu0 0.0
  %4868 = vmatprep.subr.mxu0 0.0
  %4869 = vmatpush1.msra.mxu0 0.0
  %4870 = vmatprep.subr.mxu0 0.0
  %4871 = vmatpush1.msra.mxu0 0.0
  %4872 = vmatprep.subr.mxu0 0.0
  %4873 = vmatpush1.msra.mxu0 0.0
  %4874 = vmatprep.subr.mxu0 0.0
  %4875 = vmatpush1.msra.mxu0 0.0
  %4876 = vmatprep.subr.mxu0 0.0
  %4877 = vmatpush1.msra.mxu0 0.0
  %4878 = vmatprep.subr.mxu0 0.0
  %4879 = vmatpush1.msra.mxu0 0.0
  %4880 = vmatprep.subr.mxu0 0.0
  %4881 = vmatpush1.msra.mxu0 0.0
  %4882 = vmatprep.subr.mxu0 0.0
  %4883 = vmatpush1.msra.mxu0 0.0
  %4884 = vmatprep.subr.mxu0 0.0
  %4885 = vmatpush1.msra.mxu0 0.0
  %4886 = vmatprep.subr.mxu0 0.0
  %4887 = vmatpush1.msra.mxu0 %v4552
  %4888 = vmatprep.subr.mxu0 0.0
  %4889 = vmatpush1.msra.mxu0 %v4551
  %4890 = vmatprep.subr.mxu0 0.0
  %4891 = vmatpush1.msra.mxu0 %v4550
  %4892 = vmatprep.subr.mxu0 0.0
  %4893 = vmatpush1.msra.mxu0 %v4549
  %4894 = vmatprep.subr.mxu0 0.0
  %4895 = vmatpush2.msra.mxu0 0.0
  %4896 = vmatprep.subr.mxu0 0.0
  %4897 = vmatpush2.msra.mxu0 0.0
  %4898 = vmatprep.subr.mxu0 0.0
  %4899 = vmatpush2.msra.mxu0 0.0
  %4900 = vmatprep.subr.mxu0 0.0
  %4901 = vmatpush2.msra.mxu0 0.0
  %4902 = vmatprep.subr.mxu0 0.0
  %4903 = vmatpush2.msra.mxu0 0.0
  %4904 = vmatprep.subr.mxu0 0.0
  %4905 = vmatpush2.msra.mxu0 0.0
  %4906 = vmatprep.subr.mxu0 0.0
  %4907 = vmatpush2.msra.mxu0 0.0
  %4908 = vmatprep.subr.mxu0 0.0
  %4909 = vmatpush2.msra.mxu0 0.0
  %4910 = vmatprep.subr.mxu0 0.0
  %4911 = vmatpush2.msra.mxu0 0.0
  %4912 = vmatprep.subr.mxu0 0.0
  %4913 = vmatpush2.msra.mxu0 0.0
  %4914 = vmatprep.subr.mxu0 0.0
  %4915 = vmatpush2.msra.mxu0 0.0
  %4916 = vmatprep.subr.mxu0 0.0
  %4917 = vmatpush2.msra.mxu0 0.0
  %4918 = vmatprep.subr.mxu0 0.0
  %4919 = vmatpush2.msra.mxu0 0.0
  %4920 = vmatprep.subr.mxu0 0.0
  %4921 = vmatpush2.msra.mxu0 0.0
  %4922 = vmatprep.subr.mxu0 0.0
  %4923 = vmatpush2.msra.mxu0 0.0
  %4924 = vmatprep.subr.mxu0 0.0
  %4925 = vmatpush2.msra.mxu0 0.0
  %4926 = vmatprep.mubr.f32.mxu0 0.0
  %4927 = vmatmul.mubr.f32.gmra.mxu0 %v4860
  %v4928 = vpop.f32.mrf.mxu0
  %v4929 = vadd.f32 %v4630, %v4928
  %v4930 = vpop.f32.mrf.mxu0
  %4931 = vdwg.mxu0
  %v4932 = vadd.f32 %v4704, %v4779
  %v4933 = vadd.f32 %v4854, %v4929
  %v4934 = vadd.f32 %v4932, %v4933
  %v4935 = vld [vmem:[%s16] sm:$0x1]
  %v4937 = vlaneseq
  %v4938 = vshrl.u32 %v4937, 7
  %v4939 = vsub.s32 0, %v4938
  %v4940 = vrot.slane %v4935, %v4939
  %v4942 = vadd.f32 %v4934, %v4940
  %vm4943 = vcmp.lt.s32.totalorder %v151, 16
  %v4944 = vsel %vm4943, %v4942, -1e+30
  %vm4945 = vcmask 1041408
  %v4946 = vsel %vm4945, %v4944, -inf
  %4947 = vmax.xlane.f32.xlu0 %v4946
  %v4948 = vpop.xlane.xlu0 %4947
  %v4949 = vsub.f32 %v4944, %v4948
  %v4950 = vmul.f32 %v4949, 1.442695
  %v4951 = vpow.pop %v4950
  %v4952 = vsel %vm4945, %v4951, 0.0
  %4953 = vadd.xlane.f32.xlu0 %v4952
  %v4954 = vpop.xlane.xlu0 %4953
  %v4955 = vrcp.pop %v4954
  %v4956 = vmul.f32 %v4951, %v4955
  %4957 = vst [vmem:[%s17] sm:$0x3] %v4956
  // Predicated region
  $region70: #{model_forward.1} parent=0 // pred_check
    _
  $region71: #{model_forward.1} parent=0 // pred_check_branch
    %4959 = sbr.rel (0) target = $region73
  $region72: #{model_forward.1} parent=0 // pred_region
    _
  $region73: #{model_forward.1} parent=0 // pred_fallthru
    _
  // Predicated region
  $region74: #{model_forward.1} parent=0 // pred_check
    _
  $region75: #{model_forward.1} parent=0 // pred_check_branch
    %4961 = sbr.rel (0) target = $region77
  $region76: #{model_forward.1} parent=0 // pred_region
    _
  $region77: #{model_forward.1} parent=0 // pred_fallthru
    _

</llo_original>
